<compile_context>
chip_gen: v7x
topology: tpu7x:2x2x1
jax: 0.10.0
libtpu: 0.0.40
codegen_flags: <defaults>
</compile_context>

<pallas_src>
import functools
import math

import jax
import jax.numpy as jnp
from jax import lax
from jax.experimental import pallas as pl
from jax.experimental.pallas import tpu as pltpu


_LANE = 128
_GN_EPS = 1e-5


# ---------------------------------------------------------------------------
# VMEM sizing helpers (generation-aware)
# ---------------------------------------------------------------------------
def _vmem_limits():
    """Scoped-VMEM limit and kernel working-set budget for this chip."""
    try:
        cap = int(pltpu.get_tpu_info().vmem_capacity_bytes)
    except Exception:
        cap = 64 * 1024 * 1024
    limit = min(64 * 1024 * 1024, (cap * 3) // 4)   # ~64 MiB v5e/v6e, ~48 MiB v7x
    budget = (limit * 2) // 3                       # headroom for Mosaic internals
    return budget, limit


def _pick_spatial_tile(p_total, quantum, per_tp_bytes, budget_bytes):
    """Largest TP that divides P, is a multiple of `quantum` (or == P), fits."""
    cap = max(1, budget_bytes // max(per_tp_bytes, 1))
    if p_total <= cap:
        return p_total
    best = 0
    d = quantum
    while d <= cap:
        if p_total % d == 0:
            best = d
        d += quantum
    if best == 0:
        raise ValueError(
            "encoder kernel: cannot tile spatial dim P=%d into the VMEM budget "
            "(%d bytes, %d bytes/position, tile quantum %d)."
            % (p_total, budget_bytes, per_tp_bytes, quantum))
    return best


# ---------------------------------------------------------------------------
# Fused kernel: [prev GroupNorm+ReLU] -> conv3x3/s2 (one MXU matmul over taps
# rebuilt from phase-split planes) -> per-tile GroupNorm partial statistics
# ---------------------------------------------------------------------------
def _conv_gn_stats_kernel(planes_ref, w_ref, scale_ref, shift_ref, mask_ref,
                          mgc_ref, mcg_ref, y_ref, stat_ref, *, apply_prenorm,
                          chans_per_group):
    """One (batch, spatial-tile) grid step.

    planes_ref : (1, 6, Cin, TP) bf16  phase-split raw input planes
                 [0]=x[0::2,0::2] [1]=x[0::2,1::2] [2]=x[1::2,0::2]
                 [3]=x[1::2,1::2] [4]=[2] shifted down one row, [5]=[3] shifted
    w_ref      : (Cout, 9*Cin)    bf16  conv weight, tap-major / cin-minor
    scale_ref  : (1, Cin, 1)      f32   previous layer's folded GN scale
    shift_ref  : (1, Cin, 1)      f32   previous layer's folded GN shift
    mask_ref   : (3, TP)          f32   [0]=col!=0, [1]=row!=0, [2]=both
    mgc_ref    : (G, Cout)        f32   one-hot group<-channel membership
    mcg_ref    : (Cout, G)        f32   transpose of the above
    y_ref      : (1, Cout, TP)    bf16  RAW conv output tile (pre-norm)
    stat_ref   : (1, 1, 2G, 128)  f32   rows [0,G)=group sums, [G,2G)=centered M2
    """
    tp = planes_ref.shape[3]
    groups = mgc_ref.shape[0]

    def plane(j):
        p = planes_ref[0, j].astype(jnp.float32)                    # (Cin, TP)
        if apply_prenorm:
            # previous layer's GroupNorm + ReLU, fused into this layer's load
            p = jnp.maximum(p * scale_ref[0] + shift_ref[0], 0.0)
        return p

    ee, eo, oe, oo, oe_s, oo_s = (plane(j) for j in range(6))

    col_ok = mask_ref[0:1, :]                                       # (1, TP)
    row_ok = mask_ref[1:2, :]
    rc_ok = mask_ref[2:3, :]

    def shift_col(p):
        # p[:, j] <- p[:, j-1]; column-0 entries are garbage, masked below.
        # TODO(synk): pltpu.roll(p, 1, axis=-1) would avoid the copy.
        return jnp.concatenate([p[:, :1], p[:, :-1]], axis=1)

    taps = (
        shift_col(oo_s) * rc_ok,   # (kh=0, kw=0)
        oe_s * row_ok,             # (0, 1)
        oo_s * row_ok,             # (0, 2)
        shift_col(eo) * col_ok,    # (1, 0)
        ee,                        # (1, 1)
        eo,                        # (1, 2)
        shift_col(oo) * col_ok,    # (2, 0)
        oe,                        # (2, 1)
        oo,                        # (2, 2)
    )
    x_k = jnp.concatenate([t.astype(jnp.bfloat16) for t in taps], axis=0)

    # conv for this tile: one bf16 MXU matmul with f32 accumulation
    acc = jnp.dot(w_ref[...], x_k, preferred_element_type=jnp.float32)  # (Cout, TP)
    y_ref[0] = acc.astype(y_ref.dtype)        # raw (pre-norm) activation, bf16

    # Per-tile GroupNorm partials (numerically stable centered M2), computed
    # from the f32 accumulator BEFORE the bf16 downcast above.
    cnt = jnp.float32(tp * chans_per_group)
    gsum = jnp.dot(mgc_ref[...], acc, preferred_element_type=jnp.float32)  # (G, TP)
    s_g = jnp.sum(gsum, axis=1, keepdims=True)                             # (G, 1)
    mean_c = jnp.dot(mcg_ref[...],
                     jnp.broadcast_to(s_g / cnt, (groups, tp)),
                     preferred_element_type=jnp.float32)                   # (Cout, TP)
    dif = acc - mean_c
    m2g = jnp.dot(mgc_ref[...], dif * dif, preferred_element_type=jnp.float32)
    m2_g = jnp.sum(m2g, axis=1, keepdims=True)                             # (G, 1)

    st = jnp.concatenate([s_g, m2_g], axis=0)                              # (2G, 1)
    lane0 = lax.broadcasted_iota(jnp.int32, (1, stat_ref.shape[3]), 1) == 0
    stat_ref[0, 0] = jnp.where(lane0, st, 0.0)                             # (2G, 128)


# ---------------------------------------------------------------------------
# Final layer's normalize + affine + ReLU (only run once, after layer 3)
# ---------------------------------------------------------------------------
def _norm_relu_kernel(y_ref, scale_ref, shift_ref, o_ref):
    y = y_ref[0].astype(jnp.float32)                                # (C, TP)
    o_ref[0] = jnp.maximum(y * scale_ref[0] + shift_ref[0], 0.0).astype(o_ref.dtype)


# ---------------------------------------------------------------------------
# One encoder block: fused [prev GN+ReLU] -> Conv2d -> stats -> scale/shift
# ---------------------------------------------------------------------------
def _encoder_conv_block(x, w, gamma, beta, groups, eps, prev_scale, prev_shift):
    """x: (N, Cin, H, W) RAW (un-normalized) previous activation or net input.

    Returns (y_raw (N,Cout,Hout,Wout) bf16, scale_c (N,Cout), shift_c (N,Cout))
    where scale/shift fold THIS layer's GroupNorm mean/var and affine params.
    """
    n, cin, h, wdt = x.shape
    cout = w.shape[0]
    if h % 2 or wdt % 2:
        raise ValueError("encoder kernel: spatial dims must be even, got %s"
                         % ((h, wdt),))
    if cout % groups:
        raise ValueError("num_channels must be divisible by group_num")
    cg = cout // groups
    hout, wout = h // 2, wdt // 2
    p = hout * wout
    k = 9 * cin

    # ---- phase-split staging (1.5x the activation; replaces 2.25x im2col) ----
    xb = x.astype(jnp.bfloat16)
    ee = xb[:, :, 0::2, 0::2]
    eo = xb[:, :, 0::2, 1::2]
    oe = xb[:, :, 1::2, 0::2]
    oo = xb[:, :, 1::2, 1::2]
    zrow = jnp.zeros_like(oe[:, :, :1, :])
    oe_s = jnp.concatenate([zrow, oe[:, :, :-1, :]], axis=2)   # shifted down 1 row
    oo_s = jnp.concatenate([zrow, oo[:, :, :-1, :]], axis=2)
    planes = jnp.stack([ee, eo, oe, oo, oe_s, oo_s], axis=1).reshape(n, 6, cin, p)

    # conv weight as (Cout, K), tap-major / cin-minor (matches kernel tap order)
    w_mat = jnp.transpose(w, (0, 2, 3, 1)).reshape(cout, k).astype(jnp.bfloat16)

    if prev_scale is None:
        scale_in = jnp.zeros((n, cin, 1), jnp.float32)          # unused in kernel
        shift_in = jnp.zeros((n, cin, 1), jnp.float32)
        apply_prenorm = False
    else:
        scale_in = prev_scale.reshape(n, cin, 1).astype(jnp.float32)
        shift_in = prev_shift.reshape(n, cin, 1).astype(jnp.float32)
        apply_prenorm = True

    # conv-padding masks on the flattened output grid (hoisted out of kernel)
    pos = jnp.arange(p, dtype=jnp.int32)
    col_ok = (pos % wout != 0).astype(jnp.float32)
    row_ok = (pos >= wout).astype(jnp.float32)
    masks = jnp.stack([col_ok, row_ok, col_ok * row_ok], axis=0)     # (3, P)

    member_gc = (jnp.arange(cout)[None, :] // cg ==
                 jnp.arange(groups)[:, None]).astype(jnp.float32)    # (G, Cout)
    member_cg = member_gc.T                                          # (Cout, G)

    # ---- spatial tile sizing (row-aligned so the in-kernel shifts stay exact) --
    budget, vmem_limit = _vmem_limits()
    per_tp = (2 * (6 * cin * 2) + 2 * (cout * 2)          # double-buffered in/out
              + 6 * cin * 4 + 3 * cin * 4 + 9 * cin * 2   # f32 planes, shifts, taps
              + 4 * cout * 4 + 4 * groups * 4)            # acc / diff / mean temps
    tp = _pick_spatial_tile(p, math.lcm(_LANE, wout), per_tp, budget)
    t = p // tp

    cparams = pltpu.CompilerParams(
        dimension_semantics=("parallel", "parallel"),
        vmem_limit_bytes=vmem_limit)

    y_raw, stats = pl.pallas_call(
        functools.partial(_conv_gn_stats_kernel, apply_prenorm=apply_prenorm,
                          chans_per_group=cg),
        out_shape=(jax.ShapeDtypeStruct((n, cout, p), jnp.bfloat16),
                   jax.ShapeDtypeStruct((n, t, 2 * groups, _LANE), jnp.float32)),
        grid_spec=pltpu.PrefetchScalarGridSpec(
            num_scalar_prefetch=0,
            grid=(n, t),
            in_specs=[
                pl.BlockSpec((1, 6, cin, tp), lambda ni, ti: (ni, 0, 0, ti)),
                pl.BlockSpec((cout, k), lambda ni, ti: (0, 0)),
                pl.BlockSpec((1, cin, 1), lambda ni, ti: (ni, 0, 0)),
                pl.BlockSpec((1, cin, 1), lambda ni, ti: (ni, 0, 0)),
                pl.BlockSpec((3, tp), lambda ni, ti: (0, ti)),
                pl.BlockSpec((groups, cout), lambda ni, ti: (0, 0)),
                pl.BlockSpec((cout, groups), lambda ni, ti: (0, 0)),
            ],
            out_specs=[
                pl.BlockSpec((1, cout, tp), lambda ni, ti: (ni, 0, ti)),
                pl.BlockSpec((1, 1, 2 * groups, _LANE),
                             lambda ni, ti: (ni, ti, 0, 0)),
            ],
        ),
        compiler_params=cparams,
    )(planes, w_mat, scale_in, shift_in, masks, member_gc, member_cg)

    # ---- tiny cross-tile combine (parallel-variance formula, all XLA) ----
    s_g = stats[:, :, :groups, 0]                                 # (N, T, G)
    m2 = stats[:, :, groups:2 * groups, 0]                        # (N, T, G)
    n_tile = tp * cg                                              # equal tiles (TP | P)
    tile_mean = s_g / n_tile
    mean = jnp.mean(tile_mean, axis=1)                            # (N, G)
    var = (jnp.sum(m2, axis=1) / (t * n_tile)
           + jnp.mean(jnp.square(tile_mean - mean[:, None, :]), axis=1))
    inv = lax.rsqrt(var + eps)                                    # (N, G)

    scale_c = jnp.repeat(inv, cg, axis=1) * gamma[None, :]        # (N, Cout)
    shift_c = beta[None, :] - jnp.repeat(mean, cg, axis=1) * scale_c

    return y_raw.reshape(n, cout, hout, wout), scale_c, shift_c


def _apply_final_norm_relu(y_raw, scale_c, shift_c, out_dtype):
    """Apply the LAST layer's folded GroupNorm + ReLU (channel-major, lane-dense)."""
    n, c, h, wdt = y_raw.shape
    p = h * wdt
    budget, vmem_limit = _vmem_limits()
    per_tp = 2 * (c * 2) + 2 * (c * 4) + 2 * (c * 4)
    tp = _pick_spatial_tile(p, _LANE, per_tp, budget)
    t = p // tp
    cparams = pltpu.CompilerParams(
        dimension_semantics=("parallel", "parallel"),
        vmem_limit_bytes=vmem_limit)
    out = pl.pallas_call(
        _norm_relu_kernel,
        out_shape=jax.ShapeDtypeStruct((n, c, p), out_dtype),
        grid_spec=pltpu.PrefetchScalarGridSpec(
            num_scalar_prefetch=0,
            grid=(n, t),
            in_specs=[
                pl.BlockSpec((1, c, tp), lambda ni, ti: (ni, 0, ti)),
                pl.BlockSpec((1, c, 1), lambda ni, ti: (ni, 0, 0)),
                pl.BlockSpec((1, c, 1), lambda ni, ti: (ni, 0, 0)),
            ],
            out_specs=pl.BlockSpec((1, c, tp), lambda ni, ti: (ni, 0, ti)),
        ),
        compiler_params=cparams,
    )(y_raw.reshape(n, c, p),
      scale_c.reshape(n, c, 1).astype(jnp.float32),
      shift_c.reshape(n, c, 1).astype(jnp.float32))
    return out.reshape(n, c, h, wdt)


# ---------------------------------------------------------------------------
# Public wrappers
# ---------------------------------------------------------------------------
def encoder_forward(x_nchw, params, group_num=8, eps=_GN_EPS):
    """Pallas forward pass of `Encoder` (NCHW in, NCHW out)."""
    act = x_nchw
    scale = shift = None
    for (w, gamma, beta) in params:
        act, scale, shift = _encoder_conv_block(act, w, gamma, beta, group_num,
                                                eps, scale, shift)
    return _apply_final_norm_relu(act, scale, shift, x_nchw.dtype)


def init_encoder_params(key, input_ch=1, filters=(32, 64, 128)):
    """Deterministic synthetic parameters (Conv weights + GroupNorm affine)."""
    params = []
    cin = input_ch
    for cout in filters:
        key, sub = jax.random.split(key)
        fan_in = cin * 9
        w = jax.random.normal(sub, (cout, cin, 3, 3), jnp.float32) * (2.0 / fan_in) ** 0.5
        gamma = jnp.ones((cout,), jnp.float32)   # PyTorch GroupNorm default init
        beta = jnp.zeros((cout,), jnp.float32)
        params.append((w, gamma, beta))
        cin = cout
    return params


def encoder_forward_ref(x_nchw, params, group_num=8, eps=_GN_EPS):
    """Pure-JAX reference mirroring the kernel's dtype policy (bf16 staging and
    conv operands, f32 GroupNorm math).  Not a bit-exact f32 PyTorch repro."""
    cur = x_nchw.astype(jnp.float32)
    prev_scale = prev_shift = None
    for (w, gamma, beta) in params:
        xin = cur.astype(jnp.bfloat16).astype(jnp.float32)      # bf16 staging
        if prev_scale is not None:
            xin = jnp.maximum(xin * prev_scale[:, :, None, None]
                              + prev_shift[:, :, None, None], 0.0)
        y = lax.conv_general_dilated(
            xin.astype(jnp.bfloat16), w.astype(jnp.bfloat16),
            window_strides=(2, 2), padding=((1, 1), (1, 1)),
            dimension_numbers=("NCHW", "OIHW", "NCHW"),
            preferred_element_type=jnp.float32)
        n, c, hh, ww = y.shape
        cg = c // group_num
        yg = y.reshape(n, group_num, cg, hh, ww)
        mean = jnp.mean(yg, axis=(2, 3, 4))
        var = jnp.mean(jnp.square(yg - mean[:, :, None, None, None]), axis=(2, 3, 4))
        inv = lax.rsqrt(var + eps)
        prev_scale = jnp.repeat(inv, cg, axis=1) * gamma[None, :]
        prev_shift = beta[None, :] - jnp.repeat(mean, cg, axis=1) * prev_scale
        cur = y
    yq = cur.astype(jnp.bfloat16).astype(jnp.float32)
    out = jnp.maximum(yq * prev_scale[:, :, None, None]
                      + prev_shift[:, :, None, None], 0.0)
    return out.astype(x_nchw.dtype)


if __name__ == "__main__":
    key = jax.random.PRNGKey(0)
    k_x, k_p = jax.random.split(key)

    # Small input consistent with the module: NCHW, input_ch=1, spatial 16x16.
    x = jax.random.normal(k_x, (2, 1, 16, 16), jnp.float32)
    params = init_encoder_params(k_p, input_ch=1, filters=(32, 64, 128))

    fwd = jax.jit(functools.partial(encoder_forward, group_num=8))
    out = jax.block_until_ready(fwd(x, params))
    ref = jax.block_until_ready(encoder_forward_ref(x, params, group_num=8))

    assert out.shape == (2, 128, 2, 2), out.shape
    max_err = float(jnp.max(jnp.abs(out - ref)))
    # The reference mirrors the kernel's bf16 policy; remaining differences are
    # accumulation-order only, so this tolerance is comfortable.
    assert jnp.allclose(out, ref, atol=1e-2, rtol=1e-2), max_err

    print("KERNEL_OK")
</pallas_src>

<mosaic_0001>
module attributes {stable_mosaic.version = 11 : i64} {
  func.func @_conv_gn_stats_kernel(%arg0: i32, %arg1: i32, %arg2: memref<1x6x1x64xbf16, #tpu.memory_space<vmem>>, %arg3: memref<32x9xbf16, #tpu.memory_space<vmem>>, %arg4: memref<1x1x1xf32, #tpu.memory_space<vmem>>, %arg5: memref<1x1x1xf32, #tpu.memory_space<vmem>>, %arg6: memref<3x64xf32, #tpu.memory_space<vmem>>, %arg7: memref<8x32xf32, #tpu.memory_space<vmem>>, %arg8: memref<32x8xf32, #tpu.memory_space<vmem>>, %arg9: memref<1x32x64xbf16, #tpu.memory_space<vmem>>, %arg10: memref<1x1x16x128xf32, #tpu.memory_space<vmem>>) attributes {dimension_semantics = [#tpu.dimension_semantics<parallel>, #tpu.dimension_semantics<parallel>], iteration_bounds = array<i64: 2, 1>, scalar_prefetch = 0 : i64, scratch_operands = 0 : i64, tpu.core_type = #tpu.core_type<tc>, window_params = [{transform_indices = @transform_0, window_bounds = array<i64: 1, 6, 1, 64>}, {pipeline_mode = #tpu.pipeline_mode<synchronous>, transform_indices = @transform_1, window_bounds = array<i64: 32, 9>}, {transform_indices = @transform_2, window_bounds = array<i64: 1, 1, 1>}, {transform_indices = @transform_3, window_bounds = array<i64: 1, 1, 1>}, {transform_indices = @transform_4, window_bounds = array<i64: 3, 64>}, {pipeline_mode = #tpu.pipeline_mode<synchronous>, transform_indices = @transform_5, window_bounds = array<i64: 8, 32>}, {pipeline_mode = #tpu.pipeline_mode<synchronous>, transform_indices = @transform_6, window_bounds = array<i64: 32, 8>}, {transform_indices = @transform_7, window_bounds = array<i64: 1, 32, 64>}, {transform_indices = @transform_8, window_bounds = array<i64: 1, 1, 16, 128>}]} {
    %c0 = arith.constant 0 : index
    %c0_0 = arith.constant 0 : index
    %c0_1 = arith.constant 0 : index
    %c0_2 = arith.constant 0 : index
    %0 = vector.load %arg2[%c0, %c0_0, %c0_1, %c0_2] : memref<1x6x1x64xbf16, #tpu.memory_space<vmem>>, vector<1x1x1x64xbf16>
    %1 = vector.shape_cast %0 : vector<1x1x1x64xbf16> to vector<1x64xbf16>
    %2 = arith.extf %1 : vector<1x64xbf16> to vector<1x64xf32>
    %c0_3 = arith.constant 0 : index
    %c1 = arith.constant 1 : index
    %c0_4 = arith.constant 0 : index
    %c0_5 = arith.constant 0 : index
    %3 = vector.load %arg2[%c0_3, %c1, %c0_4, %c0_5] : memref<1x6x1x64xbf16, #tpu.memory_space<vmem>>, vector<1x1x1x64xbf16>
    %4 = vector.shape_cast %3 : vector<1x1x1x64xbf16> to vector<1x64xbf16>
    %5 = arith.extf %4 : vector<1x64xbf16> to vector<1x64xf32>
    %c0_6 = arith.constant 0 : index
    %c2 = arith.constant 2 : index
    %c0_7 = arith.constant 0 : index
    %c0_8 = arith.constant 0 : index
    %6 = vector.load %arg2[%c0_6, %c2, %c0_7, %c0_8] : memref<1x6x1x64xbf16, #tpu.memory_space<vmem>>, vector<1x1x1x64xbf16>
    %7 = vector.shape_cast %6 : vector<1x1x1x64xbf16> to vector<1x64xbf16>
    %8 = arith.extf %7 : vector<1x64xbf16> to vector<1x64xf32>
    %c0_9 = arith.constant 0 : index
    %c3 = arith.constant 3 : index
    %c0_10 = arith.constant 0 : index
    %c0_11 = arith.constant 0 : index
    %9 = vector.load %arg2[%c0_9, %c3, %c0_10, %c0_11] : memref<1x6x1x64xbf16, #tpu.memory_space<vmem>>, vector<1x1x1x64xbf16>
    %10 = vector.shape_cast %9 : vector<1x1x1x64xbf16> to vector<1x64xbf16>
    %11 = arith.extf %10 : vector<1x64xbf16> to vector<1x64xf32>
    %c0_12 = arith.constant 0 : index
    %c4 = arith.constant 4 : index
    %c0_13 = arith.constant 0 : index
    %c0_14 = arith.constant 0 : index
    %12 = vector.load %arg2[%c0_12, %c4, %c0_13, %c0_14] : memref<1x6x1x64xbf16, #tpu.memory_space<vmem>>, vector<1x1x1x64xbf16>
    %13 = vector.shape_cast %12 : vector<1x1x1x64xbf16> to vector<1x64xbf16>
    %14 = arith.extf %13 : vector<1x64xbf16> to vector<1x64xf32>
    %c0_15 = arith.constant 0 : index
    %c5 = arith.constant 5 : index
    %c0_16 = arith.constant 0 : index
    %c0_17 = arith.constant 0 : index
    %15 = vector.load %arg2[%c0_15, %c5, %c0_16, %c0_17] : memref<1x6x1x64xbf16, #tpu.memory_space<vmem>>, vector<1x1x1x64xbf16>
    %16 = vector.shape_cast %15 : vector<1x1x1x64xbf16> to vector<1x64xbf16>
    %17 = arith.extf %16 : vector<1x64xbf16> to vector<1x64xf32>
    %c0_18 = arith.constant 0 : index
    %c0_19 = arith.constant 0 : index
    %18 = vector.load %arg6[%c0_18, %c0_19] : memref<3x64xf32, #tpu.memory_space<vmem>>, vector<1x64xf32>
    %c1_20 = arith.constant 1 : index
    %c0_21 = arith.constant 0 : index
    %19 = vector.load %arg6[%c1_20, %c0_21] : memref<3x64xf32, #tpu.memory_space<vmem>>, vector<1x64xf32>
    %c2_22 = arith.constant 2 : index
    %c0_23 = arith.constant 0 : index
    %20 = vector.load %arg6[%c2_22, %c0_23] : memref<3x64xf32, #tpu.memory_space<vmem>>, vector<1x64xf32>
    %21 = vector.extract_strided_slice %17 {offsets = [0, 0], sizes = [1, 1], strides = [1, 1]} : vector<1x64xf32> to vector<1x1xf32>
    %22 = vector.extract_strided_slice %17 {offsets = [0, 0], sizes = [1, 63], strides = [1, 1]} : vector<1x64xf32> to vector<1x63xf32>
    %23 = tpu.concatenate %21, %22 in 1 : vector<1x1xf32>, vector<1x63xf32> -> vector<1x64xf32>
    %24 = arith.mulf %23, %20 : vector<1x64xf32>
    %25 = arith.mulf %14, %19 : vector<1x64xf32>
    %26 = arith.mulf %17, %19 : vector<1x64xf32>
    %27 = vector.extract_strided_slice %5 {offsets = [0, 0], sizes = [1, 1], strides = [1, 1]} : vector<1x64xf32> to vector<1x1xf32>
    %28 = vector.extract_strided_slice %5 {offsets = [0, 0], sizes = [1, 63], strides = [1, 1]} : vector<1x64xf32> to vector<1x63xf32>
    %29 = tpu.concatenate %27, %28 in 1 : vector<1x1xf32>, vector<1x63xf32> -> vector<1x64xf32>
    %30 = arith.mulf %29, %18 : vector<1x64xf32>
    %31 = vector.extract_strided_slice %11 {offsets = [0, 0], sizes = [1, 1], strides = [1, 1]} : vector<1x64xf32> to vector<1x1xf32>
    %32 = vector.extract_strided_slice %11 {offsets = [0, 0], sizes = [1, 63], strides = [1, 1]} : vector<1x64xf32> to vector<1x63xf32>
    %33 = tpu.concatenate %31, %32 in 1 : vector<1x1xf32>, vector<1x63xf32> -> vector<1x64xf32>
    %34 = arith.mulf %33, %18 : vector<1x64xf32>
    %35 = arith.truncf %24 : vector<1x64xf32> to vector<1x64xbf16>
    %36 = arith.truncf %25 : vector<1x64xf32> to vector<1x64xbf16>
    %37 = arith.truncf %26 : vector<1x64xf32> to vector<1x64xbf16>
    %38 = arith.truncf %30 : vector<1x64xf32> to vector<1x64xbf16>
    %39 = arith.truncf %2 : vector<1x64xf32> to vector<1x64xbf16>
    %40 = arith.truncf %5 : vector<1x64xf32> to vector<1x64xbf16>
    %41 = arith.truncf %34 : vector<1x64xf32> to vector<1x64xbf16>
    %42 = arith.truncf %8 : vector<1x64xf32> to vector<1x64xbf16>
    %43 = arith.truncf %11 : vector<1x64xf32> to vector<1x64xbf16>
    %44 = tpu.concatenate %35, %36, %37, %38, %39, %40, %41, %42, %43 in 0 : vector<1x64xbf16>, vector<1x64xbf16>, vector<1x64xbf16>, vector<1x64xbf16>, vector<1x64xbf16>, vector<1x64xbf16>, vector<1x64xbf16>, vector<1x64xbf16>, vector<1x64xbf16> -> vector<9x64xbf16>
    %c0_24 = arith.constant 0 : index
    %c0_25 = arith.constant 0 : index
    %45 = vector.load %arg3[%c0_24, %c0_25] : memref<32x9xbf16, #tpu.memory_space<vmem>>, vector<32x9xbf16>
    %cst = arith.constant dense<0.000000e+00> : vector<32x64xf32>
    %46 = tpu.matmul %45, %44, %cst {dimension_numbers = #tpu.dot_dimension_numbers<[1], [0], [0], [1], [0, 0, 1, 1], [], []>} : vector<32x9xbf16>, vector<9x64xbf16>, vector<32x64xf32> -> vector<32x64xf32>
    %47 = arith.truncf %46 : vector<32x64xf32> to vector<32x64xbf16>
    %c0_26 = arith.constant 0 : index
    %c0_27 = arith.constant 0 : index
    %c0_28 = arith.constant 0 : index
    %48 = vector.load %arg9[%c0_26, %c0_27, %c0_28] : memref<1x32x64xbf16, #tpu.memory_space<vmem>>, vector<1x32x64xbf16>
    %49 = vector.shape_cast %48 : vector<1x32x64xbf16> to vector<32x64xbf16>
    %50 = vector.shape_cast %47 : vector<32x64xbf16> to vector<1x32x64xbf16>
    tpu.vector_store %arg9[%c0_26, %c0_27, %c0_28], %50 {strides = array<i32>} : memref<1x32x64xbf16, #tpu.memory_space<vmem>>, vector<1x32x64xbf16>,
    %c0_29 = arith.constant 0 : index
    %c0_30 = arith.constant 0 : index
    %51 = vector.load %arg7[%c0_29, %c0_30] : memref<8x32xf32, #tpu.memory_space<vmem>>, vector<8x32xf32>
    %cst_31 = arith.constant dense<0.000000e+00> : vector<8x64xf32>
    %52 = tpu.matmul %51, %46, %cst_31 {dimension_numbers = #tpu.dot_dimension_numbers<[1], [0], [0], [1], [0, 0, 1, 1], [], []>} : vector<8x32xf32>, vector<32x64xf32>, vector<8x64xf32> -> vector<8x64xf32>
    %cst_32 = arith.constant dense<0.000000e+00> : vector<8xf32>
    %53 = vector.multi_reduction <add>, %52, %cst_32 [1] : vector<8x64xf32> to vector<8xf32>
    %54 = vector.shape_cast %53 : vector<8xf32> to vector<8x1xf32>
    %c0_33 = arith.constant 0 : index
    %c0_34 = arith.constant 0 : index
    %55 = vector.load %arg8[%c0_33, %c0_34] : memref<32x8xf32, #tpu.memory_space<vmem>>, vector<32x8xf32>
    %cst_35 = arith.constant 2.560000e+02 : f32
    %56 = vector.broadcast %cst_35 : f32 to vector<8x1xf32>
    %57 = arith.divf %54, %56 : vector<8x1xf32>
    %58 = vector.shape_cast %57 : vector<8x1xf32> to vector<8x1xf32>
    %59 = vector.broadcast %58 : vector<8x1xf32> to vector<8x64xf32>
    %cst_36 = arith.constant dense<0.000000e+00> : vector<32x64xf32>
    %60 = tpu.matmul %55, %59, %cst_36 {dimension_numbers = #tpu.dot_dimension_numbers<[1], [0], [0], [1], [0, 0, 1, 1], [], []>} : vector<32x8xf32>, vector<8x64xf32>, vector<32x64xf32> -> vector<32x64xf32>
    %61 = arith.subf %46, %60 : vector<32x64xf32>
    %c0_37 = arith.constant 0 : index
    %c0_38 = arith.constant 0 : index
    %62 = vector.load %arg7[%c0_37, %c0_38] : memref<8x32xf32, #tpu.memory_space<vmem>>, vector<8x32xf32>
    %63 = arith.mulf %61, %61 : vector<32x64xf32>
    %cst_39 = arith.constant dense<0.000000e+00> : vector<8x64xf32>
    %64 = tpu.matmul %62, %63, %cst_39 {dimension_numbers = #tpu.dot_dimension_numbers<[1], [0], [0], [1], [0, 0, 1, 1], [], []>} : vector<8x32xf32>, vector<32x64xf32>, vector<8x64xf32> -> vector<8x64xf32>
    %cst_40 = arith.constant dense<0.000000e+00> : vector<8xf32>
    %65 = vector.multi_reduction <add>, %64, %cst_40 [1] : vector<8x64xf32> to vector<8xf32>
    %66 = vector.shape_cast %65 : vector<8xf32> to vector<8x1xf32>
    %67 = tpu.concatenate %54, %66 in 0 : vector<8x1xf32>, vector<8x1xf32> -> vector<16x1xf32>
    %68 = tpu.iota {dimensions = array<i32: 1>} : vector<1x128xi32>
    %c0_i32 = arith.constant 0 : i32
    %69 = vector.broadcast %c0_i32 : i32 to vector<1x128xi32>
    %70 = arith.cmpi eq, %68, %69 : vector<1x128xi32>
    %cst_41 = arith.constant 0.000000e+00 : f32
    %71 = vector.shape_cast %70 : vector<1x128xi1> to vector<1x128xi1>
    %72 = vector.broadcast %71 : vector<1x128xi1> to vector<16x128xi1>
    %73 = vector.shape_cast %67 : vector<16x1xf32> to vector<16x1xf32>
    %74 = vector.broadcast %73 : vector<16x1xf32> to vector<16x128xf32>
    %75 = vector.broadcast %cst_41 : f32 to vector<16x128xf32>
    %76 = arith.select %72, %74, %75 : vector<16x128xi1>, vector<16x128xf32>
    %c0_42 = arith.constant 0 : index
    %c0_43 = arith.constant 0 : index
    %c0_44 = arith.constant 0 : index
    %c0_45 = arith.constant 0 : index
    %77 = vector.load %arg10[%c0_42, %c0_43, %c0_44, %c0_45] : memref<1x1x16x128xf32, #tpu.memory_space<vmem>>, vector<1x1x16x128xf32>
    %78 = vector.shape_cast %77 : vector<1x1x16x128xf32> to vector<16x128xf32>
    %79 = vector.shape_cast %76 : vector<16x128xf32> to vector<1x1x16x128xf32>
    tpu.vector_store %arg10[%c0_42, %c0_43, %c0_44, %c0_45], %79 {strides = array<i32>} : memref<1x1x16x128xf32, #tpu.memory_space<vmem>>, vector<1x1x16x128xf32>,
    return
  }
  func.func @transform_0(%arg0: i32, %arg1: i32) -> (i32, i32, i32, i32) {
    %c0_i32 = arith.constant 0 : i32
    %c0_i32_0 = arith.constant 0 : i32
    %c0_i32_1 = arith.constant 0 : i32
    return %arg0, %c0_i32, %c0_i32_0, %arg1 : i32, i32, i32, i32
  }
  func.func @transform_1(%arg0: i32, %arg1: i32) -> (i32, i32) {
    %c0_i32 = arith.constant 0 : i32
    %c0_i32_0 = arith.constant 0 : i32
    %c0_i32_1 = arith.constant 0 : i32
    return %c0_i32, %c0_i32_0 : i32, i32
  }
  func.func @transform_2(%arg0: i32, %arg1: i32) -> (i32, i32, i32) {
    %c0_i32 = arith.constant 0 : i32
    %c0_i32_0 = arith.constant 0 : i32
    %c0_i32_1 = arith.constant 0 : i32
    return %arg0, %c0_i32, %c0_i32_0 : i32, i32, i32
  }
  func.func @transform_3(%arg0: i32, %arg1: i32) -> (i32, i32, i32) {
    %c0_i32 = arith.constant 0 : i32
    %c0_i32_0 = arith.constant 0 : i32
    %c0_i32_1 = arith.constant 0 : i32
    return %arg0, %c0_i32, %c0_i32_0 : i32, i32, i32
  }
  func.func @transform_4(%arg0: i32, %arg1: i32) -> (i32, i32) {
    %c0_i32 = arith.constant 0 : i32
    %c0_i32_0 = arith.constant 0 : i32
    return %c0_i32, %arg1 : i32, i32
  }
  func.func @transform_5(%arg0: i32, %arg1: i32) -> (i32, i32) {
    %c0_i32 = arith.constant 0 : i32
    %c0_i32_0 = arith.constant 0 : i32
    %c0_i32_1 = arith.constant 0 : i32
    return %c0_i32, %c0_i32_0 : i32, i32
  }
  func.func @transform_6(%arg0: i32, %arg1: i32) -> (i32, i32) {
    %c0_i32 = arith.constant 0 : i32
    %c0_i32_0 = arith.constant 0 : i32
    %c0_i32_1 = arith.constant 0 : i32
    return %c0_i32, %c0_i32_0 : i32, i32
  }
  func.func @transform_7(%arg0: i32, %arg1: i32) -> (i32, i32, i32) {
    %c0_i32 = arith.constant 0 : i32
    %c0_i32_0 = arith.constant 0 : i32
    return %arg0, %c0_i32, %arg1 : i32, i32, i32
  }
  func.func @transform_8(%arg0: i32, %arg1: i32) -> (i32, i32, i32, i32) {
    %c0_i32 = arith.constant 0 : i32
    %c0_i32_0 = arith.constant 0 : i32
    %c0_i32_1 = arith.constant 0 : i32
    return %arg0, %arg1, %c0_i32, %c0_i32_0 : i32, i32, i32, i32
  }
}

module attributes {stable_mosaic.version = 11 : i64} {
  func.func @_conv_gn_stats_kernel(%arg0: i32, %arg1: i32, %arg2: memref<1x6x32x16xbf16, #tpu.memory_space<vmem>>, %arg3: memref<64x288xbf16, #tpu.memory_space<vmem>>, %arg4: memref<1x32x1xf32, #tpu.memory_space<vmem>>, %arg5: memref<1x32x1xf32, #tpu.memory_space<vmem>>, %arg6: memref<3x16xf32, #tpu.memory_space<vmem>>, %arg7: memref<8x64xf32, #tpu.memory_space<vmem>>, %arg8: memref<64x8xf32, #tpu.memory_space<vmem>>, %arg9: memref<1x64x16xbf16, #tpu.memory_space<vmem>>, %arg10: memref<1x1x16x128xf32, #tpu.memory_space<vmem>>) attributes {dimension_semantics = [#tpu.dimension_semantics<parallel>, #tpu.dimension_semantics<parallel>], iteration_bounds = array<i64: 2, 1>, scalar_prefetch = 0 : i64, scratch_operands = 0 : i64, tpu.core_type = #tpu.core_type<tc>, window_params = [{transform_indices = @transform_0, window_bounds = array<i64: 1, 6, 32, 16>}, {pipeline_mode = #tpu.pipeline_mode<synchronous>, transform_indices = @transform_1, window_bounds = array<i64: 64, 288>}, {transform_indices = @transform_2, window_bounds = array<i64: 1, 32, 1>}, {transform_indices = @transform_3, window_bounds = array<i64: 1, 32, 1>}, {transform_indices = @transform_4, window_bounds = array<i64: 3, 16>}, {pipeline_mode = #tpu.pipeline_mode<synchronous>, transform_indices = @transform_5, window_bounds = array<i64: 8, 64>}, {pipeline_mode = #tpu.pipeline_mode<synchronous>, transform_indices = @transform_6, window_bounds = array<i64: 64, 8>}, {transform_indices = @transform_7, window_bounds = array<i64: 1, 64, 16>}, {transform_indices = @transform_8, window_bounds = array<i64: 1, 1, 16, 128>}]} {
    %c0 = arith.constant 0 : index
    %c0_0 = arith.constant 0 : index
    %c0_1 = arith.constant 0 : index
    %c0_2 = arith.constant 0 : index
    %0 = vector.load %arg2[%c0, %c0_0, %c0_1, %c0_2] : memref<1x6x32x16xbf16, #tpu.memory_space<vmem>>, vector<1x1x32x16xbf16>
    %1 = vector.shape_cast %0 : vector<1x1x32x16xbf16> to vector<32x16xbf16>
    %2 = arith.extf %1 : vector<32x16xbf16> to vector<32x16xf32>
    %c0_3 = arith.constant 0 : index
    %c0_4 = arith.constant 0 : index
    %c0_5 = arith.constant 0 : index
    %3 = vector.load %arg4[%c0_3, %c0_4, %c0_5] : memref<1x32x1xf32, #tpu.memory_space<vmem>>, vector<1x32x1xf32>
    %4 = vector.shape_cast %3 : vector<1x32x1xf32> to vector<32x1xf32>
    %5 = vector.broadcast %4 : vector<32x1xf32> to vector<32x16xf32>
    %6 = arith.mulf %2, %5 : vector<32x16xf32>
    %c0_6 = arith.constant 0 : index
    %c0_7 = arith.constant 0 : index
    %c0_8 = arith.constant 0 : index
    %7 = vector.load %arg5[%c0_6, %c0_7, %c0_8] : memref<1x32x1xf32, #tpu.memory_space<vmem>>, vector<1x32x1xf32>
    %8 = vector.shape_cast %7 : vector<1x32x1xf32> to vector<32x1xf32>
    %9 = vector.broadcast %8 : vector<32x1xf32> to vector<32x16xf32>
    %10 = arith.addf %6, %9 : vector<32x16xf32>
    %cst = arith.constant 0.000000e+00 : f32
    %11 = vector.broadcast %cst : f32 to vector<32x16xf32>
    %12 = arith.maximumf %10, %11 : vector<32x16xf32>
    %c0_9 = arith.constant 0 : index
    %c1 = arith.constant 1 : index
    %c0_10 = arith.constant 0 : index
    %c0_11 = arith.constant 0 : index
    %13 = vector.load %arg2[%c0_9, %c1, %c0_10, %c0_11] : memref<1x6x32x16xbf16, #tpu.memory_space<vmem>>, vector<1x1x32x16xbf16>
    %14 = vector.shape_cast %13 : vector<1x1x32x16xbf16> to vector<32x16xbf16>
    %15 = arith.extf %14 : vector<32x16xbf16> to vector<32x16xf32>
    %c0_12 = arith.constant 0 : index
    %c0_13 = arith.constant 0 : index
    %c0_14 = arith.constant 0 : index
    %16 = vector.load %arg4[%c0_12, %c0_13, %c0_14] : memref<1x32x1xf32, #tpu.memory_space<vmem>>, vector<1x32x1xf32>
    %17 = vector.shape_cast %16 : vector<1x32x1xf32> to vector<32x1xf32>
    %18 = vector.broadcast %17 : vector<32x1xf32> to vector<32x16xf32>
    %19 = arith.mulf %15, %18 : vector<32x16xf32>
    %c0_15 = arith.constant 0 : index
    %c0_16 = arith.constant 0 : index
    %c0_17 = arith.constant 0 : index
    %20 = vector.load %arg5[%c0_15, %c0_16, %c0_17] : memref<1x32x1xf32, #tpu.memory_space<vmem>>, vector<1x32x1xf32>
    %21 = vector.shape_cast %20 : vector<1x32x1xf32> to vector<32x1xf32>
    %22 = vector.broadcast %21 : vector<32x1xf32> to vector<32x16xf32>
    %23 = arith.addf %19, %22 : vector<32x16xf32>
    %cst_18 = arith.constant 0.000000e+00 : f32
    %24 = vector.broadcast %cst_18 : f32 to vector<32x16xf32>
    %25 = arith.maximumf %23, %24 : vector<32x16xf32>
    %c0_19 = arith.constant 0 : index
    %c2 = arith.constant 2 : index
    %c0_20 = arith.constant 0 : index
    %c0_21 = arith.constant 0 : index
    %26 = vector.load %arg2[%c0_19, %c2, %c0_20, %c0_21] : memref<1x6x32x16xbf16, #tpu.memory_space<vmem>>, vector<1x1x32x16xbf16>
    %27 = vector.shape_cast %26 : vector<1x1x32x16xbf16> to vector<32x16xbf16>
    %28 = arith.extf %27 : vector<32x16xbf16> to vector<32x16xf32>
    %c0_22 = arith.constant 0 : index
    %c0_23 = arith.constant 0 : index
    %c0_24 = arith.constant 0 : index
    %29 = vector.load %arg4[%c0_22, %c0_23, %c0_24] : memref<1x32x1xf32, #tpu.memory_space<vmem>>, vector<1x32x1xf32>
    %30 = vector.shape_cast %29 : vector<1x32x1xf32> to vector<32x1xf32>
    %31 = vector.broadcast %30 : vector<32x1xf32> to vector<32x16xf32>
    %32 = arith.mulf %28, %31 : vector<32x16xf32>
    %c0_25 = arith.constant 0 : index
    %c0_26 = arith.constant 0 : index
    %c0_27 = arith.constant 0 : index
    %33 = vector.load %arg5[%c0_25, %c0_26, %c0_27] : memref<1x32x1xf32, #tpu.memory_space<vmem>>, vector<1x32x1xf32>
    %34 = vector.shape_cast %33 : vector<1x32x1xf32> to vector<32x1xf32>
    %35 = vector.broadcast %34 : vector<32x1xf32> to vector<32x16xf32>
    %36 = arith.addf %32, %35 : vector<32x16xf32>
    %cst_28 = arith.constant 0.000000e+00 : f32
    %37 = vector.broadcast %cst_28 : f32 to vector<32x16xf32>
    %38 = arith.maximumf %36, %37 : vector<32x16xf32>
    %c0_29 = arith.constant 0 : index
    %c3 = arith.constant 3 : index
    %c0_30 = arith.constant 0 : index
    %c0_31 = arith.constant 0 : index
    %39 = vector.load %arg2[%c0_29, %c3, %c0_30, %c0_31] : memref<1x6x32x16xbf16, #tpu.memory_space<vmem>>, vector<1x1x32x16xbf16>
    %40 = vector.shape_cast %39 : vector<1x1x32x16xbf16> to vector<32x16xbf16>
    %41 = arith.extf %40 : vector<32x16xbf16> to vector<32x16xf32>
    %c0_32 = arith.constant 0 : index
    %c0_33 = arith.constant 0 : index
    %c0_34 = arith.constant 0 : index
    %42 = vector.load %arg4[%c0_32, %c0_33, %c0_34] : memref<1x32x1xf32, #tpu.memory_space<vmem>>, vector<1x32x1xf32>
    %43 = vector.shape_cast %42 : vector<1x32x1xf32> to vector<32x1xf32>
    %44 = vector.broadcast %43 : vector<32x1xf32> to vector<32x16xf32>
    %45 = arith.mulf %41, %44 : vector<32x16xf32>
    %c0_35 = arith.constant 0 : index
    %c0_36 = arith.constant 0 : index
    %c0_37 = arith.constant 0 : index
    %46 = vector.load %arg5[%c0_35, %c0_36, %c0_37] : memref<1x32x1xf32, #tpu.memory_space<vmem>>, vector<1x32x1xf32>
    %47 = vector.shape_cast %46 : vector<1x32x1xf32> to vector<32x1xf32>
    %48 = vector.broadcast %47 : vector<32x1xf32> to vector<32x16xf32>
    %49 = arith.addf %45, %48 : vector<32x16xf32>
    %cst_38 = arith.constant 0.000000e+00 : f32
    %50 = vector.broadcast %cst_38 : f32 to vector<32x16xf32>
    %51 = arith.maximumf %49, %50 : vector<32x16xf32>
    %c0_39 = arith.constant 0 : index
    %c4 = arith.constant 4 : index
    %c0_40 = arith.constant 0 : index
    %c0_41 = arith.constant 0 : index
    %52 = vector.load %arg2[%c0_39, %c4, %c0_40, %c0_41] : memref<1x6x32x16xbf16, #tpu.memory_space<vmem>>, vector<1x1x32x16xbf16>
    %53 = vector.shape_cast %52 : vector<1x1x32x16xbf16> to vector<32x16xbf16>
    %54 = arith.extf %53 : vector<32x16xbf16> to vector<32x16xf32>
    %c0_42 = arith.constant 0 : index
    %c0_43 = arith.constant 0 : index
    %c0_44 = arith.constant 0 : index
    %55 = vector.load %arg4[%c0_42, %c0_43, %c0_44] : memref<1x32x1xf32, #tpu.memory_space<vmem>>, vector<1x32x1xf32>
    %56 = vector.shape_cast %55 : vector<1x32x1xf32> to vector<32x1xf32>
    %57 = vector.broadcast %56 : vector<32x1xf32> to vector<32x16xf32>
    %58 = arith.mulf %54, %57 : vector<32x16xf32>
    %c0_45 = arith.constant 0 : index
    %c0_46 = arith.constant 0 : index
    %c0_47 = arith.constant 0 : index
    %59 = vector.load %arg5[%c0_45, %c0_46, %c0_47] : memref<1x32x1xf32, #tpu.memory_space<vmem>>, vector<1x32x1xf32>
    %60 = vector.shape_cast %59 : vector<1x32x1xf32> to vector<32x1xf32>
    %61 = vector.broadcast %60 : vector<32x1xf32> to vector<32x16xf32>
    %62 = arith.addf %58, %61 : vector<32x16xf32>
    %cst_48 = arith.constant 0.000000e+00 : f32
    %63 = vector.broadcast %cst_48 : f32 to vector<32x16xf32>
    %64 = arith.maximumf %62, %63 : vector<32x16xf32>
    %c0_49 = arith.constant 0 : index
    %c5 = arith.constant 5 : index
    %c0_50 = arith.constant 0 : index
    %c0_51 = arith.constant 0 : index
    %65 = vector.load %arg2[%c0_49, %c5, %c0_50, %c0_51] : memref<1x6x32x16xbf16, #tpu.memory_space<vmem>>, vector<1x1x32x16xbf16>
    %66 = vector.shape_cast %65 : vector<1x1x32x16xbf16> to vector<32x16xbf16>
    %67 = arith.extf %66 : vector<32x16xbf16> to vector<32x16xf32>
    %c0_52 = arith.constant 0 : index
    %c0_53 = arith.constant 0 : index
    %c0_54 = arith.constant 0 : index
    %68 = vector.load %arg4[%c0_52, %c0_53, %c0_54] : memref<1x32x1xf32, #tpu.memory_space<vmem>>, vector<1x32x1xf32>
    %69 = vector.shape_cast %68 : vector<1x32x1xf32> to vector<32x1xf32>
    %70 = vector.broadcast %69 : vector<32x1xf32> to vector<32x16xf32>
    %71 = arith.mulf %67, %70 : vector<32x16xf32>
    %c0_55 = arith.constant 0 : index
    %c0_56 = arith.constant 0 : index
    %c0_57 = arith.constant 0 : index
    %72 = vector.load %arg5[%c0_55, %c0_56, %c0_57] : memref<1x32x1xf32, #tpu.memory_space<vmem>>, vector<1x32x1xf32>
    %73 = vector.shape_cast %72 : vector<1x32x1xf32> to vector<32x1xf32>
    %74 = vector.broadcast %73 : vector<32x1xf32> to vector<32x16xf32>
    %75 = arith.addf %71, %74 : vector<32x16xf32>
    %cst_58 = arith.constant 0.000000e+00 : f32
    %76 = vector.broadcast %cst_58 : f32 to vector<32x16xf32>
    %77 = arith.maximumf %75, %76 : vector<32x16xf32>
    %c0_59 = arith.constant 0 : index
    %c0_60 = arith.constant 0 : index
    %78 = vector.load %arg6[%c0_59, %c0_60] : memref<3x16xf32, #tpu.memory_space<vmem>>, vector<1x16xf32>
    %c1_61 = arith.constant 1 : index
    %c0_62 = arith.constant 0 : index
    %79 = vector.load %arg6[%c1_61, %c0_62] : memref<3x16xf32, #tpu.memory_space<vmem>>, vector<1x16xf32>
    %c2_63 = arith.constant 2 : index
    %c0_64 = arith.constant 0 : index
    %80 = vector.load %arg6[%c2_63, %c0_64] : memref<3x16xf32, #tpu.memory_space<vmem>>, vector<1x16xf32>
    %81 = vector.extract_strided_slice %77 {offsets = [0, 0], sizes = [32, 1], strides = [1, 1]} : vector<32x16xf32> to vector<32x1xf32>
    %82 = vector.extract_strided_slice %77 {offsets = [0, 0], sizes = [32, 15], strides = [1, 1]} : vector<32x16xf32> to vector<32x15xf32>
    %83 = tpu.concatenate %81, %82 in 1 : vector<32x1xf32>, vector<32x15xf32> -> vector<32x16xf32>
    %84 = vector.broadcast %80 : vector<1x16xf32> to vector<32x16xf32>
    %85 = arith.mulf %83, %84 : vector<32x16xf32>
    %86 = vector.broadcast %79 : vector<1x16xf32> to vector<32x16xf32>
    %87 = arith.mulf %64, %86 : vector<32x16xf32>
    %88 = vector.broadcast %79 : vector<1x16xf32> to vector<32x16xf32>
    %89 = arith.mulf %77, %88 : vector<32x16xf32>
    %90 = vector.extract_strided_slice %25 {offsets = [0, 0], sizes = [32, 1], strides = [1, 1]} : vector<32x16xf32> to vector<32x1xf32>
    %91 = vector.extract_strided_slice %25 {offsets = [0, 0], sizes = [32, 15], strides = [1, 1]} : vector<32x16xf32> to vector<32x15xf32>
    %92 = tpu.concatenate %90, %91 in 1 : vector<32x1xf32>, vector<32x15xf32> -> vector<32x16xf32>
    %93 = vector.broadcast %78 : vector<1x16xf32> to vector<32x16xf32>
    %94 = arith.mulf %92, %93 : vector<32x16xf32>
    %95 = vector.extract_strided_slice %51 {offsets = [0, 0], sizes = [32, 1], strides = [1, 1]} : vector<32x16xf32> to vector<32x1xf32>
    %96 = vector.extract_strided_slice %51 {offsets = [0, 0], sizes = [32, 15], strides = [1, 1]} : vector<32x16xf32> to vector<32x15xf32>
    %97 = tpu.concatenate %95, %96 in 1 : vector<32x1xf32>, vector<32x15xf32> -> vector<32x16xf32>
    %98 = vector.broadcast %78 : vector<1x16xf32> to vector<32x16xf32>
    %99 = arith.mulf %97, %98 : vector<32x16xf32>
    %100 = arith.truncf %85 : vector<32x16xf32> to vector<32x16xbf16>
    %101 = arith.truncf %87 : vector<32x16xf32> to vector<32x16xbf16>
    %102 = arith.truncf %89 : vector<32x16xf32> to vector<32x16xbf16>
    %103 = arith.truncf %94 : vector<32x16xf32> to vector<32x16xbf16>
    %104 = arith.truncf %12 : vector<32x16xf32> to vector<32x16xbf16>
    %105 = arith.truncf %25 : vector<32x16xf32> to vector<32x16xbf16>
    %106 = arith.truncf %99 : vector<32x16xf32> to vector<32x16xbf16>
    %107 = arith.truncf %38 : vector<32x16xf32> to vector<32x16xbf16>
    %108 = arith.truncf %51 : vector<32x16xf32> to vector<32x16xbf16>
    %109 = tpu.concatenate %100, %101, %102, %103, %104, %105, %106, %107, %108 in 0 : vector<32x16xbf16>, vector<32x16xbf16>, vector<32x16xbf16>, vector<32x16xbf16>, vector<32x16xbf16>, vector<32x16xbf16>, vector<32x16xbf16>, vector<32x16xbf16>, vector<32x16xbf16> -> vector<288x16xbf16>
    %c0_65 = arith.constant 0 : index
    %c0_66 = arith.constant 0 : index
    %110 = vector.load %arg3[%c0_65, %c0_66] : memref<64x288xbf16, #tpu.memory_space<vmem>>, vector<64x288xbf16>
    %cst_67 = arith.constant dense<0.000000e+00> : vector<64x16xf32>
    %111 = tpu.matmul %110, %109, %cst_67 {dimension_numbers = #tpu.dot_dimension_numbers<[1], [0], [0], [1], [0, 0, 1, 1], [], []>} : vector<64x288xbf16>, vector<288x16xbf16>, vector<64x16xf32> -> vector<64x16xf32>
    %112 = arith.truncf %111 : vector<64x16xf32> to vector<64x16xbf16>
    %c0_68 = arith.constant 0 : index
    %c0_69 = arith.constant 0 : index
    %c0_70 = arith.constant 0 : index
    %113 = vector.load %arg9[%c0_68, %c0_69, %c0_70] : memref<1x64x16xbf16, #tpu.memory_space<vmem>>, vector<1x64x16xbf16>
    %114 = vector.shape_cast %113 : vector<1x64x16xbf16> to vector<64x16xbf16>
    %115 = vector.shape_cast %112 : vector<64x16xbf16> to vector<1x64x16xbf16>
    tpu.vector_store %arg9[%c0_68, %c0_69, %c0_70], %115 {strides = array<i32>} : memref<1x64x16xbf16, #tpu.memory_space<vmem>>, vector<1x64x16xbf16>,
    %c0_71 = arith.constant 0 : index
    %c0_72 = arith.constant 0 : index
    %116 = vector.load %arg7[%c0_71, %c0_72] : memref<8x64xf32, #tpu.memory_space<vmem>>, vector<8x64xf32>
    %cst_73 = arith.constant dense<0.000000e+00> : vector<8x16xf32>
    %117 = tpu.matmul %116, %111, %cst_73 {dimension_numbers = #tpu.dot_dimension_numbers<[1], [0], [0], [1], [0, 0, 1, 1], [], []>} : vector<8x64xf32>, vector<64x16xf32>, vector<8x16xf32> -> vector<8x16xf32>
    %cst_74 = arith.constant dense<0.000000e+00> : vector<8xf32>
    %118 = vector.multi_reduction <add>, %117, %cst_74 [1] : vector<8x16xf32> to vector<8xf32>
    %119 = vector.shape_cast %118 : vector<8xf32> to vector<8x1xf32>
    %c0_75 = arith.constant 0 : index
    %c0_76 = arith.constant 0 : index
    %120 = vector.load %arg8[%c0_75, %c0_76] : memref<64x8xf32, #tpu.memory_space<vmem>>, vector<64x8xf32>
    %cst_77 = arith.constant 1.280000e+02 : f32
    %121 = vector.broadcast %cst_77 : f32 to vector<8x1xf32>
    %122 = arith.divf %119, %121 : vector<8x1xf32>
    %123 = vector.shape_cast %122 : vector<8x1xf32> to vector<8x1xf32>
    %124 = vector.broadcast %123 : vector<8x1xf32> to vector<8x16xf32>
    %cst_78 = arith.constant dense<0.000000e+00> : vector<64x16xf32>
    %125 = tpu.matmul %120, %124, %cst_78 {dimension_numbers = #tpu.dot_dimension_numbers<[1], [0], [0], [1], [0, 0, 1, 1], [], []>} : vector<64x8xf32>, vector<8x16xf32>, vector<64x16xf32> -> vector<64x16xf32>
    %126 = arith.subf %111, %125 : vector<64x16xf32>
    %c0_79 = arith.constant 0 : index
    %c0_80 = arith.constant 0 : index
    %127 = vector.load %arg7[%c0_79, %c0_80] : memref<8x64xf32, #tpu.memory_space<vmem>>, vector<8x64xf32>
    %128 = arith.mulf %126, %126 : vector<64x16xf32>
    %cst_81 = arith.constant dense<0.000000e+00> : vector<8x16xf32>
    %129 = tpu.matmul %127, %128, %cst_81 {dimension_numbers = #tpu.dot_dimension_numbers<[1], [0], [0], [1], [0, 0, 1, 1], [], []>} : vector<8x64xf32>, vector<64x16xf32>, vector<8x16xf32> -> vector<8x16xf32>
    %cst_82 = arith.constant dense<0.000000e+00> : vector<8xf32>
    %130 = vector.multi_reduction <add>, %129, %cst_82 [1] : vector<8x16xf32> to vector<8xf32>
    %131 = vector.shape_cast %130 : vector<8xf32> to vector<8x1xf32>
    %132 = tpu.concatenate %119, %131 in 0 : vector<8x1xf32>, vector<8x1xf32> -> vector<16x1xf32>
    %133 = tpu.iota {dimensions = array<i32: 1>} : vector<1x128xi32>
    %c0_i32 = arith.constant 0 : i32
    %134 = vector.broadcast %c0_i32 : i32 to vector<1x128xi32>
    %135 = arith.cmpi eq, %133, %134 : vector<1x128xi32>
    %cst_83 = arith.constant 0.000000e+00 : f32
    %136 = vector.shape_cast %135 : vector<1x128xi1> to vector<1x128xi1>
    %137 = vector.broadcast %136 : vector<1x128xi1> to vector<16x128xi1>
    %138 = vector.shape_cast %132 : vector<16x1xf32> to vector<16x1xf32>
    %139 = vector.broadcast %138 : vector<16x1xf32> to vector<16x128xf32>
    %140 = vector.broadcast %cst_83 : f32 to vector<16x128xf32>
    %141 = arith.select %137, %139, %140 : vector<16x128xi1>, vector<16x128xf32>
    %c0_84 = arith.constant 0 : index
    %c0_85 = arith.constant 0 : index
    %c0_86 = arith.constant 0 : index
    %c0_87 = arith.constant 0 : index
    %142 = vector.load %arg10[%c0_84, %c0_85, %c0_86, %c0_87] : memref<1x1x16x128xf32, #tpu.memory_space<vmem>>, vector<1x1x16x128xf32>
    %143 = vector.shape_cast %142 : vector<1x1x16x128xf32> to vector<16x128xf32>
    %144 = vector.shape_cast %141 : vector<16x128xf32> to vector<1x1x16x128xf32>
    tpu.vector_store %arg10[%c0_84, %c0_85, %c0_86, %c0_87], %144 {strides = array<i32>} : memref<1x1x16x128xf32, #tpu.memory_space<vmem>>, vector<1x1x16x128xf32>,
    return
  }
  func.func @transform_0(%arg0: i32, %arg1: i32) -> (i32, i32, i32, i32) {
    %c0_i32 = arith.constant 0 : i32
    %c0_i32_0 = arith.constant 0 : i32
    %c0_i32_1 = arith.constant 0 : i32
    return %arg0, %c0_i32, %c0_i32_0, %arg1 : i32, i32, i32, i32
  }
  func.func @transform_1(%arg0: i32, %arg1: i32) -> (i32, i32) {
    %c0_i32 = arith.constant 0 : i32
    %c0_i32_0 = arith.constant 0 : i32
    %c0_i32_1 = arith.constant 0 : i32
    return %c0_i32, %c0_i32_0 : i32, i32
  }
  func.func @transform_2(%arg0: i32, %arg1: i32) -> (i32, i32, i32) {
    %c0_i32 = arith.constant 0 : i32
    %c0_i32_0 = arith.constant 0 : i32
    %c0_i32_1 = arith.constant 0 : i32
    return %arg0, %c0_i32, %c0_i32_0 : i32, i32, i32
  }
  func.func @transform_3(%arg0: i32, %arg1: i32) -> (i32, i32, i32) {
    %c0_i32 = arith.constant 0 : i32
    %c0_i32_0 = arith.constant 0 : i32
    %c0_i32_1 = arith.constant 0 : i32
    return %arg0, %c0_i32, %c0_i32_0 : i32, i32, i32
  }
  func.func @transform_4(%arg0: i32, %arg1: i32) -> (i32, i32) {
    %c0_i32 = arith.constant 0 : i32
    %c0_i32_0 = arith.constant 0 : i32
    return %c0_i32, %arg1 : i32, i32
  }
  func.func @transform_5(%arg0: i32, %arg1: i32) -> (i32, i32) {
    %c0_i32 = arith.constant 0 : i32
    %c0_i32_0 = arith.constant 0 : i32
    %c0_i32_1 = arith.constant 0 : i32
    return %c0_i32, %c0_i32_0 : i32, i32
  }
  func.func @transform_6(%arg0: i32, %arg1: i32) -> (i32, i32) {
    %c0_i32 = arith.constant 0 : i32
    %c0_i32_0 = arith.constant 0 : i32
    %c0_i32_1 = arith.constant 0 : i32
    return %c0_i32, %c0_i32_0 : i32, i32
  }
  func.func @transform_7(%arg0: i32, %arg1: i32) -> (i32, i32, i32) {
    %c0_i32 = arith.constant 0 : i32
    %c0_i32_0 = arith.constant 0 : i32
    return %arg0, %c0_i32, %arg1 : i32, i32, i32
  }
  func.func @transform_8(%arg0: i32, %arg1: i32) -> (i32, i32, i32, i32) {
    %c0_i32 = arith.constant 0 : i32
    %c0_i32_0 = arith.constant 0 : i32
    %c0_i32_1 = arith.constant 0 : i32
    return %arg0, %arg1, %c0_i32, %c0_i32_0 : i32, i32, i32, i32
  }
}

module attributes {stable_mosaic.version = 11 : i64} {
  func.func @_conv_gn_stats_kernel(%arg0: i32, %arg1: i32, %arg2: memref<1x6x64x4xbf16, #tpu.memory_space<vmem>>, %arg3: memref<128x576xbf16, #tpu.memory_space<vmem>>, %arg4: memref<1x64x1xf32, #tpu.memory_space<vmem>>, %arg5: memref<1x64x1xf32, #tpu.memory_space<vmem>>, %arg6: memref<3x4xf32, #tpu.memory_space<vmem>>, %arg7: memref<8x128xf32, #tpu.memory_space<vmem>>, %arg8: memref<128x8xf32, #tpu.memory_space<vmem>>, %arg9: memref<1x128x4xbf16, #tpu.memory_space<vmem>>, %arg10: memref<1x1x16x128xf32, #tpu.memory_space<vmem>>) attributes {dimension_semantics = [#tpu.dimension_semantics<parallel>, #tpu.dimension_semantics<parallel>], iteration_bounds = array<i64: 2, 1>, scalar_prefetch = 0 : i64, scratch_operands = 0 : i64, tpu.core_type = #tpu.core_type<tc>, window_params = [{transform_indices = @transform_0, window_bounds = array<i64: 1, 6, 64, 4>}, {pipeline_mode = #tpu.pipeline_mode<synchronous>, transform_indices = @transform_1, window_bounds = array<i64: 128, 576>}, {transform_indices = @transform_2, window_bounds = array<i64: 1, 64, 1>}, {transform_indices = @transform_3, window_bounds = array<i64: 1, 64, 1>}, {transform_indices = @transform_4, window_bounds = array<i64: 3, 4>}, {pipeline_mode = #tpu.pipeline_mode<synchronous>, transform_indices = @transform_5, window_bounds = array<i64: 8, 128>}, {pipeline_mode = #tpu.pipeline_mode<synchronous>, transform_indices = @transform_6, window_bounds = array<i64: 128, 8>}, {transform_indices = @transform_7, window_bounds = array<i64: 1, 128, 4>}, {transform_indices = @transform_8, window_bounds = array<i64: 1, 1, 16, 128>}]} {
    %c0 = arith.constant 0 : index
    %c0_0 = arith.constant 0 : index
    %c0_1 = arith.constant 0 : index
    %c0_2 = arith.constant 0 : index
    %0 = vector.load %arg2[%c0, %c0_0, %c0_1, %c0_2] : memref<1x6x64x4xbf16, #tpu.memory_space<vmem>>, vector<1x1x64x4xbf16>
    %1 = vector.shape_cast %0 : vector<1x1x64x4xbf16> to vector<64x4xbf16>
    %2 = arith.extf %1 : vector<64x4xbf16> to vector<64x4xf32>
    %c0_3 = arith.constant 0 : index
    %c0_4 = arith.constant 0 : index
    %c0_5 = arith.constant 0 : index
    %3 = vector.load %arg4[%c0_3, %c0_4, %c0_5] : memref<1x64x1xf32, #tpu.memory_space<vmem>>, vector<1x64x1xf32>
    %4 = vector.shape_cast %3 : vector<1x64x1xf32> to vector<64x1xf32>
    %5 = vector.broadcast %4 : vector<64x1xf32> to vector<64x4xf32>
    %6 = arith.mulf %2, %5 : vector<64x4xf32>
    %c0_6 = arith.constant 0 : index
    %c0_7 = arith.constant 0 : index
    %c0_8 = arith.constant 0 : index
    %7 = vector.load %arg5[%c0_6, %c0_7, %c0_8] : memref<1x64x1xf32, #tpu.memory_space<vmem>>, vector<1x64x1xf32>
    %8 = vector.shape_cast %7 : vector<1x64x1xf32> to vector<64x1xf32>
    %9 = vector.broadcast %8 : vector<64x1xf32> to vector<64x4xf32>
    %10 = arith.addf %6, %9 : vector<64x4xf32>
    %cst = arith.constant 0.000000e+00 : f32
    %11 = vector.broadcast %cst : f32 to vector<64x4xf32>
    %12 = arith.maximumf %10, %11 : vector<64x4xf32>
    %c0_9 = arith.constant 0 : index
    %c1 = arith.constant 1 : index
    %c0_10 = arith.constant 0 : index
    %c0_11 = arith.constant 0 : index
    %13 = vector.load %arg2[%c0_9, %c1, %c0_10, %c0_11] : memref<1x6x64x4xbf16, #tpu.memory_space<vmem>>, vector<1x1x64x4xbf16>
    %14 = vector.shape_cast %13 : vector<1x1x64x4xbf16> to vector<64x4xbf16>
    %15 = arith.extf %14 : vector<64x4xbf16> to vector<64x4xf32>
    %c0_12 = arith.constant 0 : index
    %c0_13 = arith.constant 0 : index
    %c0_14 = arith.constant 0 : index
    %16 = vector.load %arg4[%c0_12, %c0_13, %c0_14] : memref<1x64x1xf32, #tpu.memory_space<vmem>>, vector<1x64x1xf32>
    %17 = vector.shape_cast %16 : vector<1x64x1xf32> to vector<64x1xf32>
    %18 = vector.broadcast %17 : vector<64x1xf32> to vector<64x4xf32>
    %19 = arith.mulf %15, %18 : vector<64x4xf32>
    %c0_15 = arith.constant 0 : index
    %c0_16 = arith.constant 0 : index
    %c0_17 = arith.constant 0 : index
    %20 = vector.load %arg5[%c0_15, %c0_16, %c0_17] : memref<1x64x1xf32, #tpu.memory_space<vmem>>, vector<1x64x1xf32>
    %21 = vector.shape_cast %20 : vector<1x64x1xf32> to vector<64x1xf32>
    %22 = vector.broadcast %21 : vector<64x1xf32> to vector<64x4xf32>
    %23 = arith.addf %19, %22 : vector<64x4xf32>
    %cst_18 = arith.constant 0.000000e+00 : f32
    %24 = vector.broadcast %cst_18 : f32 to vector<64x4xf32>
    %25 = arith.maximumf %23, %24 : vector<64x4xf32>
    %c0_19 = arith.constant 0 : index
    %c2 = arith.constant 2 : index
    %c0_20 = arith.constant 0 : index
    %c0_21 = arith.constant 0 : index
    %26 = vector.load %arg2[%c0_19, %c2, %c0_20, %c0_21] : memref<1x6x64x4xbf16, #tpu.memory_space<vmem>>, vector<1x1x64x4xbf16>
    %27 = vector.shape_cast %26 : vector<1x1x64x4xbf16> to vector<64x4xbf16>
    %28 = arith.extf %27 : vector<64x4xbf16> to vector<64x4xf32>
    %c0_22 = arith.constant 0 : index
    %c0_23 = arith.constant 0 : index
    %c0_24 = arith.constant 0 : index
    %29 = vector.load %arg4[%c0_22, %c0_23, %c0_24] : memref<1x64x1xf32, #tpu.memory_space<vmem>>, vector<1x64x1xf32>
    %30 = vector.shape_cast %29 : vector<1x64x1xf32> to vector<64x1xf32>
    %31 = vector.broadcast %30 : vector<64x1xf32> to vector<64x4xf32>
    %32 = arith.mulf %28, %31 : vector<64x4xf32>
    %c0_25 = arith.constant 0 : index
    %c0_26 = arith.constant 0 : index
    %c0_27 = arith.constant 0 : index
    %33 = vector.load %arg5[%c0_25, %c0_26, %c0_27] : memref<1x64x1xf32, #tpu.memory_space<vmem>>, vector<1x64x1xf32>
    %34 = vector.shape_cast %33 : vector<1x64x1xf32> to vector<64x1xf32>
    %35 = vector.broadcast %34 : vector<64x1xf32> to vector<64x4xf32>
    %36 = arith.addf %32, %35 : vector<64x4xf32>
    %cst_28 = arith.constant 0.000000e+00 : f32
    %37 = vector.broadcast %cst_28 : f32 to vector<64x4xf32>
    %38 = arith.maximumf %36, %37 : vector<64x4xf32>
    %c0_29 = arith.constant 0 : index
    %c3 = arith.constant 3 : index
    %c0_30 = arith.constant 0 : index
    %c0_31 = arith.constant 0 : index
    %39 = vector.load %arg2[%c0_29, %c3, %c0_30, %c0_31] : memref<1x6x64x4xbf16, #tpu.memory_space<vmem>>, vector<1x1x64x4xbf16>
    %40 = vector.shape_cast %39 : vector<1x1x64x4xbf16> to vector<64x4xbf16>
    %41 = arith.extf %40 : vector<64x4xbf16> to vector<64x4xf32>
    %c0_32 = arith.constant 0 : index
    %c0_33 = arith.constant 0 : index
    %c0_34 = arith.constant 0 : index
    %42 = vector.load %arg4[%c0_32, %c0_33, %c0_34] : memref<1x64x1xf32, #tpu.memory_space<vmem>>, vector<1x64x1xf32>
    %43 = vector.shape_cast %42 : vector<1x64x1xf32> to vector<64x1xf32>
    %44 = vector.broadcast %43 : vector<64x1xf32> to vector<64x4xf32>
    %45 = arith.mulf %41, %44 : vector<64x4xf32>
    %c0_35 = arith.constant 0 : index
    %c0_36 = arith.constant 0 : index
    %c0_37 = arith.constant 0 : index
    %46 = vector.load %arg5[%c0_35, %c0_36, %c0_37] : memref<1x64x1xf32, #tpu.memory_space<vmem>>, vector<1x64x1xf32>
    %47 = vector.shape_cast %46 : vector<1x64x1xf32> to vector<64x1xf32>
    %48 = vector.broadcast %47 : vector<64x1xf32> to vector<64x4xf32>
    %49 = arith.addf %45, %48 : vector<64x4xf32>
    %cst_38 = arith.constant 0.000000e+00 : f32
    %50 = vector.broadcast %cst_38 : f32 to vector<64x4xf32>
    %51 = arith.maximumf %49, %50 : vector<64x4xf32>
    %c0_39 = arith.constant 0 : index
    %c4 = arith.constant 4 : index
    %c0_40 = arith.constant 0 : index
    %c0_41 = arith.constant 0 : index
    %52 = vector.load %arg2[%c0_39, %c4, %c0_40, %c0_41] : memref<1x6x64x4xbf16, #tpu.memory_space<vmem>>, vector<1x1x64x4xbf16>
    %53 = vector.shape_cast %52 : vector<1x1x64x4xbf16> to vector<64x4xbf16>
    %54 = arith.extf %53 : vector<64x4xbf16> to vector<64x4xf32>
    %c0_42 = arith.constant 0 : index
    %c0_43 = arith.constant 0 : index
    %c0_44 = arith.constant 0 : index
    %55 = vector.load %arg4[%c0_42, %c0_43, %c0_44] : memref<1x64x1xf32, #tpu.memory_space<vmem>>, vector<1x64x1xf32>
    %56 = vector.shape_cast %55 : vector<1x64x1xf32> to vector<64x1xf32>
    %57 = vector.broadcast %56 : vector<64x1xf32> to vector<64x4xf32>
    %58 = arith.mulf %54, %57 : vector<64x4xf32>
    %c0_45 = arith.constant 0 : index
    %c0_46 = arith.constant 0 : index
    %c0_47 = arith.constant 0 : index
    %59 = vector.load %arg5[%c0_45, %c0_46, %c0_47] : memref<1x64x1xf32, #tpu.memory_space<vmem>>, vector<1x64x1xf32>
    %60 = vector.shape_cast %59 : vector<1x64x1xf32> to vector<64x1xf32>
    %61 = vector.broadcast %60 : vector<64x1xf32> to vector<64x4xf32>
    %62 = arith.addf %58, %61 : vector<64x4xf32>
    %cst_48 = arith.constant 0.000000e+00 : f32
    %63 = vector.broadcast %cst_48 : f32 to vector<64x4xf32>
    %64 = arith.maximumf %62, %63 : vector<64x4xf32>
    %c0_49 = arith.constant 0 : index
    %c5 = arith.constant 5 : index
    %c0_50 = arith.constant 0 : index
    %c0_51 = arith.constant 0 : index
    %65 = vector.load %arg2[%c0_49, %c5, %c0_50, %c0_51] : memref<1x6x64x4xbf16, #tpu.memory_space<vmem>>, vector<1x1x64x4xbf16>
    %66 = vector.shape_cast %65 : vector<1x1x64x4xbf16> to vector<64x4xbf16>
    %67 = arith.extf %66 : vector<64x4xbf16> to vector<64x4xf32>
    %c0_52 = arith.constant 0 : index
    %c0_53 = arith.constant 0 : index
    %c0_54 = arith.constant 0 : index
    %68 = vector.load %arg4[%c0_52, %c0_53, %c0_54] : memref<1x64x1xf32, #tpu.memory_space<vmem>>, vector<1x64x1xf32>
    %69 = vector.shape_cast %68 : vector<1x64x1xf32> to vector<64x1xf32>
    %70 = vector.broadcast %69 : vector<64x1xf32> to vector<64x4xf32>
    %71 = arith.mulf %67, %70 : vector<64x4xf32>
    %c0_55 = arith.constant 0 : index
    %c0_56 = arith.constant 0 : index
    %c0_57 = arith.constant 0 : index
    %72 = vector.load %arg5[%c0_55, %c0_56, %c0_57] : memref<1x64x1xf32, #tpu.memory_space<vmem>>, vector<1x64x1xf32>
    %73 = vector.shape_cast %72 : vector<1x64x1xf32> to vector<64x1xf32>
    %74 = vector.broadcast %73 : vector<64x1xf32> to vector<64x4xf32>
    %75 = arith.addf %71, %74 : vector<64x4xf32>
    %cst_58 = arith.constant 0.000000e+00 : f32
    %76 = vector.broadcast %cst_58 : f32 to vector<64x4xf32>
    %77 = arith.maximumf %75, %76 : vector<64x4xf32>
    %c0_59 = arith.constant 0 : index
    %c0_60 = arith.constant 0 : index
    %78 = vector.load %arg6[%c0_59, %c0_60] : memref<3x4xf32, #tpu.memory_space<vmem>>, vector<1x4xf32>
    %c1_61 = arith.constant 1 : index
    %c0_62 = arith.constant 0 : index
    %79 = vector.load %arg6[%c1_61, %c0_62] : memref<3x4xf32, #tpu.memory_space<vmem>>, vector<1x4xf32>
    %c2_63 = arith.constant 2 : index
    %c0_64 = arith.constant 0 : index
    %80 = vector.load %arg6[%c2_63, %c0_64] : memref<3x4xf32, #tpu.memory_space<vmem>>, vector<1x4xf32>
    %81 = vector.extract_strided_slice %77 {offsets = [0, 0], sizes = [64, 1], strides = [1, 1]} : vector<64x4xf32> to vector<64x1xf32>
    %82 = vector.extract_strided_slice %77 {offsets = [0, 0], sizes = [64, 3], strides = [1, 1]} : vector<64x4xf32> to vector<64x3xf32>
    %83 = tpu.concatenate %81, %82 in 1 : vector<64x1xf32>, vector<64x3xf32> -> vector<64x4xf32>
    %84 = vector.broadcast %80 : vector<1x4xf32> to vector<64x4xf32>
    %85 = arith.mulf %83, %84 : vector<64x4xf32>
    %86 = vector.broadcast %79 : vector<1x4xf32> to vector<64x4xf32>
    %87 = arith.mulf %64, %86 : vector<64x4xf32>
    %88 = vector.broadcast %79 : vector<1x4xf32> to vector<64x4xf32>
    %89 = arith.mulf %77, %88 : vector<64x4xf32>
    %90 = vector.extract_strided_slice %25 {offsets = [0, 0], sizes = [64, 1], strides = [1, 1]} : vector<64x4xf32> to vector<64x1xf32>
    %91 = vector.extract_strided_slice %25 {offsets = [0, 0], sizes = [64, 3], strides = [1, 1]} : vector<64x4xf32> to vector<64x3xf32>
    %92 = tpu.concatenate %90, %91 in 1 : vector<64x1xf32>, vector<64x3xf32> -> vector<64x4xf32>
    %93 = vector.broadcast %78 : vector<1x4xf32> to vector<64x4xf32>
    %94 = arith.mulf %92, %93 : vector<64x4xf32>
    %95 = vector.extract_strided_slice %51 {offsets = [0, 0], sizes = [64, 1], strides = [1, 1]} : vector<64x4xf32> to vector<64x1xf32>
    %96 = vector.extract_strided_slice %51 {offsets = [0, 0], sizes = [64, 3], strides = [1, 1]} : vector<64x4xf32> to vector<64x3xf32>
    %97 = tpu.concatenate %95, %96 in 1 : vector<64x1xf32>, vector<64x3xf32> -> vector<64x4xf32>
    %98 = vector.broadcast %78 : vector<1x4xf32> to vector<64x4xf32>
    %99 = arith.mulf %97, %98 : vector<64x4xf32>
    %100 = arith.truncf %85 : vector<64x4xf32> to vector<64x4xbf16>
    %101 = arith.truncf %87 : vector<64x4xf32> to vector<64x4xbf16>
    %102 = arith.truncf %89 : vector<64x4xf32> to vector<64x4xbf16>
    %103 = arith.truncf %94 : vector<64x4xf32> to vector<64x4xbf16>
    %104 = arith.truncf %12 : vector<64x4xf32> to vector<64x4xbf16>
    %105 = arith.truncf %25 : vector<64x4xf32> to vector<64x4xbf16>
    %106 = arith.truncf %99 : vector<64x4xf32> to vector<64x4xbf16>
    %107 = arith.truncf %38 : vector<64x4xf32> to vector<64x4xbf16>
    %108 = arith.truncf %51 : vector<64x4xf32> to vector<64x4xbf16>
    %109 = tpu.concatenate %100, %101, %102, %103, %104, %105, %106, %107, %108 in 0 : vector<64x4xbf16>, vector<64x4xbf16>, vector<64x4xbf16>, vector<64x4xbf16>, vector<64x4xbf16>, vector<64x4xbf16>, vector<64x4xbf16>, vector<64x4xbf16>, vector<64x4xbf16> -> vector<576x4xbf16>
    %c0_65 = arith.constant 0 : index
    %c0_66 = arith.constant 0 : index
    %110 = vector.load %arg3[%c0_65, %c0_66] : memref<128x576xbf16, #tpu.memory_space<vmem>>, vector<128x576xbf16>
    %cst_67 = arith.constant dense<0.000000e+00> : vector<128x4xf32>
    %111 = tpu.matmul %110, %109, %cst_67 {dimension_numbers = #tpu.dot_dimension_numbers<[1], [0], [0], [1], [0, 0, 1, 1], [], []>} : vector<128x576xbf16>, vector<576x4xbf16>, vector<128x4xf32> -> vector<128x4xf32>
    %112 = arith.truncf %111 : vector<128x4xf32> to vector<128x4xbf16>
    %c0_68 = arith.constant 0 : index
    %c0_69 = arith.constant 0 : index
    %c0_70 = arith.constant 0 : index
    %113 = vector.load %arg9[%c0_68, %c0_69, %c0_70] : memref<1x128x4xbf16, #tpu.memory_space<vmem>>, vector<1x128x4xbf16>
    %114 = vector.shape_cast %113 : vector<1x128x4xbf16> to vector<128x4xbf16>
    %115 = vector.shape_cast %112 : vector<128x4xbf16> to vector<1x128x4xbf16>
    tpu.vector_store %arg9[%c0_68, %c0_69, %c0_70], %115 {strides = array<i32>} : memref<1x128x4xbf16, #tpu.memory_space<vmem>>, vector<1x128x4xbf16>,
    %c0_71 = arith.constant 0 : index
    %c0_72 = arith.constant 0 : index
    %116 = vector.load %arg7[%c0_71, %c0_72] : memref<8x128xf32, #tpu.memory_space<vmem>>, vector<8x128xf32>
    %cst_73 = arith.constant dense<0.000000e+00> : vector<8x4xf32>
    %117 = tpu.matmul %116, %111, %cst_73 {dimension_numbers = #tpu.dot_dimension_numbers<[1], [0], [0], [1], [0, 0, 1, 1], [], []>} : vector<8x128xf32>, vector<128x4xf32>, vector<8x4xf32> -> vector<8x4xf32>
    %cst_74 = arith.constant dense<0.000000e+00> : vector<8xf32>
    %118 = vector.multi_reduction <add>, %117, %cst_74 [1] : vector<8x4xf32> to vector<8xf32>
    %119 = vector.shape_cast %118 : vector<8xf32> to vector<8x1xf32>
    %c0_75 = arith.constant 0 : index
    %c0_76 = arith.constant 0 : index
    %120 = vector.load %arg8[%c0_75, %c0_76] : memref<128x8xf32, #tpu.memory_space<vmem>>, vector<128x8xf32>
    %cst_77 = arith.constant 6.400000e+01 : f32
    %121 = vector.broadcast %cst_77 : f32 to vector<8x1xf32>
    %122 = arith.divf %119, %121 : vector<8x1xf32>
    %123 = vector.shape_cast %122 : vector<8x1xf32> to vector<8x1xf32>
    %124 = vector.broadcast %123 : vector<8x1xf32> to vector<8x4xf32>
    %cst_78 = arith.constant dense<0.000000e+00> : vector<128x4xf32>
    %125 = tpu.matmul %120, %124, %cst_78 {dimension_numbers = #tpu.dot_dimension_numbers<[1], [0], [0], [1], [0, 0, 1, 1], [], []>} : vector<128x8xf32>, vector<8x4xf32>, vector<128x4xf32> -> vector<128x4xf32>
    %126 = arith.subf %111, %125 : vector<128x4xf32>
    %c0_79 = arith.constant 0 : index
    %c0_80 = arith.constant 0 : index
    %127 = vector.load %arg7[%c0_79, %c0_80] : memref<8x128xf32, #tpu.memory_space<vmem>>, vector<8x128xf32>
    %128 = arith.mulf %126, %126 : vector<128x4xf32>
    %cst_81 = arith.constant dense<0.000000e+00> : vector<8x4xf32>
    %129 = tpu.matmul %127, %128, %cst_81 {dimension_numbers = #tpu.dot_dimension_numbers<[1], [0], [0], [1], [0, 0, 1, 1], [], []>} : vector<8x128xf32>, vector<128x4xf32>, vector<8x4xf32> -> vector<8x4xf32>
    %cst_82 = arith.constant dense<0.000000e+00> : vector<8xf32>
    %130 = vector.multi_reduction <add>, %129, %cst_82 [1] : vector<8x4xf32> to vector<8xf32>
    %131 = vector.shape_cast %130 : vector<8xf32> to vector<8x1xf32>
    %132 = tpu.concatenate %119, %131 in 0 : vector<8x1xf32>, vector<8x1xf32> -> vector<16x1xf32>
    %133 = tpu.iota {dimensions = array<i32: 1>} : vector<1x128xi32>
    %c0_i32 = arith.constant 0 : i32
    %134 = vector.broadcast %c0_i32 : i32 to vector<1x128xi32>
    %135 = arith.cmpi eq, %133, %134 : vector<1x128xi32>
    %cst_83 = arith.constant 0.000000e+00 : f32
    %136 = vector.shape_cast %135 : vector<1x128xi1> to vector<1x128xi1>
    %137 = vector.broadcast %136 : vector<1x128xi1> to vector<16x128xi1>
    %138 = vector.shape_cast %132 : vector<16x1xf32> to vector<16x1xf32>
    %139 = vector.broadcast %138 : vector<16x1xf32> to vector<16x128xf32>
    %140 = vector.broadcast %cst_83 : f32 to vector<16x128xf32>
    %141 = arith.select %137, %139, %140 : vector<16x128xi1>, vector<16x128xf32>
    %c0_84 = arith.constant 0 : index
    %c0_85 = arith.constant 0 : index
    %c0_86 = arith.constant 0 : index
    %c0_87 = arith.constant 0 : index
    %142 = vector.load %arg10[%c0_84, %c0_85, %c0_86, %c0_87] : memref<1x1x16x128xf32, #tpu.memory_space<vmem>>, vector<1x1x16x128xf32>
    %143 = vector.shape_cast %142 : vector<1x1x16x128xf32> to vector<16x128xf32>
    %144 = vector.shape_cast %141 : vector<16x128xf32> to vector<1x1x16x128xf32>
    tpu.vector_store %arg10[%c0_84, %c0_85, %c0_86, %c0_87], %144 {strides = array<i32>} : memref<1x1x16x128xf32, #tpu.memory_space<vmem>>, vector<1x1x16x128xf32>,
    return
  }
  func.func @transform_0(%arg0: i32, %arg1: i32) -> (i32, i32, i32, i32) {
    %c0_i32 = arith.constant 0 : i32
    %c0_i32_0 = arith.constant 0 : i32
    %c0_i32_1 = arith.constant 0 : i32
    return %arg0, %c0_i32, %c0_i32_0, %arg1 : i32, i32, i32, i32
  }
  func.func @transform_1(%arg0: i32, %arg1: i32) -> (i32, i32) {
    %c0_i32 = arith.constant 0 : i32
    %c0_i32_0 = arith.constant 0 : i32
    %c0_i32_1 = arith.constant 0 : i32
    return %c0_i32, %c0_i32_0 : i32, i32
  }
  func.func @transform_2(%arg0: i32, %arg1: i32) -> (i32, i32, i32) {
    %c0_i32 = arith.constant 0 : i32
    %c0_i32_0 = arith.constant 0 : i32
    %c0_i32_1 = arith.constant 0 : i32
    return %arg0, %c0_i32, %c0_i32_0 : i32, i32, i32
  }
  func.func @transform_3(%arg0: i32, %arg1: i32) -> (i32, i32, i32) {
    %c0_i32 = arith.constant 0 : i32
    %c0_i32_0 = arith.constant 0 : i32
    %c0_i32_1 = arith.constant 0 : i32
    return %arg0, %c0_i32, %c0_i32_0 : i32, i32, i32
  }
  func.func @transform_4(%arg0: i32, %arg1: i32) -> (i32, i32) {
    %c0_i32 = arith.constant 0 : i32
    %c0_i32_0 = arith.constant 0 : i32
    return %c0_i32, %arg1 : i32, i32
  }
  func.func @transform_5(%arg0: i32, %arg1: i32) -> (i32, i32) {
    %c0_i32 = arith.constant 0 : i32
    %c0_i32_0 = arith.constant 0 : i32
    %c0_i32_1 = arith.constant 0 : i32
    return %c0_i32, %c0_i32_0 : i32, i32
  }
  func.func @transform_6(%arg0: i32, %arg1: i32) -> (i32, i32) {
    %c0_i32 = arith.constant 0 : i32
    %c0_i32_0 = arith.constant 0 : i32
    %c0_i32_1 = arith.constant 0 : i32
    return %c0_i32, %c0_i32_0 : i32, i32
  }
  func.func @transform_7(%arg0: i32, %arg1: i32) -> (i32, i32, i32) {
    %c0_i32 = arith.constant 0 : i32
    %c0_i32_0 = arith.constant 0 : i32
    return %arg0, %c0_i32, %arg1 : i32, i32, i32
  }
  func.func @transform_8(%arg0: i32, %arg1: i32) -> (i32, i32, i32, i32) {
    %c0_i32 = arith.constant 0 : i32
    %c0_i32_0 = arith.constant 0 : i32
    %c0_i32_1 = arith.constant 0 : i32
    return %arg0, %arg1, %c0_i32, %c0_i32_0 : i32, i32, i32, i32
  }
}

module attributes {stable_mosaic.version = 11 : i64} {
  func.func @_norm_relu_kernel(%arg0: i32, %arg1: i32, %arg2: memref<1x128x4xbf16, #tpu.memory_space<vmem>>, %arg3: memref<1x128x1xf32, #tpu.memory_space<vmem>>, %arg4: memref<1x128x1xf32, #tpu.memory_space<vmem>>, %arg5: memref<1x128x4xf32, #tpu.memory_space<vmem>>) attributes {dimension_semantics = [#tpu.dimension_semantics<parallel>, #tpu.dimension_semantics<parallel>], iteration_bounds = array<i64: 2, 1>, scalar_prefetch = 0 : i64, scratch_operands = 0 : i64, tpu.core_type = #tpu.core_type<tc>, window_params = [{transform_indices = @transform_0, window_bounds = array<i64: 1, 128, 4>}, {transform_indices = @transform_1, window_bounds = array<i64: 1, 128, 1>}, {transform_indices = @transform_2, window_bounds = array<i64: 1, 128, 1>}, {transform_indices = @transform_3, window_bounds = array<i64: 1, 128, 4>}]} {
    %c0 = arith.constant 0 : index
    %c0_0 = arith.constant 0 : index
    %c0_1 = arith.constant 0 : index
    %0 = vector.load %arg2[%c0, %c0_0, %c0_1] : memref<1x128x4xbf16, #tpu.memory_space<vmem>>, vector<1x128x4xbf16>
    %1 = vector.shape_cast %0 : vector<1x128x4xbf16> to vector<128x4xbf16>
    %2 = arith.extf %1 : vector<128x4xbf16> to vector<128x4xf32>
    %c0_2 = arith.constant 0 : index
    %c0_3 = arith.constant 0 : index
    %c0_4 = arith.constant 0 : index
    %3 = vector.load %arg3[%c0_2, %c0_3, %c0_4] : memref<1x128x1xf32, #tpu.memory_space<vmem>>, vector<1x128x1xf32>
    %4 = vector.shape_cast %3 : vector<1x128x1xf32> to vector<128x1xf32>
    %5 = vector.broadcast %4 : vector<128x1xf32> to vector<128x4xf32>
    %6 = arith.mulf %2, %5 : vector<128x4xf32>
    %c0_5 = arith.constant 0 : index
    %c0_6 = arith.constant 0 : index
    %c0_7 = arith.constant 0 : index
    %7 = vector.load %arg4[%c0_5, %c0_6, %c0_7] : memref<1x128x1xf32, #tpu.memory_space<vmem>>, vector<1x128x1xf32>
    %8 = vector.shape_cast %7 : vector<1x128x1xf32> to vector<128x1xf32>
    %9 = vector.broadcast %8 : vector<128x1xf32> to vector<128x4xf32>
    %10 = arith.addf %6, %9 : vector<128x4xf32>
    %cst = arith.constant 0.000000e+00 : f32
    %11 = vector.broadcast %cst : f32 to vector<128x4xf32>
    %12 = arith.maximumf %10, %11 : vector<128x4xf32>
    %c0_8 = arith.constant 0 : index
    %c0_9 = arith.constant 0 : index
    %c0_10 = arith.constant 0 : index
    %13 = vector.load %arg5[%c0_8, %c0_9, %c0_10] : memref<1x128x4xf32, #tpu.memory_space<vmem>>, vector<1x128x4xf32>
    %14 = vector.shape_cast %13 : vector<1x128x4xf32> to vector<128x4xf32>
    %15 = vector.shape_cast %12 : vector<128x4xf32> to vector<1x128x4xf32>
    tpu.vector_store %arg5[%c0_8, %c0_9, %c0_10], %15 {strides = array<i32>} : memref<1x128x4xf32, #tpu.memory_space<vmem>>, vector<1x128x4xf32>,
    return
  }
  func.func @transform_0(%arg0: i32, %arg1: i32) -> (i32, i32, i32) {
    %c0_i32 = arith.constant 0 : i32
    %c0_i32_0 = arith.constant 0 : i32
    return %arg0, %c0_i32, %arg1 : i32, i32, i32
  }
  func.func @transform_1(%arg0: i32, %arg1: i32) -> (i32, i32, i32) {
    %c0_i32 = arith.constant 0 : i32
    %c0_i32_0 = arith.constant 0 : i32
    %c0_i32_1 = arith.constant 0 : i32
    return %arg0, %c0_i32, %c0_i32_0 : i32, i32, i32
  }
  func.func @transform_2(%arg0: i32, %arg1: i32) -> (i32, i32, i32) {
    %c0_i32 = arith.constant 0 : i32
    %c0_i32_0 = arith.constant 0 : i32
    %c0_i32_1 = arith.constant 0 : i32
    return %arg0, %c0_i32, %c0_i32_0 : i32, i32, i32
  }
  func.func @transform_3(%arg0: i32, %arg1: i32) -> (i32, i32, i32) {
    %c0_i32 = arith.constant 0 : i32
    %c0_i32_0 = arith.constant 0 : i32
    return %arg0, %c0_i32, %arg1 : i32, i32, i32
  }
}

</mosaic_0001>

<llo_original>
// kernel: encoder_forward.4
$region0: #{encoder_forward.4}
  #allocation0 [shape = 'u32[]', space=smem, size = 0x4, offset = 0x4, fixed_abs, tag = 'smem constant byte address 0x4 - core index']
  #allocation1 [shape = 'u32[144,128]{1,0:T(1,128)}', space=vmem, size = 0x12000, scoped, tag = 'internal scratch']
  %s0 = inlined_call_operand.vmem [shape: bf16[2,6,1,64], index: 0, kind: input, shape index: {}]
  %s1 = inlined_call_operand.vmem [shape: bf16[32,9], index: 1, kind: input, shape index: {}]
  %s2 = inlined_call_operand.vmem [shape: f32[2,1,1], index: 2, kind: input, shape index: {}, may-alias: {2,3}]
  %s3 = inlined_call_operand.vmem [shape: f32[2,1,1], index: 3, kind: input, shape index: {}, may-alias: {2,3}]
  %s4 = inlined_call_operand.vmem [shape: f32[3,64], index: 4, kind: input, shape index: {}]
  %s5 = inlined_call_operand.vmem [shape: f32[8,32], index: 5, kind: input, shape index: {}]
  %s6 = inlined_call_operand.vmem [shape: f32[32,8], index: 6, kind: input, shape index: {}]
  %s7 = inlined_call_operand.vmem [shape: bf16[2,32,64], index: 7, kind: output, shape index: {0}]
  %s8 = inlined_call_operand.vmem [shape: f32[2,1,16,128], index: 8, kind: output, shape index: {1}]
  %9 = xla_tuple %s7, %s8
  %s10 = sld [smem:[#allocation0]]
  $region69: #{encoder_forward.4} parent=0
    _
  %s12 = ssub.s32 1, %s10
  %s13 = scalar_select 0, %s12, %s10
  loop: start=0, step=1, limit=4
  $region2: #{encoder_forward.4} parent=0 // loop_pre_header
    _
  $region3: #{encoder_forward.4} parent=0 // loop_header
    %s15 = sphi 0, %s19
    %p16 = scmp.ge.s32.totalorder %s15, 4
    %s22 = sphi 0, %s34
    %s23 = sphi 0, %s30
    %s24 = sphi 0, %s22
    %s25 = sphi 0, %s23
    %s26 = sphi 0, %s24
    %s27 = sphi 0, %s25
    %s39 = sphi 0, %s41
    %s42 = sphi 0, %s39
    %s43 = sphi 0, %s42
    %s59 = sphi 0, %s43
    %s63 = sphi 0, %s63
    %s65 = sphi 0, %s63
    %s66 = sphi 0, %s65
    %s80 = sphi 0, %s66
    %s86 = sphi 0, %s88
    %s89 = sphi 0, %s86
    %s90 = sphi 0, %s89
    %s106 = sphi 0, %s90
    %s112 = sphi 0, %s114
    %s115 = sphi 0, %s112
    %s116 = sphi 0, %s115
    %s132 = sphi 0, %s116
    %s138 = sphi 0, %s140
    %s141 = sphi 0, %s138
    %s142 = sphi 0, %s141
    %s158 = sphi 0, %s142
    %s162 = sphi 0, %s162
    %s164 = sphi 0, %s162
    %s165 = sphi 0, %s164
    %s179 = sphi 0, %s165
    %s183 = sphi 0, %s183
    %s185 = sphi 0, %s183
    %s186 = sphi 0, %s185
    %s200 = sphi 0, %s186
    %s208 = sphi 0, %s210
    %s211 = sphi 0, %s208
    %s212 = sphi 0, %s211
    %s228 = sphi 0, %s212
    %s236 = sphi 0, %s238
    %s239 = sphi 0, %s236
    %s240 = sphi 0, %s239
    %s256 = sphi 0, %s240
  $region4: #{encoder_forward.4} parent=0 // loop_header_branch
    %18 = sbr.rel (%p16) target = $region8
  $region5: #{encoder_forward.4} parent=0 // loop_body
    %s20 = ssub.s32 %s15, 1
    %s21 = ssub.s32 %s15, 2
    %s28 = sadd.s32 1, %s23
    %p29 = scmp.ge.s32.totalorder %s28, 1
    %s30 = scalar_select %p29, 0, %s28
    %s31 = sadd.s32 1, %s22
    %s32 = scalar_select %p29, %s31, %s22
    %p33 = scmp.ge.s32.totalorder %s32, 2
    %s34 = scalar_select %p33, 0, %s32
    %s35 = ssub.s32 %s22, %s34
    %s36 = ssub.s32 %s23, %s30
    %s37 = sor.u32 %s35, %s36
    %p38 = scmp.eq.s32.totalorder %s37, 0
    %s40 = sadd.s32 %s39, 1
    %s41 = scalar_select %p38, %s39, %s40
    %p44 = pneg %p38
    %p45 = scmp.eq.s32.totalorder %s15, 1
    %p46 = por %p44, %p45
    %p47 = scmp.ne.s32.totalorder %s39, %s42
    %p48 = scmp.eq.s32.totalorder %s15, 0
    %p49 = por %p47, %p48
    %p50 = scmp.ne.s32.totalorder %s39, %s42
    %p51 = scmp.eq.s32.totalorder %s20, 1
    %p52 = por %p50, %p51
    %p53 = scmp.ne.s32.totalorder %s42, %s43
    %p54 = scmp.eq.s32.totalorder %s20, 0
    %p55 = por %p53, %p54
    %p56 = scmp.ne.s32.totalorder %s42, %s43
    %p57 = scmp.eq.s32.totalorder %s21, 1
    %p58 = por %p56, %p57
    %p60 = scmp.ne.s32.totalorder %s43, %s59
    %p61 = scmp.eq.s32.totalorder %s21, 0
    %p62 = por %p60, %p61
    %s64 = sadd.s32 %s63, 1
    %p67 = scmp.eq.s32.totalorder %s15, 1
    %p68 = scmp.ne.s32.totalorder %s63, %s65
    %p69 = scmp.eq.s32.totalorder %s15, 0
    %p70 = por %p68, %p69
    %p71 = scmp.ne.s32.totalorder %s63, %s65
    %p72 = scmp.eq.s32.totalorder %s20, 1
    %p73 = por %p71, %p72
    %p74 = scmp.ne.s32.totalorder %s65, %s66
    %p75 = scmp.eq.s32.totalorder %s20, 0
    %p76 = por %p74, %p75
    %p77 = scmp.ne.s32.totalorder %s65, %s66
    %p78 = scmp.eq.s32.totalorder %s21, 1
    %p79 = por %p77, %p78
    %p81 = scmp.ne.s32.totalorder %s66, %s80
    %p82 = scmp.eq.s32.totalorder %s21, 0
    %p83 = por %p81, %p82
    %s84 = ssub.s32 %s22, %s34
    %p85 = scmp.eq.s32.totalorder %s84, 0
    %s87 = sadd.s32 %s86, 1
    %s88 = scalar_select %p85, %s86, %s87
    %p91 = pneg %p85
    %p92 = scmp.eq.s32.totalorder %s15, 1
    %p93 = por %p91, %p92
    %p94 = scmp.ne.s32.totalorder %s86, %s89
    %p95 = scmp.eq.s32.totalorder %s15, 0
    %p96 = por %p94, %p95
    %p97 = scmp.ne.s32.totalorder %s86, %s89
    %p98 = scmp.eq.s32.totalorder %s20, 1
    %p99 = por %p97, %p98
    %p100 = scmp.ne.s32.totalorder %s89, %s90
    %p101 = scmp.eq.s32.totalorder %s20, 0
    %p102 = por %p100, %p101
    %p103 = scmp.ne.s32.totalorder %s89, %s90
    %p104 = scmp.eq.s32.totalorder %s21, 1
    %p105 = por %p103, %p104
    %p107 = scmp.ne.s32.totalorder %s90, %s106
    %p108 = scmp.eq.s32.totalorder %s21, 0
    %p109 = por %p107, %p108
    %s110 = ssub.s32 %s22, %s34
    %p111 = scmp.eq.s32.totalorder %s110, 0
    %s113 = sadd.s32 %s112, 1
    %s114 = scalar_select %p111, %s112, %s113
    %p117 = pneg %p111
    %p118 = scmp.eq.s32.totalorder %s15, 1
    %p119 = por %p117, %p118
    %p120 = scmp.ne.s32.totalorder %s112, %s115
    %p121 = scmp.eq.s32.totalorder %s15, 0
    %p122 = por %p120, %p121
    %p123 = scmp.ne.s32.totalorder %s112, %s115
    %p124 = scmp.eq.s32.totalorder %s20, 1
    %p125 = por %p123, %p124
    %p126 = scmp.ne.s32.totalorder %s115, %s116
    %p127 = scmp.eq.s32.totalorder %s20, 0
    %p128 = por %p126, %p127
    %p129 = scmp.ne.s32.totalorder %s115, %s116
    %p130 = scmp.eq.s32.totalorder %s21, 1
    %p131 = por %p129, %p130
    %p133 = scmp.ne.s32.totalorder %s116, %s132
    %p134 = scmp.eq.s32.totalorder %s21, 0
    %p135 = por %p133, %p134
    %s136 = ssub.s32 %s23, %s30
    %p137 = scmp.eq.s32.totalorder %s136, 0
    %s139 = sadd.s32 %s138, 1
    %s140 = scalar_select %p137, %s138, %s139
    %p143 = pneg %p137
    %p144 = scmp.eq.s32.totalorder %s15, 1
    %p145 = por %p143, %p144
    %p146 = scmp.ne.s32.totalorder %s138, %s141
    %p147 = scmp.eq.s32.totalorder %s15, 0
    %p148 = por %p146, %p147
    %p149 = scmp.ne.s32.totalorder %s138, %s141
    %p150 = scmp.eq.s32.totalorder %s20, 1
    %p151 = por %p149, %p150
    %p152 = scmp.ne.s32.totalorder %s141, %s142
    %p153 = scmp.eq.s32.totalorder %s20, 0
    %p154 = por %p152, %p153
    %p155 = scmp.ne.s32.totalorder %s141, %s142
    %p156 = scmp.eq.s32.totalorder %s21, 1
    %p157 = por %p155, %p156
    %p159 = scmp.ne.s32.totalorder %s142, %s158
    %p160 = scmp.eq.s32.totalorder %s21, 0
    %p161 = por %p159, %p160
    %s163 = sadd.s32 %s162, 1
    %p166 = scmp.eq.s32.totalorder %s15, 1
    %p167 = scmp.ne.s32.totalorder %s162, %s164
    %p168 = scmp.eq.s32.totalorder %s15, 0
    %p169 = por %p167, %p168
    %p170 = scmp.ne.s32.totalorder %s162, %s164
    %p171 = scmp.eq.s32.totalorder %s20, 1
    %p172 = por %p170, %p171
    %p173 = scmp.ne.s32.totalorder %s164, %s165
    %p174 = scmp.eq.s32.totalorder %s20, 0
    %p175 = por %p173, %p174
    %p176 = scmp.ne.s32.totalorder %s164, %s165
    %p177 = scmp.eq.s32.totalorder %s21, 1
    %p178 = por %p176, %p177
    %p180 = scmp.ne.s32.totalorder %s165, %s179
    %p181 = scmp.eq.s32.totalorder %s21, 0
    %p182 = por %p180, %p181
    %s184 = sadd.s32 %s183, 1
    %p187 = scmp.eq.s32.totalorder %s15, 1
    %p188 = scmp.ne.s32.totalorder %s183, %s185
    %p189 = scmp.eq.s32.totalorder %s15, 0
    %p190 = por %p188, %p189
    %p191 = scmp.ne.s32.totalorder %s183, %s185
    %p192 = scmp.eq.s32.totalorder %s20, 1
    %p193 = por %p191, %p192
    %p194 = scmp.ne.s32.totalorder %s185, %s186
    %p195 = scmp.eq.s32.totalorder %s20, 0
    %p196 = por %p194, %p195
    %p197 = scmp.ne.s32.totalorder %s185, %s186
    %p198 = scmp.eq.s32.totalorder %s21, 1
    %p199 = por %p197, %p198
    %p201 = scmp.ne.s32.totalorder %s186, %s200
    %p202 = scmp.eq.s32.totalorder %s21, 0
    %p203 = por %p201, %p202
    %s204 = ssub.s32 %s22, %s34
    %s205 = ssub.s32 %s23, %s30
    %s206 = sor.u32 %s204, %s205
    %p207 = scmp.eq.s32.totalorder %s206, 0
    %s209 = sadd.s32 %s208, 1
    %s210 = scalar_select %p207, %s208, %s209
    %p213 = pneg %p207
    %p214 = scmp.eq.s32.totalorder %s15, 1
    %p215 = por %p213, %p214
    %p216 = scmp.ne.s32.totalorder %s208, %s211
    %p217 = scmp.eq.s32.totalorder %s15, 0
    %p218 = por %p216, %p217
    %p219 = scmp.ne.s32.totalorder %s208, %s211
    %p220 = scmp.eq.s32.totalorder %s20, 1
    %p221 = por %p219, %p220
    %p222 = scmp.ne.s32.totalorder %s211, %s212
    %p223 = scmp.eq.s32.totalorder %s20, 0
    %p224 = por %p222, %p223
    %p225 = scmp.ne.s32.totalorder %s211, %s212
    %p226 = scmp.eq.s32.totalorder %s21, 1
    %p227 = por %p225, %p226
    %p229 = scmp.ne.s32.totalorder %s212, %s228
    %p230 = scmp.eq.s32.totalorder %s21, 0
    %p231 = por %p229, %p230
    %s232 = ssub.s32 %s22, %s34
    %s233 = ssub.s32 %s23, %s30
    %s234 = sor.u32 %s232, %s233
    %p235 = scmp.eq.s32.totalorder %s234, 0
    %s237 = sadd.s32 %s236, 1
    %s238 = scalar_select %p235, %s236, %s237
    %p241 = pneg %p235
    %p242 = scmp.eq.s32.totalorder %s15, 1
    %p243 = por %p241, %p242
    %p244 = scmp.ne.s32.totalorder %s236, %s239
    %p245 = scmp.eq.s32.totalorder %s15, 0
    %p246 = por %p244, %p245
    %p247 = scmp.ne.s32.totalorder %s236, %s239
    %p248 = scmp.eq.s32.totalorder %s20, 1
    %p249 = por %p247, %p248
    %p250 = scmp.ne.s32.totalorder %s239, %s240
    %p251 = scmp.eq.s32.totalorder %s20, 0
    %p252 = por %p250, %p251
    %p253 = scmp.ne.s32.totalorder %s239, %s240
    %p254 = scmp.eq.s32.totalorder %s21, 1
    %p255 = por %p253, %p254
    %p257 = scmp.ne.s32.totalorder %s240, %s256
    %p258 = scmp.eq.s32.totalorder %s21, 0
    %p259 = por %p257, %p258
    %p260 = scmp.le.s32.totalorder 1, %s15
    %p261 = scmp.lt.s32.totalorder %s15, 3
    %p262 = pnand %p260, %p261
    %p263 = pneg %p262
    // Predicated region
    $region9: #{encoder_forward.4} parent=5 // pred_check
      _
    $region10: #{encoder_forward.4} parent=5 // pred_check_branch
      %265 = sbr.rel (%p262) target = $region12
    $region11: #{encoder_forward.4} parent=5 // pred_region
      %s266 = ssub.s32 %s15, 1
      // Predicated region
      $region13: #{encoder_forward.4} parent=11 // pred_check
        %p267 = pneg %p76
      $region14: #{encoder_forward.4} parent=11 // pred_check_branch
        %269 = sbr.rel (%p267) target = $region16
      $region15: #{encoder_forward.4} parent=11 // pred_region
        _
      $region16: #{encoder_forward.4} parent=11 // pred_fallthru
        _
      // Predicated region
      $region17: #{encoder_forward.4} parent=11 // pred_check
        %p270 = pneg %p154
      $region18: #{encoder_forward.4} parent=11 // pred_check_branch
        %272 = sbr.rel (%p270) target = $region20
      $region19: #{encoder_forward.4} parent=11 // pred_region
        %p273 = scmp.lt.s32.totalorder %s25, 0
        %s274 = scalar_select %p273, %s25, 0
        %s275 = smul.addr %s274, 4
        %s276 = scalar_lea.vmem %s4, %s275
      $region20: #{encoder_forward.4} parent=11 // pred_fallthru
        _
      // Predicated region
      $region21: #{encoder_forward.4} parent=11 // pred_check
        %p277 = pneg %p175
      $region22: #{encoder_forward.4} parent=11 // pred_check_branch
        %279 = sbr.rel (%p277) target = $region24
      $region23: #{encoder_forward.4} parent=11 // pred_region
        _
      $region24: #{encoder_forward.4} parent=11 // pred_fallthru
        _
      // Predicated region
      $region25: #{encoder_forward.4} parent=11 // pred_check
        %p280 = pneg %p196
      $region26: #{encoder_forward.4} parent=11 // pred_check_branch
        %282 = sbr.rel (%p280) target = $region28
      $region27: #{encoder_forward.4} parent=11 // pred_region
        _
      $region28: #{encoder_forward.4} parent=11 // pred_fallthru
        _
    $region12: #{encoder_forward.4} parent=5 // pred_fallthru
      _
    %p283 = scmp.lt.s32.totalorder %s15, 2
    // Predicated region
    $region29: #{encoder_forward.4} parent=5 // pred_check
      %p284 = pneg %p283
    $region30: #{encoder_forward.4} parent=5 // pred_check_branch
      %286 = sbr.rel (%p284) target = $region32
    $region31: #{encoder_forward.4} parent=5 // pred_region
      // Predicated region
      $region33: #{encoder_forward.4} parent=31 // pred_check
        %p287 = pneg %p49
      $region34: #{encoder_forward.4} parent=31 // pred_check_branch
        %289 = sbr.rel (%p287) target = $region36
      $region35: #{encoder_forward.4} parent=31 // pred_region
        %p290 = scmp.lt.s32.totalorder %s22, 1
        %s291 = scalar_select %p290, %s22, 1
        %p292 = scmp.lt.s32.totalorder %s23, 0
        %s293 = scalar_select %p292, %s23, 0
        %s294 = smul.addr %s291, 6
        %s295 = sadd.s32 %s293, %s294
        %s296 = scalar_lea.vmem %s0, %s295
      $region36: #{encoder_forward.4} parent=31 // pred_fallthru
        _
      // Predicated region
      $region37: #{encoder_forward.4} parent=31 // pred_check
        %p297 = pneg %p96
      $region38: #{encoder_forward.4} parent=31 // pred_check_branch
        %299 = sbr.rel (%p297) target = $region40
      $region39: #{encoder_forward.4} parent=31 // pred_region
        %p300 = scmp.lt.s32.totalorder %s22, 1
        %s301 = scalar_select %p300, %s22, 1
        %s302 = scalar_lea.vmem %s2, %s301
      $region40: #{encoder_forward.4} parent=31 // pred_fallthru
        _
      // Predicated region
      $region41: #{encoder_forward.4} parent=31 // pred_check
        %p303 = pneg %p122
      $region42: #{encoder_forward.4} parent=31 // pred_check_branch
        %305 = sbr.rel (%p303) target = $region44
      $region43: #{encoder_forward.4} parent=31 // pred_region
        %p306 = scmp.lt.s32.totalorder %s22, 1
        %s307 = scalar_select %p306, %s22, 1
        %s308 = scalar_lea.vmem %s3, %s307
      $region44: #{encoder_forward.4} parent=31 // pred_fallthru
        _
    $region32: #{encoder_forward.4} parent=5 // pred_fallthru
      _
    %p309 = scmp.le.s32.totalorder 1, %s15
    %p310 = scmp.lt.s32.totalorder %s15, 3
    %p311 = pnand %p309, %p310
    %p312 = pneg %p311
    // Predicated region
    $region45: #{encoder_forward.4} parent=5 // pred_check
      _
    $region46: #{encoder_forward.4} parent=5 // pred_check_branch
      %314 = sbr.rel (%p311) target = $region48
    $region47: #{encoder_forward.4} parent=5 // pred_region
      %s315 = ssub.s32 %s15, 1
      %p316 = scmp.lt.s32.totalorder %s24, 1
      %s317 = scalar_select %p316, %s24, 1
      %p318 = scmp.lt.s32.totalorder %s25, 0
      %s319 = scalar_select %p318, %s25, 0
      %s320 = smul.addr %s317, 6
      %s321 = sadd.s32 %s319, %s320
      %s322 = scalar_lea.vmem %s0, %s321
      %p323 = pneg %p55
      %p324 = pneg %p52
      %p325 = pneg %p76
      %p326 = pneg %p73
      %p327 = scmp.lt.s32.totalorder %s24, 1
      %s328 = scalar_select %p327, %s24, 1
      %s329 = scalar_lea.vmem %s2, %s328
      %p330 = pneg %p102
      %p331 = pneg %p99
      %p332 = scmp.lt.s32.totalorder %s24, 1
      %s333 = scalar_select %p332, %s24, 1
      %s334 = scalar_lea.vmem %s3, %s333
      %p335 = pneg %p128
      %p336 = pneg %p125
      %p337 = scmp.lt.s32.totalorder %s25, 0
      %s338 = scalar_select %p337, %s25, 0
      %s339 = smul.addr %s338, 4
      %s340 = scalar_lea.vmem %s4, %s339
      %p341 = pneg %p154
      %p342 = pneg %p151
      %p343 = pneg %p175
      %p344 = pneg %p172
      %p345 = pneg %p196
      %p346 = pneg %p193
      %p347 = pneg %p224
      %p348 = pneg %p221
      %p349 = scmp.lt.s32.totalorder %s24, 1
      %s350 = scalar_select %p349, %s24, 1
      %p351 = scmp.lt.s32.totalorder %s25, 0
      %s352 = scalar_select %p351, %s25, 0
      %s353 = smul.addr %s350, 4
      %s354 = sadd.s32 %s352, %s353
      %s355 = smul.addr %s354, 4
      %s356 = scalar_lea.vmem %s7, %s355
      %p357 = pneg %p252
      %p358 = pneg %p249
      %p359 = scmp.lt.s32.totalorder %s24, 1
      %s360 = scalar_select %p359, %s24, 1
      %p361 = scmp.lt.s32.totalorder %s25, 0
      %s362 = scalar_select %p361, %s25, 0
      %s363 = smul.addr %s362, 2
      %s364 = smul.addr %s360, 2
      %s365 = sadd.s32 %s363, %s364
      %s366 = smul.addr %s365, 8
      %s367 = scalar_lea.vmem %s8, %s366
      %p368 = scmp.lt.s32.totalorder %s24, 1
      %s369 = scalar_select %p368, %s24, 1
      %p370 = scmp.lt.s32.totalorder %s25, 0
      %s371 = scalar_select %p370, %s25, 0
      %s372 = smul.addr %s369, 6
      %s373 = sadd.s32 %s371, %s372
      %s374 = scalar_lea.vmem %s0, %s373
      %p375 = scmp.lt.s32.totalorder %s24, 1
      %s376 = scalar_select %p375, %s24, 1
      %s377 = scalar_lea.vmem %s2, %s376
      %p378 = scmp.lt.s32.totalorder %s24, 1
      %s379 = scalar_select %p378, %s24, 1
      %s380 = scalar_lea.vmem %s3, %s379
      %p381 = scmp.lt.s32.totalorder %s25, 0
      %s382 = scalar_select %p381, %s25, 0
      %s383 = smul.addr %s382, 4
      %s384 = scalar_lea.vmem %s4, %s383
      %p385 = scmp.lt.s32.totalorder %s24, 1
      %s386 = scalar_select %p385, %s24, 1
      %p387 = scmp.lt.s32.totalorder %s25, 0
      %s388 = scalar_select %p387, %s25, 0
      %s389 = smul.addr %s386, 4
      %s390 = sadd.s32 %s388, %s389
      %s391 = smul.addr %s390, 4
      %s392 = scalar_lea.vmem %s7, %s391
      %p393 = scmp.lt.s32.totalorder %s24, 1
      %s394 = scalar_select %p393, %s24, 1
      %p395 = scmp.lt.s32.totalorder %s25, 0
      %s396 = scalar_select %p395, %s25, 0
      %s397 = smul.addr %s396, 2
      %s398 = smul.addr %s394, 2
      %s399 = sadd.s32 %s397, %s398
      %s400 = smul.addr %s399, 8
      %s401 = scalar_lea.vmem %s8, %s400
      %v403 = vld [vmem:[%s374] sm:$0x1]
      %s404 = scalar_lea.vmem %s374, 1
      %v405 = vld [vmem:[%s404] sm:$0x1]
      %v406 = vunpack.c.l.bf16 %v405
      %s407 = scalar_lea.vmem %s374, 2
      %v408 = vld [vmem:[%s407] sm:$0x1]
      %s409 = scalar_lea.vmem %s374, 3
      %v410 = vld [vmem:[%s409] sm:$0x1]
      %v411 = vunpack.c.l.bf16 %v410
      %s412 = scalar_lea.vmem %s374, 4
      %v413 = vld [vmem:[%s412] sm:$0x1]
      %v414 = vunpack.c.l.bf16 %v413
      %s415 = scalar_lea.vmem %s374, 5
      %v416 = vld [vmem:[%s415] sm:$0x1]
      %v417 = vunpack.c.l.bf16 %v416
      %v418 = vld [vmem:[%s384] sm:$0x1]
      %v419 = vld [vmem:[%s384 + $0x1] sm:$0x1]
      %v420 = vld [vmem:[%s384 + $0x2] sm:$0x1]
      %v422 = vlaneseq
      %v423 = vshrl.u32 %v422, 7
      %v424 = vsub.s32 0, %v423
      %v425 = vrot.slane %v417, %v424
      %426 = vrot.lane.b32.xlu0 %v425, 1
      %v427 = vpop.permute.xlu0 %426
      %vm429 = vcmask 7168
      %v430 = vsel %vm429, %v417, %v427
      %v431 = vmul.f32 %v430, %v420
      %v432 = vmul.f32 %v414, %v419
      %v433 = vmul.f32 %v417, %v419
      %v435 = vlaneseq
      %v436 = vshrl.u32 %v435, 7
      %v437 = vsub.s32 0, %v436
      %v438 = vrot.slane %v406, %v437
      %439 = vrot.lane.b32.xlu0 %v438, 1
      %v440 = vpop.permute.xlu0 %439
      %v442 = vsel %vm429, %v406, %v440
      %v443 = vmul.f32 %v442, %v418
      %v445 = vlaneseq
      %v446 = vshrl.u32 %v445, 7
      %v447 = vsub.s32 0, %v446
      %v448 = vrot.slane %v411, %v447
      %449 = vrot.lane.b32.xlu0 %v448, 1
      %v450 = vpop.permute.xlu0 %449
      %v452 = vsel %vm429, %v411, %v450
      %v453 = vmul.f32 %v452, %v418
      %v454 = vpack.c.bf16 %v431, %v431
      %v455 = vpack.c.bf16 %v432, %v432
      %v456 = vpack.c.bf16 %v433, %v433
      %v457 = vpack.c.bf16 %v443, %v443
      %v458 = vpack.c.bf16 %v453, %v453
      %v460 = vshll.u32 %v455, 16
      %v464 = vrot.slane %v456, 7
      %v466 = vshll.u32 %v457, 16
      %v468 = vrot.slane %v466, 7
      %v472 = vunpack.c.l.s4 1966171168
      %v473 = vunpack.c.0.s8 %v472
      %v474 = vlaneseq
      %v475 = vshrl.u32 %v474, 7
      %v476 = vsub.s32 %v473, %v475
      %v477 = vrot.slane %v403, %v476
      %v478 = vcombine.low %v477, %v477
      %v480 = vunpack.c.l.s4 1966171168
      %v481 = vunpack.c.0.s8 %v480
      %v482 = vlaneseq
      %v483 = vshrl.u32 %v482, 7
      %v484 = vsub.s32 %v481, %v483
      %v485 = vrot.slane %v478, %v484
      %v488 = vunpack.c.l.s4 1966171168
      %v489 = vunpack.c.0.s8 %v488
      %v490 = vlaneseq
      %v491 = vshrl.u32 %v490, 7
      %v492 = vsub.s32 %v489, %v491
      %v493 = vrot.slane %v405, %v492
      %v495 = vunpack.c.l.s4 1966171168
      %v496 = vunpack.c.0.s8 %v495
      %v497 = vlaneseq
      %v498 = vshrl.u32 %v497, 7
      %v499 = vsub.s32 %v496, %v498
      %v500 = vrot.slane %v493, %v499
      %v502 = vshll.u32 %v500, 16
      %v504 = vrot.slane %v502, 6
      %v507 = vrot.slane %v458, 5
      %v510 = vunpack.c.l.s4 1966171168
      %v511 = vunpack.c.0.s8 %v510
      %v512 = vlaneseq
      %v513 = vshrl.u32 %v512, 7
      %v514 = vsub.s32 %v511, %v513
      %v515 = vrot.slane %v408, %v514
      %v517 = vunpack.c.l.s4 1966171168
      %v518 = vunpack.c.0.s8 %v517
      %v519 = vlaneseq
      %v520 = vshrl.u32 %v519, 7
      %v521 = vsub.s32 %v518, %v520
      %v522 = vrot.slane %v515, %v521
      %v524 = vshll.u32 %v522, 16
      %v526 = vrot.slane %v524, 5
      %v530 = vunpack.c.l.s4 1966171168
      %v531 = vunpack.c.0.s8 %v530
      %v532 = vlaneseq
      %v533 = vshrl.u32 %v532, 7
      %v534 = vsub.s32 %v531, %v533
      %v535 = vrot.slane %v410, %v534
      %v537 = vunpack.c.l.s4 1966171168
      %v538 = vunpack.c.0.s8 %v537
      %v539 = vlaneseq
      %v540 = vshrl.u32 %v539, 7
      %v541 = vsub.s32 %v538, %v540
      %v542 = vrot.slane %v535, %v541
      %v543 = vcombine.low %v542, %v542
      %vm544 = vcmask 1040384
      %vm545 = vsmask.f32 256
      %vm546 = vmand %vm544, %vm545
      %v547 = vsel %vm546, %v454, %v460
      %vm548 = vcmask 1040384
      %v551 = vsel %vm548, %v547, %v464
      %vm553 = vcmask 1041408
      %vm554 = vsmask.f32 1280
      %vm555 = vmand %vm553, %vm554
      %v556 = vsel %vm555, %v551, %v468
      %vm557 = vcmask 1041408
      %v560 = vsel %vm557, %v556, %v485
      %vm562 = vcmask 1042432
      %vm563 = vsmask.f32 2304
      %vm564 = vmand %vm562, %vm563
      %v565 = vsel %vm564, %v560, %v504
      %vm566 = vcmask 1042432
      %v569 = vsel %vm566, %v565, %v507
      %vm571 = vcmask 1043456
      %vm572 = vsmask.f32 3328
      %vm573 = vmand %vm571, %vm572
      %v574 = vsel %vm573, %v569, %v526
      %vm575 = vcmask 1043456
      %v578 = vsel %vm575, %v574, %v543
      %v579 = vld [vmem:[%s1] sm:$0xf]
      %v580 = vld [vmem:[%s1 + $0x4] sm:$0xf]
      %v581 = vld [vmem:[%s1 + $0x8] sm:$0xf]
      %v582 = vld [vmem:[%s1 + $0xc] sm:$0xf]
      %v587 = vunpack.c.l.b16 %v579
      %v588 = vunpack.c.l.b16 %v580
      %v589 = vunpack.c.l.b16 %v581
      %v590 = vunpack.c.l.b16 %v582
      %v591 = vpack.c.b16 %v588, %v587
      %v592 = vpack.c.b16 %v590, %v589
      %vm593 = vcmask 72704
      %v595 = vsel %vm593, %v591, 0
      %v598 = vsel %vm593, %v592, 0
      %vm600 = vcmask 1044480
      %v601 = vsel %vm575, 4294967295, 65535
      %v602 = vsel %vm600, %v601, 0
      %v603 = vand.u32 %v578, %v602
      %605 = vmatprep.subr.bf16.mxu0 0
      %606 = vmatpush1.bf16.msra.mxu0 %v603
      %607 = vmatprep.subr.bf16.mxu0 0
      %608 = vmatpush1.bf16.msra.mxu0 0
      %609 = vmatprep.subr.bf16.mxu0 0
      %610 = vmatpush1.bf16.msra.mxu0 0
      %611 = vmatprep.subr.bf16.mxu0 0
      %612 = vmatpush1.bf16.msra.mxu0 0
      %613 = vmatprep.subr.bf16.mxu0 0
      %614 = vmatpush1.bf16.msra.mxu0 0
      %615 = vmatprep.subr.bf16.mxu0 0
      %616 = vmatpush1.bf16.msra.mxu0 0
      %617 = vmatprep.subr.bf16.mxu0 0
      %618 = vmatpush1.bf16.msra.mxu0 0
      %619 = vmatprep.subr.bf16.mxu0 0
      %620 = vmatpush1.bf16.msra.mxu0 0
      %621 = vmatprep.subr.bf16.mxu0 0
      %622 = vmatpush1.bf16.msra.mxu0 0
      %623 = vmatprep.subr.bf16.mxu0 0
      %624 = vmatpush1.bf16.msra.mxu0 0
      %625 = vmatprep.subr.bf16.mxu0 0
      %626 = vmatpush1.bf16.msra.mxu0 0
      %627 = vmatprep.subr.bf16.mxu0 0
      %628 = vmatpush1.bf16.msra.mxu0 0
      %629 = vmatprep.subr.bf16.mxu0 0
      %630 = vmatpush1.bf16.msra.mxu0 0
      %631 = vmatprep.subr.bf16.mxu0 0
      %632 = vmatpush1.bf16.msra.mxu0 0
      %633 = vmatprep.subr.bf16.mxu0 0
      %634 = vmatpush1.bf16.msra.mxu0 0
      %635 = vmatprep.subr.bf16.mxu0 0
      %636 = vmatpush1.bf16.msra.mxu0 0
      %637 = vmatprep.mubr.bf16.mxu0 0
      %638 = vmatmul.mubr.bf16.gmra.mrb[0].mxu0 %v595
      %v639 = vpop.f32.mrb[0].mxu0
      %v640 = vadd.f32 0.0, %v639
      %v641 = vpop.f32.mrb[0].mxu0
      %v642 = vpop.f32.mrb[0].mxu0
      %v643 = vadd.f32 0.0, %v642
      %v644 = vpop.f32.mrb[0].mxu0
      %645 = vmatprep.mubr.bf16.mxu0 0
      %646 = vmatmul.mubr.bf16.gmra.mrb[0].mxu0 %v598
      %v647 = vpop.f32.mrb[0].mxu0
      %v648 = vadd.f32 0.0, %v647
      %v649 = vpop.f32.mrb[0].mxu0
      %v650 = vpop.f32.mrb[0].mxu0
      %v651 = vadd.f32 0.0, %v650
      %v652 = vpop.f32.mrb[0].mxu0
      %653 = vdwg.mxu0
      %v654 = vpack.c.bf16 %v643, %v640
      %v655 = vpack.c.bf16 %v651, %v648
      %v658 = vunpack.c.l.b16 %v654
      %v659 = vunpack.c.h.b16 %v654
      %v660 = vunpack.c.l.b16 %v655
      %v661 = vunpack.c.h.b16 %v655
      %v662 = vpack.c.b16 %v658, %v658
      %v663 = vpack.c.b16 %v659, %v659
      %v664 = vpack.c.b16 %v660, %v660
      %v665 = vpack.c.b16 %v661, %v661
      %vm670 = vcmask 519168
      %671 = vst.msk [vmem:[%s392] sm:$0xf] %vm670, %v662
      %672 = vst.msk [vmem:[%s392 + $0x4] sm:$0xf] %vm670, %v663
      %673 = vst.msk [vmem:[%s392 + $0x8] sm:$0xf] %vm670, %v664
      %674 = vst.msk [vmem:[%s392 + $0xc] sm:$0xf] %vm670, %v665
      %v675 = vld [vmem:[%s5] sm:$0xff]
      %vm676 = vcmask 261120
      %v678 = vsel %vm676, %v675, 0
      %680 = vmatprep.subr.mxu0 0.0
      %681 = vmatpush1.msra.mxu0 %v640
      %682 = vmatprep.subr.mxu0 0.0
      %683 = vmatpush1.msra.mxu0 %v643
      %684 = vmatprep.subr.mxu0 0.0
      %685 = vmatpush1.msra.mxu0 %v648
      %686 = vmatprep.subr.mxu0 0.0
      %687 = vmatpush1.msra.mxu0 %v651
      %688 = vmatprep.subr.mxu0 0.0
      %689 = vmatpush1.msra.mxu0 0.0
      %690 = vmatprep.subr.mxu0 0.0
      %691 = vmatpush1.msra.mxu0 0.0
      %692 = vmatprep.subr.mxu0 0.0
      %693 = vmatpush1.msra.mxu0 0.0
      %694 = vmatprep.subr.mxu0 0.0
      %695 = vmatpush1.msra.mxu0 0.0
      %696 = vmatprep.subr.mxu0 0.0
      %697 = vmatpush1.msra.mxu0 0.0
      %698 = vmatprep.subr.mxu0 0.0
      %699 = vmatpush1.msra.mxu0 0.0
      %700 = vmatprep.subr.mxu0 0.0
      %701 = vmatpush1.msra.mxu0 0.0
      %702 = vmatprep.subr.mxu0 0.0
      %703 = vmatpush1.msra.mxu0 0.0
      %704 = vmatprep.subr.mxu0 0.0
      %705 = vmatpush1.msra.mxu0 0.0
      %706 = vmatprep.subr.mxu0 0.0
      %707 = vmatpush1.msra.mxu0 0.0
      %708 = vmatprep.subr.mxu0 0.0
      %709 = vmatpush1.msra.mxu0 0.0
      %710 = vmatprep.subr.mxu0 0.0
      %711 = vmatpush1.msra.mxu0 0.0
      %712 = vmatprep.subr.mxu0 0.0
      %713 = vmatpush1.msra.mxu0 0.0
      %714 = vmatprep.subr.mxu0 0.0
      %715 = vmatpush1.msra.mxu0 0.0
      %716 = vmatprep.subr.mxu0 0.0
      %717 = vmatpush1.msra.mxu0 0.0
      %718 = vmatprep.subr.mxu0 0.0
      %719 = vmatpush1.msra.mxu0 0.0
      %720 = vmatprep.subr.mxu0 0.0
      %721 = vmatpush1.msra.mxu0 0.0
      %722 = vmatprep.subr.mxu0 0.0
      %723 = vmatpush1.msra.mxu0 0.0
      %724 = vmatprep.subr.mxu0 0.0
      %725 = vmatpush1.msra.mxu0 0.0
      %726 = vmatprep.subr.mxu0 0.0
      %727 = vmatpush1.msra.mxu0 0.0
      %728 = vmatprep.subr.mxu0 0.0
      %729 = vmatpush1.msra.mxu0 0.0
      %730 = vmatprep.subr.mxu0 0.0
      %731 = vmatpush1.msra.mxu0 0.0
      %732 = vmatprep.subr.mxu0 0.0
      %733 = vmatpush1.msra.mxu0 0.0
      %734 = vmatprep.subr.mxu0 0.0
      %735 = vmatpush1.msra.mxu0 0.0
      %736 = vmatprep.subr.mxu0 0.0
      %737 = vmatpush1.msra.mxu0 0.0
      %738 = vmatprep.subr.mxu0 0.0
      %739 = vmatpush1.msra.mxu0 0.0
      %740 = vmatprep.subr.mxu0 0.0
      %741 = vmatpush1.msra.mxu0 0.0
      %742 = vmatprep.subr.mxu0 0.0
      %743 = vmatpush1.msra.mxu0 0.0
      %744 = vmatprep.mubr.f32.mxu0 0.0
      %745 = vmatmul.mubr.f32.gmra.mrb[0].mxu0 %v678
      %v746 = vpop.f32.mrb[0].mxu0
      %v747 = vadd.f32 0.0, %v746
      %v748 = vpop.f32.mrb[0].mxu0
      %749 = vdwg.mxu0
      %vm750 = vcmask 523264
      %v751 = vsel %vm750, %v747, 0.0
      %752 = vadd.xlane.f32.xlu0 %v751
      %v753 = vpop.xlane.xlu0 %752
      %v754 = vld [vmem:[%s6] sm:$0xff]
      %v755 = vld [vmem:[%s6 + $0x8] sm:$0xff]
      %v756 = vld [vmem:[%s6 + $0x10] sm:$0xff]
      %v757 = vld [vmem:[%s6 + $0x18] sm:$0xff]
      %v758 = vrcp.pop 256.0
      %v759 = vmul.f32 %v753, %v758
      %vm760 = vcmask 64512
      %v762 = vsel %vm760, %v754, 0
      %v765 = vsel %vm760, %v755, 0
      %v768 = vsel %vm760, %v756, 0
      %v771 = vsel %vm760, %v757, 0
      %773 = vmatprep.subr.mxu0 0.0
      %774 = vmatpush1.msra.mxu0 %v759
      %775 = vmatprep.subr.mxu0 0.0
      %776 = vmatpush1.msra.mxu0 0.0
      %777 = vmatprep.subr.mxu0 0.0
      %778 = vmatpush1.msra.mxu0 0.0
      %779 = vmatprep.subr.mxu0 0.0
      %780 = vmatpush1.msra.mxu0 0.0
      %781 = vmatprep.subr.mxu0 0.0
      %782 = vmatpush1.msra.mxu0 0.0
      %783 = vmatprep.subr.mxu0 0.0
      %784 = vmatpush1.msra.mxu0 0.0
      %785 = vmatprep.subr.mxu0 0.0
      %786 = vmatpush1.msra.mxu0 0.0
      %787 = vmatprep.subr.mxu0 0.0
      %788 = vmatpush1.msra.mxu0 0.0
      %789 = vmatprep.subr.mxu0 0.0
      %790 = vmatpush1.msra.mxu0 0.0
      %791 = vmatprep.subr.mxu0 0.0
      %792 = vmatpush1.msra.mxu0 0.0
      %793 = vmatprep.subr.mxu0 0.0
      %794 = vmatpush1.msra.mxu0 0.0
      %795 = vmatprep.subr.mxu0 0.0
      %796 = vmatpush1.msra.mxu0 0.0
      %797 = vmatprep.subr.mxu0 0.0
      %798 = vmatpush1.msra.mxu0 0.0
      %799 = vmatprep.subr.mxu0 0.0
      %800 = vmatpush1.msra.mxu0 0.0
      %801 = vmatprep.subr.mxu0 0.0
      %802 = vmatpush1.msra.mxu0 0.0
      %803 = vmatprep.subr.mxu0 0.0
      %804 = vmatpush1.msra.mxu0 0.0
      %805 = vmatprep.subr.mxu0 0.0
      %806 = vmatpush1.msra.mxu0 0.0
      %807 = vmatprep.subr.mxu0 0.0
      %808 = vmatpush1.msra.mxu0 0.0
      %809 = vmatprep.subr.mxu0 0.0
      %810 = vmatpush1.msra.mxu0 0.0
      %811 = vmatprep.subr.mxu0 0.0
      %812 = vmatpush1.msra.mxu0 0.0
      %813 = vmatprep.subr.mxu0 0.0
      %814 = vmatpush1.msra.mxu0 0.0
      %815 = vmatprep.subr.mxu0 0.0
      %816 = vmatpush1.msra.mxu0 0.0
      %817 = vmatprep.subr.mxu0 0.0
      %818 = vmatpush1.msra.mxu0 0.0
      %819 = vmatprep.subr.mxu0 0.0
      %820 = vmatpush1.msra.mxu0 0.0
      %821 = vmatprep.subr.mxu0 0.0
      %822 = vmatpush1.msra.mxu0 0.0
      %823 = vmatprep.subr.mxu0 0.0
      %824 = vmatpush1.msra.mxu0 0.0
      %825 = vmatprep.subr.mxu0 0.0
      %826 = vmatpush1.msra.mxu0 0.0
      %827 = vmatprep.subr.mxu0 0.0
      %828 = vmatpush1.msra.mxu0 0.0
      %829 = vmatprep.subr.mxu0 0.0
      %830 = vmatpush1.msra.mxu0 0.0
      %831 = vmatprep.subr.mxu0 0.0
      %832 = vmatpush1.msra.mxu0 0.0
      %833 = vmatprep.subr.mxu0 0.0
      %834 = vmatpush1.msra.mxu0 0.0
      %835 = vmatprep.subr.mxu0 0.0
      %836 = vmatpush1.msra.mxu0 0.0
      %837 = vmatprep.mubr.f32.mxu0 0.0
      %838 = vmatmul.mubr.f32.gmra.mrb[0].mxu0 %v762
      %v839 = vpop.f32.mrb[0].mxu0
      %v840 = vadd.f32 0.0, %v839
      %v841 = vpop.f32.mrb[0].mxu0
      %842 = vmatprep.mubr.f32.mxu0 0.0
      %843 = vmatmul.mubr.f32.gmra.mrb[0].mxu0 %v765
      %v844 = vpop.f32.mrb[0].mxu0
      %v845 = vadd.f32 0.0, %v844
      %v846 = vpop.f32.mrb[0].mxu0
      %847 = vmatprep.mubr.f32.mxu0 0.0
      %848 = vmatmul.mubr.f32.gmra.mrb[0].mxu0 %v768
      %v849 = vpop.f32.mrb[0].mxu0
      %v850 = vadd.f32 0.0, %v849
      %v851 = vpop.f32.mrb[0].mxu0
      %852 = vmatprep.mubr.f32.mxu0 0.0
      %853 = vmatmul.mubr.f32.gmra.mrb[0].mxu0 %v771
      %v854 = vpop.f32.mrb[0].mxu0
      %v855 = vadd.f32 0.0, %v854
      %v856 = vpop.f32.mrb[0].mxu0
      %857 = vdwg.mxu0
      %v858 = vsub.f32 %v640, %v840
      %v859 = vsub.f32 %v643, %v845
      %v860 = vsub.f32 %v648, %v850
      %v861 = vsub.f32 %v651, %v855
      %v862 = vmul.f32 %v858, %v858
      %v863 = vmul.f32 %v859, %v859
      %v864 = vmul.f32 %v860, %v860
      %v865 = vmul.f32 %v861, %v861
      %866 = vmatprep.subr.mxu0 0.0
      %867 = vmatpush1.msra.mxu0 %v862
      %868 = vmatprep.subr.mxu0 0.0
      %869 = vmatpush1.msra.mxu0 %v863
      %870 = vmatprep.subr.mxu0 0.0
      %871 = vmatpush1.msra.mxu0 %v864
      %872 = vmatprep.subr.mxu0 0.0
      %873 = vmatpush1.msra.mxu0 %v865
      %874 = vmatprep.subr.mxu0 0.0
      %875 = vmatpush1.msra.mxu0 0.0
      %876 = vmatprep.subr.mxu0 0.0
      %877 = vmatpush1.msra.mxu0 0.0
      %878 = vmatprep.subr.mxu0 0.0
      %879 = vmatpush1.msra.mxu0 0.0
      %880 = vmatprep.subr.mxu0 0.0
      %881 = vmatpush1.msra.mxu0 0.0
      %882 = vmatprep.subr.mxu0 0.0
      %883 = vmatpush1.msra.mxu0 0.0
      %884 = vmatprep.subr.mxu0 0.0
      %885 = vmatpush1.msra.mxu0 0.0
      %886 = vmatprep.subr.mxu0 0.0
      %887 = vmatpush1.msra.mxu0 0.0
      %888 = vmatprep.subr.mxu0 0.0
      %889 = vmatpush1.msra.mxu0 0.0
      %890 = vmatprep.subr.mxu0 0.0
      %891 = vmatpush1.msra.mxu0 0.0
      %892 = vmatprep.subr.mxu0 0.0
      %893 = vmatpush1.msra.mxu0 0.0
      %894 = vmatprep.subr.mxu0 0.0
      %895 = vmatpush1.msra.mxu0 0.0
      %896 = vmatprep.subr.mxu0 0.0
      %897 = vmatpush1.msra.mxu0 0.0
      %898 = vmatprep.subr.mxu0 0.0
      %899 = vmatpush1.msra.mxu0 0.0
      %900 = vmatprep.subr.mxu0 0.0
      %901 = vmatpush1.msra.mxu0 0.0
      %902 = vmatprep.subr.mxu0 0.0
      %903 = vmatpush1.msra.mxu0 0.0
      %904 = vmatprep.subr.mxu0 0.0
      %905 = vmatpush1.msra.mxu0 0.0
      %906 = vmatprep.subr.mxu0 0.0
      %907 = vmatpush1.msra.mxu0 0.0
      %908 = vmatprep.subr.mxu0 0.0
      %909 = vmatpush1.msra.mxu0 0.0
      %910 = vmatprep.subr.mxu0 0.0
      %911 = vmatpush1.msra.mxu0 0.0
      %912 = vmatprep.subr.mxu0 0.0
      %913 = vmatpush1.msra.mxu0 0.0
      %914 = vmatprep.subr.mxu0 0.0
      %915 = vmatpush1.msra.mxu0 0.0
      %916 = vmatprep.subr.mxu0 0.0
      %917 = vmatpush1.msra.mxu0 0.0
      %918 = vmatprep.subr.mxu0 0.0
      %919 = vmatpush1.msra.mxu0 0.0
      %920 = vmatprep.subr.mxu0 0.0
      %921 = vmatpush1.msra.mxu0 0.0
      %922 = vmatprep.subr.mxu0 0.0
      %923 = vmatpush1.msra.mxu0 0.0
      %924 = vmatprep.subr.mxu0 0.0
      %925 = vmatpush1.msra.mxu0 0.0
      %926 = vmatprep.subr.mxu0 0.0
      %927 = vmatpush1.msra.mxu0 0.0
      %928 = vmatprep.subr.mxu0 0.0
      %929 = vmatpush1.msra.mxu0 0.0
      %930 = vmatprep.mubr.f32.mxu0 0.0
      %931 = vmatmul.mubr.f32.gmra.mrb[0].mxu0 %v678
      %v932 = vpop.f32.mrb[0].mxu0
      %v933 = vadd.f32 0.0, %v932
      %v934 = vpop.f32.mrb[0].mxu0
      %935 = vdwg.mxu0
      %v936 = vsel %vm750, %v933, 0.0
      %937 = vadd.xlane.f32.xlu0 %v936
      %v938 = vpop.xlane.xlu0 %937
      %v939 = vlaneseq
      %v940 = vand.u32 %v939, 127
      %vm941 = vcmp.eq.s32.totalorder %v940, 0
      %v942 = vsel %vm941, 1, 0
      %vm943 = vcmp.eq.s32.totalorder %v942, 1
      %945 = vset.pattern.permute.xlu0 0
      %946 = vperm.xlu0 %945, %v753
      %v947 = vpop.permute.xlu0 %946
      %950 = vset.pattern.permute.xlu0 0
      %951 = vperm.xlu0 %950, %v938
      %v952 = vpop.permute.xlu0 %951
      %v954 = vsel %vm943, %v947, 0.0
      %v955 = vsel %vm943, %v952, 0.0
      %956 = vst [vmem:[%s401] sm:$0xff] %v954
      %957 = vst [vmem:[%s401 + $0x8] sm:$0xff] %v955
      %p958 = scmp.lt.s32.totalorder %s24, 1
      %s959 = scalar_select %p958, %s24, 1
      %p960 = scmp.lt.s32.totalorder %s25, 0
      %s961 = scalar_select %p960, %s25, 0
      %s962 = smul.addr %s959, 4
      %s963 = sadd.s32 %s961, %s962
      %s964 = smul.addr %s963, 4
      %s965 = scalar_lea.vmem %s7, %s964
      %p966 = scmp.lt.s32.totalorder %s24, 1
      %s967 = scalar_select %p966, %s24, 1
      %p968 = scmp.lt.s32.totalorder %s25, 0
      %s969 = scalar_select %p968, %s25, 0
      %s970 = smul.addr %s969, 2
      %s971 = smul.addr %s967, 2
      %s972 = sadd.s32 %s970, %s971
      %s973 = smul.addr %s972, 8
      %s974 = scalar_lea.vmem %s8, %s973
      // Predicated region
      $region49: #{encoder_forward.4} parent=47 // pred_check
        %p975 = pneg %p221
      $region50: #{encoder_forward.4} parent=47 // pred_check_branch
        %977 = sbr.rel (%p975) target = $region52
      $region51: #{encoder_forward.4} parent=47 // pred_region
        _
      $region52: #{encoder_forward.4} parent=47 // pred_fallthru
        _
      // Predicated region
      $region53: #{encoder_forward.4} parent=47 // pred_check
        %p978 = pneg %p249
      $region54: #{encoder_forward.4} parent=47 // pred_check_branch
        %980 = sbr.rel (%p978) target = $region56
      $region55: #{encoder_forward.4} parent=47 // pred_region
        _
      $region56: #{encoder_forward.4} parent=47 // pred_fallthru
        _
    $region48: #{encoder_forward.4} parent=5 // pred_fallthru
      _
    %p981 = scmp.le.s32.totalorder 2, %s15
    // Predicated region
    $region57: #{encoder_forward.4} parent=5 // pred_check
      %p982 = pneg %p981
    $region58: #{encoder_forward.4} parent=5 // pred_check_branch
      %984 = sbr.rel (%p982) target = $region60
    $region59: #{encoder_forward.4} parent=5 // pred_region
      %s985 = ssub.s32 %s15, 2
      // Predicated region
      $region61: #{encoder_forward.4} parent=59 // pred_check
        %p986 = pneg %p227
      $region62: #{encoder_forward.4} parent=59 // pred_check_branch
        %988 = sbr.rel (%p986) target = $region64
      $region63: #{encoder_forward.4} parent=59 // pred_region
        %p989 = scmp.lt.s32.totalorder %s26, 1
        %s990 = scalar_select %p989, %s26, 1
        %p991 = scmp.lt.s32.totalorder %s27, 0
        %s992 = scalar_select %p991, %s27, 0
        %s993 = smul.addr %s990, 4
        %s994 = sadd.s32 %s992, %s993
        %s995 = smul.addr %s994, 4
        %s996 = scalar_lea.vmem %s7, %s995
      $region64: #{encoder_forward.4} parent=59 // pred_fallthru
        _
      // Predicated region
      $region65: #{encoder_forward.4} parent=59 // pred_check
        %p997 = pneg %p255
      $region66: #{encoder_forward.4} parent=59 // pred_check_branch
        %999 = sbr.rel (%p997) target = $region68
      $region67: #{encoder_forward.4} parent=59 // pred_region
        %p1000 = scmp.lt.s32.totalorder %s26, 1
        %s1001 = scalar_select %p1000, %s26, 1
        %p1002 = scmp.lt.s32.totalorder %s27, 0
        %s1003 = scalar_select %p1002, %s27, 0
        %s1004 = smul.addr %s1003, 2
        %s1005 = smul.addr %s1001, 2
        %s1006 = sadd.s32 %s1004, %s1005
        %s1007 = smul.addr %s1006, 8
        %s1008 = scalar_lea.vmem %s8, %s1007
      $region68: #{encoder_forward.4} parent=59 // pred_fallthru
        _
    $region60: #{encoder_forward.4} parent=5 // pred_fallthru
      _
  $region6: #{encoder_forward.4} parent=0 // loop_footer
    %s19 = sadd.s32 1, %s15
  $region7: #{encoder_forward.4} parent=0 // loop_footer_branch
    %14 = sbr.rel target = $region3
  $region8: #{encoder_forward.4} parent=0 // loop_exit
    _

// kernel: encoder_forward.5
$region0: #{encoder_forward.5}
  #allocation0 [shape = 'u32[]', space=smem, size = 0x4, offset = 0x4, fixed_abs, tag = 'smem constant byte address 0x4 - core index']
  #allocation1 [shape = 'u32[144,128]{1,0:T(1,128)}', space=vmem, size = 0x12000, scoped, tag = 'internal scratch']
  %s0 = inlined_call_operand.vmem [shape: bf16[2,6,32,16], index: 0, kind: input, shape index: {}]
  %s1 = inlined_call_operand.vmem [shape: bf16[64,288], index: 1, kind: input, shape index: {}]
  %s2 = inlined_call_operand.vmem [shape: f32[2,32,1], index: 2, kind: input, shape index: {}]
  %s3 = inlined_call_operand.vmem [shape: f32[2,32,1], index: 3, kind: input, shape index: {}]
  %s4 = inlined_call_operand.vmem [shape: f32[3,16], index: 4, kind: input, shape index: {}]
  %s5 = inlined_call_operand.vmem [shape: f32[8,64], index: 5, kind: input, shape index: {}]
  %s6 = inlined_call_operand.vmem [shape: f32[64,8], index: 6, kind: input, shape index: {}]
  %s7 = inlined_call_operand.vmem [shape: bf16[2,64,16], index: 7, kind: output, shape index: {0}]
  %s8 = inlined_call_operand.vmem [shape: f32[2,1,16,128], index: 8, kind: output, shape index: {1}]
  %9 = xla_tuple %s7, %s8
  %s10 = sld [smem:[#allocation0]]
  $region69: #{encoder_forward.5} parent=0
    _
  %s12 = ssub.s32 1, %s10
  %s13 = scalar_select 0, %s12, %s10
  loop: start=0, step=1, limit=4
  $region2: #{encoder_forward.5} parent=0 // loop_pre_header
    _
  $region3: #{encoder_forward.5} parent=0 // loop_header
    %s15 = sphi 0, %s19
    %p16 = scmp.ge.s32.totalorder %s15, 4
    %s22 = sphi 0, %s34
    %s23 = sphi 0, %s30
    %s24 = sphi 0, %s22
    %s25 = sphi 0, %s23
    %s26 = sphi 0, %s24
    %s27 = sphi 0, %s25
    %s39 = sphi 0, %s41
    %s42 = sphi 0, %s39
    %s43 = sphi 0, %s42
    %s59 = sphi 0, %s43
    %s63 = sphi 0, %s63
    %s65 = sphi 0, %s63
    %s66 = sphi 0, %s65
    %s80 = sphi 0, %s66
    %s86 = sphi 0, %s88
    %s89 = sphi 0, %s86
    %s90 = sphi 0, %s89
    %s106 = sphi 0, %s90
    %s112 = sphi 0, %s114
    %s115 = sphi 0, %s112
    %s116 = sphi 0, %s115
    %s132 = sphi 0, %s116
    %s138 = sphi 0, %s140
    %s141 = sphi 0, %s138
    %s142 = sphi 0, %s141
    %s158 = sphi 0, %s142
    %s162 = sphi 0, %s162
    %s164 = sphi 0, %s162
    %s165 = sphi 0, %s164
    %s179 = sphi 0, %s165
    %s183 = sphi 0, %s183
    %s185 = sphi 0, %s183
    %s186 = sphi 0, %s185
    %s200 = sphi 0, %s186
    %s208 = sphi 0, %s210
    %s211 = sphi 0, %s208
    %s212 = sphi 0, %s211
    %s228 = sphi 0, %s212
    %s236 = sphi 0, %s238
    %s239 = sphi 0, %s236
    %s240 = sphi 0, %s239
    %s256 = sphi 0, %s240
  $region4: #{encoder_forward.5} parent=0 // loop_header_branch
    %18 = sbr.rel (%p16) target = $region8
  $region5: #{encoder_forward.5} parent=0 // loop_body
    %s20 = ssub.s32 %s15, 1
    %s21 = ssub.s32 %s15, 2
    %s28 = sadd.s32 1, %s23
    %p29 = scmp.ge.s32.totalorder %s28, 1
    %s30 = scalar_select %p29, 0, %s28
    %s31 = sadd.s32 1, %s22
    %s32 = scalar_select %p29, %s31, %s22
    %p33 = scmp.ge.s32.totalorder %s32, 2
    %s34 = scalar_select %p33, 0, %s32
    %s35 = ssub.s32 %s22, %s34
    %s36 = ssub.s32 %s23, %s30
    %s37 = sor.u32 %s35, %s36
    %p38 = scmp.eq.s32.totalorder %s37, 0
    %s40 = sadd.s32 %s39, 1
    %s41 = scalar_select %p38, %s39, %s40
    %p44 = pneg %p38
    %p45 = scmp.eq.s32.totalorder %s15, 1
    %p46 = por %p44, %p45
    %p47 = scmp.ne.s32.totalorder %s39, %s42
    %p48 = scmp.eq.s32.totalorder %s15, 0
    %p49 = por %p47, %p48
    %p50 = scmp.ne.s32.totalorder %s39, %s42
    %p51 = scmp.eq.s32.totalorder %s20, 1
    %p52 = por %p50, %p51
    %p53 = scmp.ne.s32.totalorder %s42, %s43
    %p54 = scmp.eq.s32.totalorder %s20, 0
    %p55 = por %p53, %p54
    %p56 = scmp.ne.s32.totalorder %s42, %s43
    %p57 = scmp.eq.s32.totalorder %s21, 1
    %p58 = por %p56, %p57
    %p60 = scmp.ne.s32.totalorder %s43, %s59
    %p61 = scmp.eq.s32.totalorder %s21, 0
    %p62 = por %p60, %p61
    %s64 = sadd.s32 %s63, 1
    %p67 = scmp.eq.s32.totalorder %s15, 1
    %p68 = scmp.ne.s32.totalorder %s63, %s65
    %p69 = scmp.eq.s32.totalorder %s15, 0
    %p70 = por %p68, %p69
    %p71 = scmp.ne.s32.totalorder %s63, %s65
    %p72 = scmp.eq.s32.totalorder %s20, 1
    %p73 = por %p71, %p72
    %p74 = scmp.ne.s32.totalorder %s65, %s66
    %p75 = scmp.eq.s32.totalorder %s20, 0
    %p76 = por %p74, %p75
    %p77 = scmp.ne.s32.totalorder %s65, %s66
    %p78 = scmp.eq.s32.totalorder %s21, 1
    %p79 = por %p77, %p78
    %p81 = scmp.ne.s32.totalorder %s66, %s80
    %p82 = scmp.eq.s32.totalorder %s21, 0
    %p83 = por %p81, %p82
    %s84 = ssub.s32 %s22, %s34
    %p85 = scmp.eq.s32.totalorder %s84, 0
    %s87 = sadd.s32 %s86, 1
    %s88 = scalar_select %p85, %s86, %s87
    %p91 = pneg %p85
    %p92 = scmp.eq.s32.totalorder %s15, 1
    %p93 = por %p91, %p92
    %p94 = scmp.ne.s32.totalorder %s86, %s89
    %p95 = scmp.eq.s32.totalorder %s15, 0
    %p96 = por %p94, %p95
    %p97 = scmp.ne.s32.totalorder %s86, %s89
    %p98 = scmp.eq.s32.totalorder %s20, 1
    %p99 = por %p97, %p98
    %p100 = scmp.ne.s32.totalorder %s89, %s90
    %p101 = scmp.eq.s32.totalorder %s20, 0
    %p102 = por %p100, %p101
    %p103 = scmp.ne.s32.totalorder %s89, %s90
    %p104 = scmp.eq.s32.totalorder %s21, 1
    %p105 = por %p103, %p104
    %p107 = scmp.ne.s32.totalorder %s90, %s106
    %p108 = scmp.eq.s32.totalorder %s21, 0
    %p109 = por %p107, %p108
    %s110 = ssub.s32 %s22, %s34
    %p111 = scmp.eq.s32.totalorder %s110, 0
    %s113 = sadd.s32 %s112, 1
    %s114 = scalar_select %p111, %s112, %s113
    %p117 = pneg %p111
    %p118 = scmp.eq.s32.totalorder %s15, 1
    %p119 = por %p117, %p118
    %p120 = scmp.ne.s32.totalorder %s112, %s115
    %p121 = scmp.eq.s32.totalorder %s15, 0
    %p122 = por %p120, %p121
    %p123 = scmp.ne.s32.totalorder %s112, %s115
    %p124 = scmp.eq.s32.totalorder %s20, 1
    %p125 = por %p123, %p124
    %p126 = scmp.ne.s32.totalorder %s115, %s116
    %p127 = scmp.eq.s32.totalorder %s20, 0
    %p128 = por %p126, %p127
    %p129 = scmp.ne.s32.totalorder %s115, %s116
    %p130 = scmp.eq.s32.totalorder %s21, 1
    %p131 = por %p129, %p130
    %p133 = scmp.ne.s32.totalorder %s116, %s132
    %p134 = scmp.eq.s32.totalorder %s21, 0
    %p135 = por %p133, %p134
    %s136 = ssub.s32 %s23, %s30
    %p137 = scmp.eq.s32.totalorder %s136, 0
    %s139 = sadd.s32 %s138, 1
    %s140 = scalar_select %p137, %s138, %s139
    %p143 = pneg %p137
    %p144 = scmp.eq.s32.totalorder %s15, 1
    %p145 = por %p143, %p144
    %p146 = scmp.ne.s32.totalorder %s138, %s141
    %p147 = scmp.eq.s32.totalorder %s15, 0
    %p148 = por %p146, %p147
    %p149 = scmp.ne.s32.totalorder %s138, %s141
    %p150 = scmp.eq.s32.totalorder %s20, 1
    %p151 = por %p149, %p150
    %p152 = scmp.ne.s32.totalorder %s141, %s142
    %p153 = scmp.eq.s32.totalorder %s20, 0
    %p154 = por %p152, %p153
    %p155 = scmp.ne.s32.totalorder %s141, %s142
    %p156 = scmp.eq.s32.totalorder %s21, 1
    %p157 = por %p155, %p156
    %p159 = scmp.ne.s32.totalorder %s142, %s158
    %p160 = scmp.eq.s32.totalorder %s21, 0
    %p161 = por %p159, %p160
    %s163 = sadd.s32 %s162, 1
    %p166 = scmp.eq.s32.totalorder %s15, 1
    %p167 = scmp.ne.s32.totalorder %s162, %s164
    %p168 = scmp.eq.s32.totalorder %s15, 0
    %p169 = por %p167, %p168
    %p170 = scmp.ne.s32.totalorder %s162, %s164
    %p171 = scmp.eq.s32.totalorder %s20, 1
    %p172 = por %p170, %p171
    %p173 = scmp.ne.s32.totalorder %s164, %s165
    %p174 = scmp.eq.s32.totalorder %s20, 0
    %p175 = por %p173, %p174
    %p176 = scmp.ne.s32.totalorder %s164, %s165
    %p177 = scmp.eq.s32.totalorder %s21, 1
    %p178 = por %p176, %p177
    %p180 = scmp.ne.s32.totalorder %s165, %s179
    %p181 = scmp.eq.s32.totalorder %s21, 0
    %p182 = por %p180, %p181
    %s184 = sadd.s32 %s183, 1
    %p187 = scmp.eq.s32.totalorder %s15, 1
    %p188 = scmp.ne.s32.totalorder %s183, %s185
    %p189 = scmp.eq.s32.totalorder %s15, 0
    %p190 = por %p188, %p189
    %p191 = scmp.ne.s32.totalorder %s183, %s185
    %p192 = scmp.eq.s32.totalorder %s20, 1
    %p193 = por %p191, %p192
    %p194 = scmp.ne.s32.totalorder %s185, %s186
    %p195 = scmp.eq.s32.totalorder %s20, 0
    %p196 = por %p194, %p195
    %p197 = scmp.ne.s32.totalorder %s185, %s186
    %p198 = scmp.eq.s32.totalorder %s21, 1
    %p199 = por %p197, %p198
    %p201 = scmp.ne.s32.totalorder %s186, %s200
    %p202 = scmp.eq.s32.totalorder %s21, 0
    %p203 = por %p201, %p202
    %s204 = ssub.s32 %s22, %s34
    %s205 = ssub.s32 %s23, %s30
    %s206 = sor.u32 %s204, %s205
    %p207 = scmp.eq.s32.totalorder %s206, 0
    %s209 = sadd.s32 %s208, 1
    %s210 = scalar_select %p207, %s208, %s209
    %p213 = pneg %p207
    %p214 = scmp.eq.s32.totalorder %s15, 1
    %p215 = por %p213, %p214
    %p216 = scmp.ne.s32.totalorder %s208, %s211
    %p217 = scmp.eq.s32.totalorder %s15, 0
    %p218 = por %p216, %p217
    %p219 = scmp.ne.s32.totalorder %s208, %s211
    %p220 = scmp.eq.s32.totalorder %s20, 1
    %p221 = por %p219, %p220
    %p222 = scmp.ne.s32.totalorder %s211, %s212
    %p223 = scmp.eq.s32.totalorder %s20, 0
    %p224 = por %p222, %p223
    %p225 = scmp.ne.s32.totalorder %s211, %s212
    %p226 = scmp.eq.s32.totalorder %s21, 1
    %p227 = por %p225, %p226
    %p229 = scmp.ne.s32.totalorder %s212, %s228
    %p230 = scmp.eq.s32.totalorder %s21, 0
    %p231 = por %p229, %p230
    %s232 = ssub.s32 %s22, %s34
    %s233 = ssub.s32 %s23, %s30
    %s234 = sor.u32 %s232, %s233
    %p235 = scmp.eq.s32.totalorder %s234, 0
    %s237 = sadd.s32 %s236, 1
    %s238 = scalar_select %p235, %s236, %s237
    %p241 = pneg %p235
    %p242 = scmp.eq.s32.totalorder %s15, 1
    %p243 = por %p241, %p242
    %p244 = scmp.ne.s32.totalorder %s236, %s239
    %p245 = scmp.eq.s32.totalorder %s15, 0
    %p246 = por %p244, %p245
    %p247 = scmp.ne.s32.totalorder %s236, %s239
    %p248 = scmp.eq.s32.totalorder %s20, 1
    %p249 = por %p247, %p248
    %p250 = scmp.ne.s32.totalorder %s239, %s240
    %p251 = scmp.eq.s32.totalorder %s20, 0
    %p252 = por %p250, %p251
    %p253 = scmp.ne.s32.totalorder %s239, %s240
    %p254 = scmp.eq.s32.totalorder %s21, 1
    %p255 = por %p253, %p254
    %p257 = scmp.ne.s32.totalorder %s240, %s256
    %p258 = scmp.eq.s32.totalorder %s21, 0
    %p259 = por %p257, %p258
    %p260 = scmp.le.s32.totalorder 1, %s15
    %p261 = scmp.lt.s32.totalorder %s15, 3
    %p262 = pnand %p260, %p261
    %p263 = pneg %p262
    // Predicated region
    $region9: #{encoder_forward.5} parent=5 // pred_check
      _
    $region10: #{encoder_forward.5} parent=5 // pred_check_branch
      %265 = sbr.rel (%p262) target = $region12
    $region11: #{encoder_forward.5} parent=5 // pred_region
      %s266 = ssub.s32 %s15, 1
      // Predicated region
      $region13: #{encoder_forward.5} parent=11 // pred_check
        %p267 = pneg %p76
      $region14: #{encoder_forward.5} parent=11 // pred_check_branch
        %269 = sbr.rel (%p267) target = $region16
      $region15: #{encoder_forward.5} parent=11 // pred_region
        _
      $region16: #{encoder_forward.5} parent=11 // pred_fallthru
        _
      // Predicated region
      $region17: #{encoder_forward.5} parent=11 // pred_check
        %p270 = pneg %p154
      $region18: #{encoder_forward.5} parent=11 // pred_check_branch
        %272 = sbr.rel (%p270) target = $region20
      $region19: #{encoder_forward.5} parent=11 // pred_region
        %p273 = scmp.lt.s32.totalorder %s25, 0
        %s274 = scalar_select %p273, %s25, 0
        %s275 = smul.addr %s274, 4
        %s276 = scalar_lea.vmem %s4, %s275
      $region20: #{encoder_forward.5} parent=11 // pred_fallthru
        _
      // Predicated region
      $region21: #{encoder_forward.5} parent=11 // pred_check
        %p277 = pneg %p175
      $region22: #{encoder_forward.5} parent=11 // pred_check_branch
        %279 = sbr.rel (%p277) target = $region24
      $region23: #{encoder_forward.5} parent=11 // pred_region
        _
      $region24: #{encoder_forward.5} parent=11 // pred_fallthru
        _
      // Predicated region
      $region25: #{encoder_forward.5} parent=11 // pred_check
        %p280 = pneg %p196
      $region26: #{encoder_forward.5} parent=11 // pred_check_branch
        %282 = sbr.rel (%p280) target = $region28
      $region27: #{encoder_forward.5} parent=11 // pred_region
        _
      $region28: #{encoder_forward.5} parent=11 // pred_fallthru
        _
    $region12: #{encoder_forward.5} parent=5 // pred_fallthru
      _
    %p283 = scmp.lt.s32.totalorder %s15, 2
    // Predicated region
    $region29: #{encoder_forward.5} parent=5 // pred_check
      %p284 = pneg %p283
    $region30: #{encoder_forward.5} parent=5 // pred_check_branch
      %286 = sbr.rel (%p284) target = $region32
    $region31: #{encoder_forward.5} parent=5 // pred_region
      // Predicated region
      $region33: #{encoder_forward.5} parent=31 // pred_check
        %p287 = pneg %p49
      $region34: #{encoder_forward.5} parent=31 // pred_check_branch
        %289 = sbr.rel (%p287) target = $region36
      $region35: #{encoder_forward.5} parent=31 // pred_region
        %p290 = scmp.lt.s32.totalorder %s22, 1
        %s291 = scalar_select %p290, %s22, 1
        %p292 = scmp.lt.s32.totalorder %s23, 0
        %s293 = scalar_select %p292, %s23, 0
        %s294 = smul.addr %s291, 24
        %s295 = sadd.s32 %s293, %s294
        %s296 = smul.addr %s295, 4
        %s297 = scalar_lea.vmem %s0, %s296
      $region36: #{encoder_forward.5} parent=31 // pred_fallthru
        _
      // Predicated region
      $region37: #{encoder_forward.5} parent=31 // pred_check
        %p298 = pneg %p96
      $region38: #{encoder_forward.5} parent=31 // pred_check_branch
        %300 = sbr.rel (%p298) target = $region40
      $region39: #{encoder_forward.5} parent=31 // pred_region
        %p301 = scmp.lt.s32.totalorder %s22, 1
        %s302 = scalar_select %p301, %s22, 1
        %s303 = smul.addr %s302, 4
        %s304 = smul.addr %s303, 8
        %s305 = scalar_lea.vmem %s2, %s304
      $region40: #{encoder_forward.5} parent=31 // pred_fallthru
        _
      // Predicated region
      $region41: #{encoder_forward.5} parent=31 // pred_check
        %p306 = pneg %p122
      $region42: #{encoder_forward.5} parent=31 // pred_check_branch
        %308 = sbr.rel (%p306) target = $region44
      $region43: #{encoder_forward.5} parent=31 // pred_region
        %p309 = scmp.lt.s32.totalorder %s22, 1
        %s310 = scalar_select %p309, %s22, 1
        %s311 = smul.addr %s310, 4
        %s312 = smul.addr %s311, 8
        %s313 = scalar_lea.vmem %s3, %s312
      $region44: #{encoder_forward.5} parent=31 // pred_fallthru
        _
    $region32: #{encoder_forward.5} parent=5 // pred_fallthru
      _
    %p314 = scmp.le.s32.totalorder 1, %s15
    %p315 = scmp.lt.s32.totalorder %s15, 3
    %p316 = pnand %p314, %p315
    %p317 = pneg %p316
    // Predicated region
    $region45: #{encoder_forward.5} parent=5 // pred_check
      _
    $region46: #{encoder_forward.5} parent=5 // pred_check_branch
      %319 = sbr.rel (%p316) target = $region48
    $region47: #{encoder_forward.5} parent=5 // pred_region
      %s320 = ssub.s32 %s15, 1
      %p321 = scmp.lt.s32.totalorder %s24, 1
      %s322 = scalar_select %p321, %s24, 1
      %p323 = scmp.lt.s32.totalorder %s25, 0
      %s324 = scalar_select %p323, %s25, 0
      %s325 = smul.addr %s322, 24
      %s326 = sadd.s32 %s324, %s325
      %s327 = smul.addr %s326, 4
      %s328 = scalar_lea.vmem %s0, %s327
      %p329 = pneg %p55
      %p330 = pneg %p52
      %p331 = pneg %p76
      %p332 = pneg %p73
      %p333 = scmp.lt.s32.totalorder %s24, 1
      %s334 = scalar_select %p333, %s24, 1
      %s335 = smul.addr %s334, 4
      %s336 = smul.addr %s335, 8
      %s337 = scalar_lea.vmem %s2, %s336
      %p338 = pneg %p102
      %p339 = pneg %p99
      %p340 = scmp.lt.s32.totalorder %s24, 1
      %s341 = scalar_select %p340, %s24, 1
      %s342 = smul.addr %s341, 4
      %s343 = smul.addr %s342, 8
      %s344 = scalar_lea.vmem %s3, %s343
      %p345 = pneg %p128
      %p346 = pneg %p125
      %p347 = scmp.lt.s32.totalorder %s25, 0
      %s348 = scalar_select %p347, %s25, 0
      %s349 = smul.addr %s348, 4
      %s350 = scalar_lea.vmem %s4, %s349
      %p351 = pneg %p154
      %p352 = pneg %p151
      %p353 = pneg %p175
      %p354 = pneg %p172
      %p355 = pneg %p196
      %p356 = pneg %p193
      %p357 = pneg %p224
      %p358 = pneg %p221
      %p359 = scmp.lt.s32.totalorder %s24, 1
      %s360 = scalar_select %p359, %s24, 1
      %p361 = scmp.lt.s32.totalorder %s25, 0
      %s362 = scalar_select %p361, %s25, 0
      %s363 = smul.addr %s360, 8
      %s364 = sadd.s32 %s362, %s363
      %s365 = smul.addr %s364, 4
      %s366 = scalar_lea.vmem %s7, %s365
      %p367 = pneg %p252
      %p368 = pneg %p249
      %p369 = scmp.lt.s32.totalorder %s24, 1
      %s370 = scalar_select %p369, %s24, 1
      %p371 = scmp.lt.s32.totalorder %s25, 0
      %s372 = scalar_select %p371, %s25, 0
      %s373 = smul.addr %s372, 2
      %s374 = smul.addr %s370, 2
      %s375 = sadd.s32 %s373, %s374
      %s376 = smul.addr %s375, 8
      %s377 = scalar_lea.vmem %s8, %s376
      %p378 = scmp.lt.s32.totalorder %s24, 1
      %s379 = scalar_select %p378, %s24, 1
      %p380 = scmp.lt.s32.totalorder %s25, 0
      %s381 = scalar_select %p380, %s25, 0
      %s382 = smul.addr %s379, 24
      %s383 = sadd.s32 %s381, %s382
      %s384 = smul.addr %s383, 4
      %s385 = scalar_lea.vmem %s0, %s384
      %p386 = scmp.lt.s32.totalorder %s24, 1
      %s387 = scalar_select %p386, %s24, 1
      %s388 = smul.addr %s387, 4
      %s389 = smul.addr %s388, 8
      %s390 = scalar_lea.vmem %s2, %s389
      %p391 = scmp.lt.s32.totalorder %s24, 1
      %s392 = scalar_select %p391, %s24, 1
      %s393 = smul.addr %s392, 4
      %s394 = smul.addr %s393, 8
      %s395 = scalar_lea.vmem %s3, %s394
      %p396 = scmp.lt.s32.totalorder %s25, 0
      %s397 = scalar_select %p396, %s25, 0
      %s398 = smul.addr %s397, 4
      %s399 = scalar_lea.vmem %s4, %s398
      %p400 = scmp.lt.s32.totalorder %s24, 1
      %s401 = scalar_select %p400, %s24, 1
      %p402 = scmp.lt.s32.totalorder %s25, 0
      %s403 = scalar_select %p402, %s25, 0
      %s404 = smul.addr %s401, 8
      %s405 = sadd.s32 %s403, %s404
      %s406 = smul.addr %s405, 4
      %s407 = scalar_lea.vmem %s7, %s406
      %p408 = scmp.lt.s32.totalorder %s24, 1
      %s409 = scalar_select %p408, %s24, 1
      %p410 = scmp.lt.s32.totalorder %s25, 0
      %s411 = scalar_select %p410, %s25, 0
      %s412 = smul.addr %s411, 2
      %s413 = smul.addr %s409, 2
      %s414 = sadd.s32 %s412, %s413
      %s415 = smul.addr %s414, 8
      %s416 = scalar_lea.vmem %s8, %s415
      %v418 = vld [vmem:[%s385] sm:$0xf]
      %v419 = vld [vmem:[%s385 + $0x4] sm:$0xf]
      %v420 = vld [vmem:[%s385 + $0x8] sm:$0xf]
      %v421 = vld [vmem:[%s385 + $0xc] sm:$0xf]
      %v422 = vunpack.c.l.bf16 %v418
      %v423 = vunpack.c.l.bf16 %v419
      %v424 = vunpack.c.l.bf16 %v420
      %v425 = vunpack.c.l.bf16 %v421
      %v426 = vld [vmem:[%s390] sm:$0xff]
      %v427 = vld [vmem:[%s390 + $0x8] sm:$0xff]
      %v428 = vld [vmem:[%s390 + $0x10] sm:$0xff]
      %v429 = vld [vmem:[%s390 + $0x18] sm:$0xff]
      %431 = vset.pattern.permute.xlu0 0
      %432 = vperm.xlu0 %431, %v426
      %v433 = vpop.permute.xlu0 %432
      %436 = vset.pattern.permute.xlu0 0
      %437 = vperm.xlu0 %436, %v427
      %v438 = vpop.permute.xlu0 %437
      %441 = vset.pattern.permute.xlu0 0
      %442 = vperm.xlu0 %441, %v428
      %v443 = vpop.permute.xlu0 %442
      %446 = vset.pattern.permute.xlu0 0
      %447 = vperm.xlu0 %446, %v429
      %v448 = vpop.permute.xlu0 %447
      %v450 = vmul.f32 %v422, %v433
      %v451 = vmul.f32 %v423, %v438
      %v452 = vmul.f32 %v424, %v443
      %v453 = vmul.f32 %v425, %v448
      %v454 = vld [vmem:[%s395] sm:$0xff]
      %v455 = vld [vmem:[%s395 + $0x8] sm:$0xff]
      %v456 = vld [vmem:[%s395 + $0x10] sm:$0xff]
      %v457 = vld [vmem:[%s395 + $0x18] sm:$0xff]
      %459 = vset.pattern.permute.xlu0 0
      %460 = vperm.xlu0 %459, %v454
      %v461 = vpop.permute.xlu0 %460
      %464 = vset.pattern.permute.xlu0 0
      %465 = vperm.xlu0 %464, %v455
      %v466 = vpop.permute.xlu0 %465
      %469 = vset.pattern.permute.xlu0 0
      %470 = vperm.xlu0 %469, %v456
      %v471 = vpop.permute.xlu0 %470
      %474 = vset.pattern.permute.xlu0 0
      %475 = vperm.xlu0 %474, %v457
      %v476 = vpop.permute.xlu0 %475
      %v478 = vadd.f32 %v450, %v461
      %v479 = vadd.f32 %v451, %v466
      %v480 = vadd.f32 %v452, %v471
      %v481 = vadd.f32 %v453, %v476
      %v482 = vmax.f32 %v478, 0.0
      %v483 = vmax.f32 %v479, 0.0
      %v484 = vmax.f32 %v480, 0.0
      %v485 = vmax.f32 %v481, 0.0
      %s486 = scalar_lea.vmem %s385, 16
      %v487 = vld [vmem:[%s486] sm:$0xf]
      %v488 = vld [vmem:[%s486 + $0x4] sm:$0xf]
      %v489 = vld [vmem:[%s486 + $0x8] sm:$0xf]
      %v490 = vld [vmem:[%s486 + $0xc] sm:$0xf]
      %v491 = vunpack.c.l.bf16 %v487
      %v492 = vunpack.c.l.bf16 %v488
      %v493 = vunpack.c.l.bf16 %v489
      %v494 = vunpack.c.l.bf16 %v490
      %v495 = vmul.f32 %v491, %v433
      %v496 = vmul.f32 %v492, %v438
      %v497 = vmul.f32 %v493, %v443
      %v498 = vmul.f32 %v494, %v448
      %v499 = vadd.f32 %v495, %v461
      %v500 = vadd.f32 %v496, %v466
      %v501 = vadd.f32 %v497, %v471
      %v502 = vadd.f32 %v498, %v476
      %v503 = vmax.f32 %v499, 0.0
      %v504 = vmax.f32 %v500, 0.0
      %v505 = vmax.f32 %v501, 0.0
      %v506 = vmax.f32 %v502, 0.0
      %s507 = scalar_lea.vmem %s385, 32
      %v508 = vld [vmem:[%s507] sm:$0xf]
      %v509 = vld [vmem:[%s507 + $0x4] sm:$0xf]
      %v510 = vld [vmem:[%s507 + $0x8] sm:$0xf]
      %v511 = vld [vmem:[%s507 + $0xc] sm:$0xf]
      %v512 = vunpack.c.l.bf16 %v508
      %v513 = vunpack.c.l.bf16 %v509
      %v514 = vunpack.c.l.bf16 %v510
      %v515 = vunpack.c.l.bf16 %v511
      %v516 = vmul.f32 %v512, %v433
      %v517 = vmul.f32 %v513, %v438
      %v518 = vmul.f32 %v514, %v443
      %v519 = vmul.f32 %v515, %v448
      %v520 = vadd.f32 %v516, %v461
      %v521 = vadd.f32 %v517, %v466
      %v522 = vadd.f32 %v518, %v471
      %v523 = vadd.f32 %v519, %v476
      %v524 = vmax.f32 %v520, 0.0
      %v525 = vmax.f32 %v521, 0.0
      %v526 = vmax.f32 %v522, 0.0
      %v527 = vmax.f32 %v523, 0.0
      %s528 = scalar_lea.vmem %s385, 48
      %v529 = vld [vmem:[%s528] sm:$0xf]
      %v530 = vld [vmem:[%s528 + $0x4] sm:$0xf]
      %v531 = vld [vmem:[%s528 + $0x8] sm:$0xf]
      %v532 = vld [vmem:[%s528 + $0xc] sm:$0xf]
      %v533 = vunpack.c.l.bf16 %v529
      %v534 = vunpack.c.l.bf16 %v530
      %v535 = vunpack.c.l.bf16 %v531
      %v536 = vunpack.c.l.bf16 %v532
      %v537 = vmul.f32 %v533, %v433
      %v538 = vmul.f32 %v534, %v438
      %v539 = vmul.f32 %v535, %v443
      %v540 = vmul.f32 %v536, %v448
      %v541 = vadd.f32 %v537, %v461
      %v542 = vadd.f32 %v538, %v466
      %v543 = vadd.f32 %v539, %v471
      %v544 = vadd.f32 %v540, %v476
      %v545 = vmax.f32 %v541, 0.0
      %v546 = vmax.f32 %v542, 0.0
      %v547 = vmax.f32 %v543, 0.0
      %v548 = vmax.f32 %v544, 0.0
      %s549 = scalar_lea.vmem %s385, 64
      %v550 = vld [vmem:[%s549] sm:$0xf]
      %v551 = vld [vmem:[%s549 + $0x4] sm:$0xf]
      %v552 = vld [vmem:[%s549 + $0x8] sm:$0xf]
      %v553 = vld [vmem:[%s549 + $0xc] sm:$0xf]
      %v554 = vunpack.c.l.bf16 %v550
      %v555 = vunpack.c.l.bf16 %v551
      %v556 = vunpack.c.l.bf16 %v552
      %v557 = vunpack.c.l.bf16 %v553
      %v558 = vmul.f32 %v554, %v433
      %v559 = vmul.f32 %v555, %v438
      %v560 = vmul.f32 %v556, %v443
      %v561 = vmul.f32 %v557, %v448
      %v562 = vadd.f32 %v558, %v461
      %v563 = vadd.f32 %v559, %v466
      %v564 = vadd.f32 %v560, %v471
      %v565 = vadd.f32 %v561, %v476
      %v566 = vmax.f32 %v562, 0.0
      %v567 = vmax.f32 %v563, 0.0
      %v568 = vmax.f32 %v564, 0.0
      %v569 = vmax.f32 %v565, 0.0
      %s570 = scalar_lea.vmem %s385, 80
      %v571 = vld [vmem:[%s570] sm:$0xf]
      %v572 = vld [vmem:[%s570 + $0x4] sm:$0xf]
      %v573 = vld [vmem:[%s570 + $0x8] sm:$0xf]
      %v574 = vld [vmem:[%s570 + $0xc] sm:$0xf]
      %v575 = vunpack.c.l.bf16 %v571
      %v576 = vunpack.c.l.bf16 %v572
      %v577 = vunpack.c.l.bf16 %v573
      %v578 = vunpack.c.l.bf16 %v574
      %v579 = vmul.f32 %v575, %v433
      %v580 = vmul.f32 %v576, %v438
      %v581 = vmul.f32 %v577, %v443
      %v582 = vmul.f32 %v578, %v448
      %v583 = vadd.f32 %v579, %v461
      %v584 = vadd.f32 %v580, %v466
      %v585 = vadd.f32 %v581, %v471
      %v586 = vadd.f32 %v582, %v476
      %v587 = vmax.f32 %v583, 0.0
      %v588 = vmax.f32 %v584, 0.0
      %v589 = vmax.f32 %v585, 0.0
      %v590 = vmax.f32 %v586, 0.0
      %v591 = vld [vmem:[%s399] sm:$0x1]
      %v592 = vld [vmem:[%s399 + $0x1] sm:$0x1]
      %v593 = vld [vmem:[%s399 + $0x2] sm:$0x1]
      %598 = vrot.lane.b32.xlu0 %v587, 1
      %v599 = vpop.permute.xlu0 %598
      %600 = vrot.lane.b32.xlu0 %v588, 1
      %v601 = vpop.permute.xlu0 %600
      %602 = vrot.lane.b32.xlu0 %v589, 1
      %v603 = vpop.permute.xlu0 %602
      %604 = vrot.lane.b32.xlu0 %v590, 1
      %v605 = vpop.permute.xlu0 %604
      %vm610 = vcmask 7168
      %v611 = vsel %vm610, %v587, %v599
      %v612 = vsel %vm610, %v588, %v601
      %v613 = vsel %vm610, %v589, %v603
      %v614 = vsel %vm610, %v590, %v605
      %v615 = vlaneseq
      %v616 = vshrl.u32 %v615, 7
      %v617 = vsub.s32 0, %v616
      %v618 = vrot.slane %v593, %v617
      %v619 = vmul.f32 %v611, %v618
      %v620 = vmul.f32 %v612, %v618
      %v621 = vmul.f32 %v613, %v618
      %v622 = vmul.f32 %v614, %v618
      %v623 = vlaneseq
      %v624 = vshrl.u32 %v623, 7
      %v625 = vsub.s32 0, %v624
      %v626 = vrot.slane %v592, %v625
      %v627 = vmul.f32 %v566, %v626
      %v628 = vmul.f32 %v567, %v626
      %v629 = vmul.f32 %v568, %v626
      %v630 = vmul.f32 %v569, %v626
      %v631 = vmul.f32 %v587, %v626
      %v632 = vmul.f32 %v588, %v626
      %v633 = vmul.f32 %v589, %v626
      %v634 = vmul.f32 %v590, %v626
      %639 = vrot.lane.b32.xlu0 %v503, 1
      %v640 = vpop.permute.xlu0 %639
      %641 = vrot.lane.b32.xlu0 %v504, 1
      %v642 = vpop.permute.xlu0 %641
      %643 = vrot.lane.b32.xlu0 %v505, 1
      %v644 = vpop.permute.xlu0 %643
      %645 = vrot.lane.b32.xlu0 %v506, 1
      %v646 = vpop.permute.xlu0 %645
      %v651 = vsel %vm610, %v503, %v640
      %v652 = vsel %vm610, %v504, %v642
      %v653 = vsel %vm610, %v505, %v644
      %v654 = vsel %vm610, %v506, %v646
      %v655 = vlaneseq
      %v656 = vshrl.u32 %v655, 7
      %v657 = vsub.s32 0, %v656
      %v658 = vrot.slane %v591, %v657
      %v659 = vmul.f32 %v651, %v658
      %v660 = vmul.f32 %v652, %v658
      %v661 = vmul.f32 %v653, %v658
      %v662 = vmul.f32 %v654, %v658
      %667 = vrot.lane.b32.xlu0 %v545, 1
      %v668 = vpop.permute.xlu0 %667
      %669 = vrot.lane.b32.xlu0 %v546, 1
      %v670 = vpop.permute.xlu0 %669
      %671 = vrot.lane.b32.xlu0 %v547, 1
      %v672 = vpop.permute.xlu0 %671
      %673 = vrot.lane.b32.xlu0 %v548, 1
      %v674 = vpop.permute.xlu0 %673
      %v679 = vsel %vm610, %v545, %v668
      %v680 = vsel %vm610, %v546, %v670
      %v681 = vsel %vm610, %v547, %v672
      %v682 = vsel %vm610, %v548, %v674
      %v683 = vmul.f32 %v679, %v658
      %v684 = vmul.f32 %v680, %v658
      %v685 = vmul.f32 %v681, %v658
      %v686 = vmul.f32 %v682, %v658
      %v687 = vpack.c.bf16 %v620, %v619
      %v688 = vpack.c.bf16 %v622, %v621
      %v689 = vpack.c.bf16 %v628, %v627
      %v690 = vpack.c.bf16 %v630, %v629
      %v691 = vpack.c.bf16 %v632, %v631
      %v692 = vpack.c.bf16 %v634, %v633
      %v693 = vpack.c.bf16 %v660, %v659
      %v694 = vpack.c.bf16 %v662, %v661
      %v695 = vpack.c.bf16 %v483, %v482
      %v696 = vpack.c.bf16 %v485, %v484
      %v697 = vpack.c.bf16 %v504, %v503
      %v698 = vpack.c.bf16 %v506, %v505
      %v699 = vpack.c.bf16 %v684, %v683
      %v700 = vpack.c.bf16 %v686, %v685
      %v701 = vpack.c.bf16 %v525, %v524
      %v702 = vpack.c.bf16 %v527, %v526
      %v703 = vpack.c.bf16 %v546, %v545
      %v704 = vpack.c.bf16 %v548, %v547
      %v705 = vld [vmem:[%s1] sm:$0xff]
      %v706 = vld [vmem:[%s1 + $0x8] sm:$0xf]
      %v707 = vld [vmem:[%s1 + $0xc] sm:$0xff]
      %v708 = vld [vmem:[%s1 + $0x14] sm:$0xf]
      %v709 = vld [vmem:[%s1 + $0x18] sm:$0xff]
      %v710 = vld [vmem:[%s1 + $0x20] sm:$0xf]
      %v711 = vld [vmem:[%s1 + $0x24] sm:$0xff]
      %v712 = vld [vmem:[%s1 + $0x2c] sm:$0xf]
      %v713 = vld [vmem:[%s1 + $0x30] sm:$0xff]
      %v714 = vld [vmem:[%s1 + $0x38] sm:$0xf]
      %v715 = vld [vmem:[%s1 + $0x3c] sm:$0xff]
      %v716 = vld [vmem:[%s1 + $0x44] sm:$0xf]
      %v717 = vld [vmem:[%s1 + $0x48] sm:$0xff]
      %v718 = vld [vmem:[%s1 + $0x50] sm:$0xf]
      %v719 = vld [vmem:[%s1 + $0x54] sm:$0xff]
      %v720 = vld [vmem:[%s1 + $0x5c] sm:$0xf]
      %v737 = vunpack.c.l.b16 %v705
      %v738 = vunpack.c.h.b16 %v705
      %v739 = vunpack.c.l.b16 %v706
      %v740 = vunpack.c.l.b16 %v707
      %v741 = vunpack.c.h.b16 %v707
      %v742 = vunpack.c.l.b16 %v708
      %v743 = vunpack.c.l.b16 %v709
      %v744 = vunpack.c.h.b16 %v709
      %v745 = vunpack.c.l.b16 %v710
      %v746 = vunpack.c.l.b16 %v711
      %v747 = vunpack.c.h.b16 %v711
      %v748 = vunpack.c.l.b16 %v712
      %v749 = vunpack.c.l.b16 %v713
      %v750 = vunpack.c.h.b16 %v713
      %v751 = vunpack.c.l.b16 %v714
      %v752 = vunpack.c.l.b16 %v715
      %v753 = vunpack.c.h.b16 %v715
      %v754 = vunpack.c.l.b16 %v716
      %v755 = vunpack.c.l.b16 %v717
      %v756 = vunpack.c.h.b16 %v717
      %v757 = vunpack.c.l.b16 %v718
      %v758 = vunpack.c.l.b16 %v719
      %v759 = vunpack.c.h.b16 %v719
      %v760 = vunpack.c.l.b16 %v720
      %v761 = vpack.c.b16 %v740, %v737
      %v762 = vpack.c.b16 %v741, %v738
      %v763 = vpack.c.b16 %v742, %v739
      %v764 = vpack.c.b16 %v746, %v743
      %v765 = vpack.c.b16 %v747, %v744
      %v766 = vpack.c.b16 %v748, %v745
      %v767 = vpack.c.b16 %v752, %v749
      %v768 = vpack.c.b16 %v753, %v750
      %v769 = vpack.c.b16 %v754, %v751
      %v770 = vpack.c.b16 %v758, %v755
      %v771 = vpack.c.b16 %v759, %v756
      %v772 = vpack.c.b16 %v760, %v757
      %vm781 = vcmask 261120
      %v783 = vsel %vm781, %v763, 0
      %v786 = vsel %vm781, %v766, 0
      %v789 = vsel %vm781, %v769, 0
      %v792 = vsel %vm781, %v772, 0
      %794 = vmatprep.subr.bf16.mxu0 0
      %795 = vmatpush1.bf16.msra.mxu0 %v687
      %796 = vmatprep.subr.bf16.mxu0 0
      %797 = vmatpush1.bf16.msra.mxu0 %v688
      %798 = vmatprep.subr.bf16.mxu0 0
      %799 = vmatpush1.bf16.msra.mxu0 %v689
      %800 = vmatprep.subr.bf16.mxu0 0
      %801 = vmatpush1.bf16.msra.mxu0 %v690
      %802 = vmatprep.subr.bf16.mxu0 0
      %803 = vmatpush1.bf16.msra.mxu0 %v691
      %804 = vmatprep.subr.bf16.mxu0 0
      %805 = vmatpush1.bf16.msra.mxu0 %v692
      %806 = vmatprep.subr.bf16.mxu0 0
      %807 = vmatpush1.bf16.msra.mxu0 %v693
      %808 = vmatprep.subr.bf16.mxu0 0
      %809 = vmatpush1.bf16.msra.mxu0 %v694
      %810 = vmatprep.subr.bf16.mxu0 0
      %811 = vmatpush1.bf16.msra.mxu0 %v695
      %812 = vmatprep.subr.bf16.mxu0 0
      %813 = vmatpush1.bf16.msra.mxu0 %v696
      %814 = vmatprep.subr.bf16.mxu0 0
      %815 = vmatpush1.bf16.msra.mxu0 %v697
      %816 = vmatprep.subr.bf16.mxu0 0
      %817 = vmatpush1.bf16.msra.mxu0 %v698
      %818 = vmatprep.subr.bf16.mxu0 0
      %819 = vmatpush1.bf16.msra.mxu0 %v699
      %820 = vmatprep.subr.bf16.mxu0 0
      %821 = vmatpush1.bf16.msra.mxu0 %v700
      %822 = vmatprep.subr.bf16.mxu0 0
      %823 = vmatpush1.bf16.msra.mxu0 %v701
      %824 = vmatprep.subr.bf16.mxu0 0
      %825 = vmatpush1.bf16.msra.mxu0 %v702
      %826 = vmatprep.mubr.bf16.mxu0 %v762
      %827 = vmatmul.mubr.bf16.gmra.mrb[0].mxu0 %v761
      %v828 = vpop.f32.mrb[0].mxu0
      %v829 = vadd.f32 0.0, %v828
      %v830 = vpop.f32.mrb[0].mxu0
      %v831 = vpop.f32.mrb[0].mxu0
      %v832 = vadd.f32 0.0, %v831
      %v833 = vpop.f32.mrb[0].mxu0
      %834 = vmatprep.mubr.bf16.mxu0 %v765
      %835 = vmatmul.mubr.bf16.gmra.mrb[0].mxu0 %v764
      %v836 = vpop.f32.mrb[0].mxu0
      %v837 = vadd.f32 0.0, %v836
      %v838 = vpop.f32.mrb[0].mxu0
      %v839 = vpop.f32.mrb[0].mxu0
      %v840 = vadd.f32 0.0, %v839
      %v841 = vpop.f32.mrb[0].mxu0
      %842 = vmatprep.mubr.bf16.mxu0 %v768
      %843 = vmatmul.mubr.bf16.gmra.mrb[0].mxu0 %v767
      %v844 = vpop.f32.mrb[0].mxu0
      %v845 = vadd.f32 0.0, %v844
      %v846 = vpop.f32.mrb[0].mxu0
      %v847 = vpop.f32.mrb[0].mxu0
      %v848 = vadd.f32 0.0, %v847
      %v849 = vpop.f32.mrb[0].mxu0
      %850 = vmatprep.mubr.bf16.mxu0 %v771
      %851 = vmatmul.mubr.bf16.gmra.mrb[0].mxu0 %v770
      %v852 = vpop.f32.mrb[0].mxu0
      %v853 = vadd.f32 0.0, %v852
      %v854 = vpop.f32.mrb[0].mxu0
      %v855 = vpop.f32.mrb[0].mxu0
      %v856 = vadd.f32 0.0, %v855
      %v857 = vpop.f32.mrb[0].mxu0
      %858 = vdwg.mxu0
      %859 = vmatprep.subr.bf16.mxu0 0
      %860 = vmatpush1.bf16.msra.mxu0 %v703
      %861 = vmatprep.subr.bf16.mxu0 0
      %862 = vmatpush1.bf16.msra.mxu0 %v704
      %863 = vmatprep.subr.bf16.mxu0 0
      %864 = vmatpush1.bf16.msra.mxu0 0
      %865 = vmatprep.subr.bf16.mxu0 0
      %866 = vmatpush1.bf16.msra.mxu0 0
      %867 = vmatprep.subr.bf16.mxu0 0
      %868 = vmatpush1.bf16.msra.mxu0 0
      %869 = vmatprep.subr.bf16.mxu0 0
      %870 = vmatpush1.bf16.msra.mxu0 0
      %871 = vmatprep.subr.bf16.mxu0 0
      %872 = vmatpush1.bf16.msra.mxu0 0
      %873 = vmatprep.subr.bf16.mxu0 0
      %874 = vmatpush1.bf16.msra.mxu0 0
      %875 = vmatprep.subr.bf16.mxu0 0
      %876 = vmatpush1.bf16.msra.mxu0 0
      %877 = vmatprep.subr.bf16.mxu0 0
      %878 = vmatpush1.bf16.msra.mxu0 0
      %879 = vmatprep.subr.bf16.mxu0 0
      %880 = vmatpush1.bf16.msra.mxu0 0
      %881 = vmatprep.subr.bf16.mxu0 0
      %882 = vmatpush1.bf16.msra.mxu0 0
      %883 = vmatprep.subr.bf16.mxu0 0
      %884 = vmatpush1.bf16.msra.mxu0 0
      %885 = vmatprep.subr.bf16.mxu0 0
      %886 = vmatpush1.bf16.msra.mxu0 0
      %887 = vmatprep.subr.bf16.mxu0 0
      %888 = vmatpush1.bf16.msra.mxu0 0
      %889 = vmatprep.subr.bf16.mxu0 0
      %890 = vmatpush1.bf16.msra.mxu0 0
      %891 = vmatprep.mubr.bf16.mxu0 0
      %892 = vmatmul.mubr.bf16.gmra.mrb[0].mxu0 %v783
      %v893 = vpop.f32.mrb[0].mxu0
      %v894 = vadd.f32 %v829, %v893
      %v895 = vpop.f32.mrb[0].mxu0
      %v896 = vpop.f32.mrb[0].mxu0
      %v897 = vadd.f32 %v832, %v896
      %v898 = vpop.f32.mrb[0].mxu0
      %899 = vmatprep.mubr.bf16.mxu0 0
      %900 = vmatmul.mubr.bf16.gmra.mrb[0].mxu0 %v786
      %v901 = vpop.f32.mrb[0].mxu0
      %v902 = vadd.f32 %v837, %v901
      %v903 = vpop.f32.mrb[0].mxu0
      %v904 = vpop.f32.mrb[0].mxu0
      %v905 = vadd.f32 %v840, %v904
      %v906 = vpop.f32.mrb[0].mxu0
      %907 = vmatprep.mubr.bf16.mxu0 0
      %908 = vmatmul.mubr.bf16.gmra.mrb[0].mxu0 %v789
      %v909 = vpop.f32.mrb[0].mxu0
      %v910 = vadd.f32 %v845, %v909
      %v911 = vpop.f32.mrb[0].mxu0
      %v912 = vpop.f32.mrb[0].mxu0
      %v913 = vadd.f32 %v848, %v912
      %v914 = vpop.f32.mrb[0].mxu0
      %915 = vmatprep.mubr.bf16.mxu0 0
      %916 = vmatmul.mubr.bf16.gmra.mrb[0].mxu0 %v792
      %v917 = vpop.f32.mrb[0].mxu0
      %v918 = vadd.f32 %v853, %v917
      %v919 = vpop.f32.mrb[0].mxu0
      %v920 = vpop.f32.mrb[0].mxu0
      %v921 = vadd.f32 %v856, %v920
      %v922 = vpop.f32.mrb[0].mxu0
      %923 = vdwg.mxu0
      %v924 = vpack.c.bf16 %v897, %v894
      %v925 = vpack.c.bf16 %v905, %v902
      %v926 = vpack.c.bf16 %v913, %v910
      %v927 = vpack.c.bf16 %v921, %v918
      %v932 = vunpack.c.l.b16 %v924
      %v933 = vunpack.c.h.b16 %v924
      %v934 = vunpack.c.l.b16 %v925
      %v935 = vunpack.c.h.b16 %v925
      %v936 = vunpack.c.l.b16 %v926
      %v937 = vunpack.c.h.b16 %v926
      %v938 = vunpack.c.l.b16 %v927
      %v939 = vunpack.c.h.b16 %v927
      %v940 = vpack.c.b16 %v932, %v932
      %v941 = vpack.c.b16 %v933, %v933
      %v942 = vpack.c.b16 %v934, %v934
      %v943 = vpack.c.b16 %v935, %v935
      %v944 = vpack.c.b16 %v936, %v936
      %v945 = vpack.c.b16 %v937, %v937
      %v946 = vpack.c.b16 %v938, %v938
      %v947 = vpack.c.b16 %v939, %v939
      %vm956 = vcmask 125952
      %957 = vst.msk [vmem:[%s407] sm:$0xf] %vm956, %v940
      %958 = vst.msk [vmem:[%s407 + $0x4] sm:$0xf] %vm956, %v941
      %959 = vst.msk [vmem:[%s407 + $0x8] sm:$0xf] %vm956, %v942
      %960 = vst.msk [vmem:[%s407 + $0xc] sm:$0xf] %vm956, %v943
      %961 = vst.msk [vmem:[%s407 + $0x10] sm:$0xf] %vm956, %v944
      %962 = vst.msk [vmem:[%s407 + $0x14] sm:$0xf] %vm956, %v945
      %963 = vst.msk [vmem:[%s407 + $0x18] sm:$0xf] %vm956, %v946
      %964 = vst.msk [vmem:[%s407 + $0x1c] sm:$0xf] %vm956, %v947
      %v965 = vld [vmem:[%s5] sm:$0xff]
      %vm966 = vcmask 523264
      %v968 = vsel %vm966, %v965, 0
      %970 = vmatprep.subr.mxu0 0.0
      %971 = vmatpush1.msra.mxu0 %v894
      %972 = vmatprep.subr.mxu0 0.0
      %973 = vmatpush1.msra.mxu0 %v897
      %974 = vmatprep.subr.mxu0 0.0
      %975 = vmatpush1.msra.mxu0 %v902
      %976 = vmatprep.subr.mxu0 0.0
      %977 = vmatpush1.msra.mxu0 %v905
      %978 = vmatprep.subr.mxu0 0.0
      %979 = vmatpush1.msra.mxu0 %v910
      %980 = vmatprep.subr.mxu0 0.0
      %981 = vmatpush1.msra.mxu0 %v913
      %982 = vmatprep.subr.mxu0 0.0
      %983 = vmatpush1.msra.mxu0 %v918
      %984 = vmatprep.subr.mxu0 0.0
      %985 = vmatpush1.msra.mxu0 %v921
      %986 = vmatprep.subr.mxu0 0.0
      %987 = vmatpush1.msra.mxu0 0.0
      %988 = vmatprep.subr.mxu0 0.0
      %989 = vmatpush1.msra.mxu0 0.0
      %990 = vmatprep.subr.mxu0 0.0
      %991 = vmatpush1.msra.mxu0 0.0
      %992 = vmatprep.subr.mxu0 0.0
      %993 = vmatpush1.msra.mxu0 0.0
      %994 = vmatprep.subr.mxu0 0.0
      %995 = vmatpush1.msra.mxu0 0.0
      %996 = vmatprep.subr.mxu0 0.0
      %997 = vmatpush1.msra.mxu0 0.0
      %998 = vmatprep.subr.mxu0 0.0
      %999 = vmatpush1.msra.mxu0 0.0
      %1000 = vmatprep.subr.mxu0 0.0
      %1001 = vmatpush1.msra.mxu0 0.0
      %1002 = vmatprep.subr.mxu0 0.0
      %1003 = vmatpush1.msra.mxu0 0.0
      %1004 = vmatprep.subr.mxu0 0.0
      %1005 = vmatpush1.msra.mxu0 0.0
      %1006 = vmatprep.subr.mxu0 0.0
      %1007 = vmatpush1.msra.mxu0 0.0
      %1008 = vmatprep.subr.mxu0 0.0
      %1009 = vmatpush1.msra.mxu0 0.0
      %1010 = vmatprep.subr.mxu0 0.0
      %1011 = vmatpush1.msra.mxu0 0.0
      %1012 = vmatprep.subr.mxu0 0.0
      %1013 = vmatpush1.msra.mxu0 0.0
      %1014 = vmatprep.subr.mxu0 0.0
      %1015 = vmatpush1.msra.mxu0 0.0
      %1016 = vmatprep.subr.mxu0 0.0
      %1017 = vmatpush1.msra.mxu0 0.0
      %1018 = vmatprep.subr.mxu0 0.0
      %1019 = vmatpush1.msra.mxu0 0.0
      %1020 = vmatprep.subr.mxu0 0.0
      %1021 = vmatpush1.msra.mxu0 0.0
      %1022 = vmatprep.subr.mxu0 0.0
      %1023 = vmatpush1.msra.mxu0 0.0
      %1024 = vmatprep.subr.mxu0 0.0
      %1025 = vmatpush1.msra.mxu0 0.0
      %1026 = vmatprep.subr.mxu0 0.0
      %1027 = vmatpush1.msra.mxu0 0.0
      %1028 = vmatprep.subr.mxu0 0.0
      %1029 = vmatpush1.msra.mxu0 0.0
      %1030 = vmatprep.subr.mxu0 0.0
      %1031 = vmatpush1.msra.mxu0 0.0
      %1032 = vmatprep.subr.mxu0 0.0
      %1033 = vmatpush1.msra.mxu0 0.0
      %1034 = vmatprep.mubr.f32.mxu0 0.0
      %1035 = vmatmul.mubr.f32.gmra.mrb[0].mxu0 %v968
      %v1036 = vpop.f32.mrb[0].mxu0
      %v1037 = vadd.f32 0.0, %v1036
      %v1038 = vpop.f32.mrb[0].mxu0
      %1039 = vdwg.mxu0
      %vm1040 = vcmask 130048
      %v1041 = vsel %vm1040, %v1037, 0.0
      %1042 = vadd.xlane.f32.xlu0 %v1041
      %v1043 = vpop.xlane.xlu0 %1042
      %v1044 = vld [vmem:[%s6] sm:$0xff]
      %v1045 = vld [vmem:[%s6 + $0x8] sm:$0xff]
      %v1046 = vld [vmem:[%s6 + $0x10] sm:$0xff]
      %v1047 = vld [vmem:[%s6 + $0x18] sm:$0xff]
      %v1048 = vld [vmem:[%s6 + $0x20] sm:$0xff]
      %v1049 = vld [vmem:[%s6 + $0x28] sm:$0xff]
      %v1050 = vld [vmem:[%s6 + $0x30] sm:$0xff]
      %v1051 = vld [vmem:[%s6 + $0x38] sm:$0xff]
      %v1052 = vrcp.pop 128.0
      %v1053 = vmul.f32 %v1043, %v1052
      %vm1054 = vcmask 64512
      %v1056 = vsel %vm1054, %v1044, 0
      %v1059 = vsel %vm1054, %v1045, 0
      %v1062 = vsel %vm1054, %v1046, 0
      %v1065 = vsel %vm1054, %v1047, 0
      %v1068 = vsel %vm1054, %v1048, 0
      %v1071 = vsel %vm1054, %v1049, 0
      %v1074 = vsel %vm1054, %v1050, 0
      %v1077 = vsel %vm1054, %v1051, 0
      %1079 = vmatprep.subr.mxu0 0.0
      %1080 = vmatpush1.msra.mxu0 %v1053
      %1081 = vmatprep.subr.mxu0 0.0
      %1082 = vmatpush1.msra.mxu0 0.0
      %1083 = vmatprep.subr.mxu0 0.0
      %1084 = vmatpush1.msra.mxu0 0.0
      %1085 = vmatprep.subr.mxu0 0.0
      %1086 = vmatpush1.msra.mxu0 0.0
      %1087 = vmatprep.subr.mxu0 0.0
      %1088 = vmatpush1.msra.mxu0 0.0
      %1089 = vmatprep.subr.mxu0 0.0
      %1090 = vmatpush1.msra.mxu0 0.0
      %1091 = vmatprep.subr.mxu0 0.0
      %1092 = vmatpush1.msra.mxu0 0.0
      %1093 = vmatprep.subr.mxu0 0.0
      %1094 = vmatpush1.msra.mxu0 0.0
      %1095 = vmatprep.subr.mxu0 0.0
      %1096 = vmatpush1.msra.mxu0 0.0
      %1097 = vmatprep.subr.mxu0 0.0
      %1098 = vmatpush1.msra.mxu0 0.0
      %1099 = vmatprep.subr.mxu0 0.0
      %1100 = vmatpush1.msra.mxu0 0.0
      %1101 = vmatprep.subr.mxu0 0.0
      %1102 = vmatpush1.msra.mxu0 0.0
      %1103 = vmatprep.subr.mxu0 0.0
      %1104 = vmatpush1.msra.mxu0 0.0
      %1105 = vmatprep.subr.mxu0 0.0
      %1106 = vmatpush1.msra.mxu0 0.0
      %1107 = vmatprep.subr.mxu0 0.0
      %1108 = vmatpush1.msra.mxu0 0.0
      %1109 = vmatprep.subr.mxu0 0.0
      %1110 = vmatpush1.msra.mxu0 0.0
      %1111 = vmatprep.subr.mxu0 0.0
      %1112 = vmatpush1.msra.mxu0 0.0
      %1113 = vmatprep.subr.mxu0 0.0
      %1114 = vmatpush1.msra.mxu0 0.0
      %1115 = vmatprep.subr.mxu0 0.0
      %1116 = vmatpush1.msra.mxu0 0.0
      %1117 = vmatprep.subr.mxu0 0.0
      %1118 = vmatpush1.msra.mxu0 0.0
      %1119 = vmatprep.subr.mxu0 0.0
      %1120 = vmatpush1.msra.mxu0 0.0
      %1121 = vmatprep.subr.mxu0 0.0
      %1122 = vmatpush1.msra.mxu0 0.0
      %1123 = vmatprep.subr.mxu0 0.0
      %1124 = vmatpush1.msra.mxu0 0.0
      %1125 = vmatprep.subr.mxu0 0.0
      %1126 = vmatpush1.msra.mxu0 0.0
      %1127 = vmatprep.subr.mxu0 0.0
      %1128 = vmatpush1.msra.mxu0 0.0
      %1129 = vmatprep.subr.mxu0 0.0
      %1130 = vmatpush1.msra.mxu0 0.0
      %1131 = vmatprep.subr.mxu0 0.0
      %1132 = vmatpush1.msra.mxu0 0.0
      %1133 = vmatprep.subr.mxu0 0.0
      %1134 = vmatpush1.msra.mxu0 0.0
      %1135 = vmatprep.subr.mxu0 0.0
      %1136 = vmatpush1.msra.mxu0 0.0
      %1137 = vmatprep.subr.mxu0 0.0
      %1138 = vmatpush1.msra.mxu0 0.0
      %1139 = vmatprep.subr.mxu0 0.0
      %1140 = vmatpush1.msra.mxu0 0.0
      %1141 = vmatprep.subr.mxu0 0.0
      %1142 = vmatpush1.msra.mxu0 0.0
      %1143 = vmatprep.mubr.f32.mxu0 0.0
      %1144 = vmatmul.mubr.f32.gmra.mrb[0].mxu0 %v1056
      %v1145 = vpop.f32.mrb[0].mxu0
      %v1146 = vadd.f32 0.0, %v1145
      %v1147 = vpop.f32.mrb[0].mxu0
      %1148 = vmatprep.mubr.f32.mxu0 0.0
      %1149 = vmatmul.mubr.f32.gmra.mrb[0].mxu0 %v1059
      %v1150 = vpop.f32.mrb[0].mxu0
      %v1151 = vadd.f32 0.0, %v1150
      %v1152 = vpop.f32.mrb[0].mxu0
      %1153 = vmatprep.mubr.f32.mxu0 0.0
      %1154 = vmatmul.mubr.f32.gmra.mrb[0].mxu0 %v1062
      %v1155 = vpop.f32.mrb[0].mxu0
      %v1156 = vadd.f32 0.0, %v1155
      %v1157 = vpop.f32.mrb[0].mxu0
      %1158 = vmatprep.mubr.f32.mxu0 0.0
      %1159 = vmatmul.mubr.f32.gmra.mrb[0].mxu0 %v1065
      %v1160 = vpop.f32.mrb[0].mxu0
      %v1161 = vadd.f32 0.0, %v1160
      %v1162 = vpop.f32.mrb[0].mxu0
      %1163 = vmatprep.mubr.f32.mxu0 0.0
      %1164 = vmatmul.mubr.f32.gmra.mrb[0].mxu0 %v1068
      %v1165 = vpop.f32.mrb[0].mxu0
      %v1166 = vadd.f32 0.0, %v1165
      %v1167 = vpop.f32.mrb[0].mxu0
      %1168 = vmatprep.mubr.f32.mxu0 0.0
      %1169 = vmatmul.mubr.f32.gmra.mrb[0].mxu0 %v1071
      %v1170 = vpop.f32.mrb[0].mxu0
      %v1171 = vadd.f32 0.0, %v1170
      %v1172 = vpop.f32.mrb[0].mxu0
      %1173 = vmatprep.mubr.f32.mxu0 0.0
      %1174 = vmatmul.mubr.f32.gmra.mrb[0].mxu0 %v1074
      %v1175 = vpop.f32.mrb[0].mxu0
      %v1176 = vadd.f32 0.0, %v1175
      %v1177 = vpop.f32.mrb[0].mxu0
      %1178 = vmatprep.mubr.f32.mxu0 0.0
      %1179 = vmatmul.mubr.f32.gmra.mrb[0].mxu0 %v1077
      %v1180 = vpop.f32.mrb[0].mxu0
      %v1181 = vadd.f32 0.0, %v1180
      %v1182 = vpop.f32.mrb[0].mxu0
      %1183 = vdwg.mxu0
      %v1184 = vsub.f32 %v894, %v1146
      %v1185 = vsub.f32 %v897, %v1151
      %v1186 = vsub.f32 %v902, %v1156
      %v1187 = vsub.f32 %v905, %v1161
      %v1188 = vsub.f32 %v910, %v1166
      %v1189 = vsub.f32 %v913, %v1171
      %v1190 = vsub.f32 %v918, %v1176
      %v1191 = vsub.f32 %v921, %v1181
      %v1192 = vmul.f32 %v1184, %v1184
      %v1193 = vmul.f32 %v1185, %v1185
      %v1194 = vmul.f32 %v1186, %v1186
      %v1195 = vmul.f32 %v1187, %v1187
      %v1196 = vmul.f32 %v1188, %v1188
      %v1197 = vmul.f32 %v1189, %v1189
      %v1198 = vmul.f32 %v1190, %v1190
      %v1199 = vmul.f32 %v1191, %v1191
      %1200 = vmatprep.subr.mxu0 0.0
      %1201 = vmatpush1.msra.mxu0 %v1192
      %1202 = vmatprep.subr.mxu0 0.0
      %1203 = vmatpush1.msra.mxu0 %v1193
      %1204 = vmatprep.subr.mxu0 0.0
      %1205 = vmatpush1.msra.mxu0 %v1194
      %1206 = vmatprep.subr.mxu0 0.0
      %1207 = vmatpush1.msra.mxu0 %v1195
      %1208 = vmatprep.subr.mxu0 0.0
      %1209 = vmatpush1.msra.mxu0 %v1196
      %1210 = vmatprep.subr.mxu0 0.0
      %1211 = vmatpush1.msra.mxu0 %v1197
      %1212 = vmatprep.subr.mxu0 0.0
      %1213 = vmatpush1.msra.mxu0 %v1198
      %1214 = vmatprep.subr.mxu0 0.0
      %1215 = vmatpush1.msra.mxu0 %v1199
      %1216 = vmatprep.subr.mxu0 0.0
      %1217 = vmatpush1.msra.mxu0 0.0
      %1218 = vmatprep.subr.mxu0 0.0
      %1219 = vmatpush1.msra.mxu0 0.0
      %1220 = vmatprep.subr.mxu0 0.0
      %1221 = vmatpush1.msra.mxu0 0.0
      %1222 = vmatprep.subr.mxu0 0.0
      %1223 = vmatpush1.msra.mxu0 0.0
      %1224 = vmatprep.subr.mxu0 0.0
      %1225 = vmatpush1.msra.mxu0 0.0
      %1226 = vmatprep.subr.mxu0 0.0
      %1227 = vmatpush1.msra.mxu0 0.0
      %1228 = vmatprep.subr.mxu0 0.0
      %1229 = vmatpush1.msra.mxu0 0.0
      %1230 = vmatprep.subr.mxu0 0.0
      %1231 = vmatpush1.msra.mxu0 0.0
      %1232 = vmatprep.subr.mxu0 0.0
      %1233 = vmatpush1.msra.mxu0 0.0
      %1234 = vmatprep.subr.mxu0 0.0
      %1235 = vmatpush1.msra.mxu0 0.0
      %1236 = vmatprep.subr.mxu0 0.0
      %1237 = vmatpush1.msra.mxu0 0.0
      %1238 = vmatprep.subr.mxu0 0.0
      %1239 = vmatpush1.msra.mxu0 0.0
      %1240 = vmatprep.subr.mxu0 0.0
      %1241 = vmatpush1.msra.mxu0 0.0
      %1242 = vmatprep.subr.mxu0 0.0
      %1243 = vmatpush1.msra.mxu0 0.0
      %1244 = vmatprep.subr.mxu0 0.0
      %1245 = vmatpush1.msra.mxu0 0.0
      %1246 = vmatprep.subr.mxu0 0.0
      %1247 = vmatpush1.msra.mxu0 0.0
      %1248 = vmatprep.subr.mxu0 0.0
      %1249 = vmatpush1.msra.mxu0 0.0
      %1250 = vmatprep.subr.mxu0 0.0
      %1251 = vmatpush1.msra.mxu0 0.0
      %1252 = vmatprep.subr.mxu0 0.0
      %1253 = vmatpush1.msra.mxu0 0.0
      %1254 = vmatprep.subr.mxu0 0.0
      %1255 = vmatpush1.msra.mxu0 0.0
      %1256 = vmatprep.subr.mxu0 0.0
      %1257 = vmatpush1.msra.mxu0 0.0
      %1258 = vmatprep.subr.mxu0 0.0
      %1259 = vmatpush1.msra.mxu0 0.0
      %1260 = vmatprep.subr.mxu0 0.0
      %1261 = vmatpush1.msra.mxu0 0.0
      %1262 = vmatprep.subr.mxu0 0.0
      %1263 = vmatpush1.msra.mxu0 0.0
      %1264 = vmatprep.mubr.f32.mxu0 0.0
      %1265 = vmatmul.mubr.f32.gmra.mrb[0].mxu0 %v968
      %v1266 = vpop.f32.mrb[0].mxu0
      %v1267 = vadd.f32 0.0, %v1266
      %v1268 = vpop.f32.mrb[0].mxu0
      %1269 = vdwg.mxu0
      %v1270 = vsel %vm1040, %v1267, 0.0
      %1271 = vadd.xlane.f32.xlu0 %v1270
      %v1272 = vpop.xlane.xlu0 %1271
      %v1273 = vlaneseq
      %v1274 = vand.u32 %v1273, 127
      %vm1275 = vcmp.eq.s32.totalorder %v1274, 0
      %v1276 = vsel %vm1275, 1, 0
      %vm1277 = vcmp.eq.s32.totalorder %v1276, 1
      %1279 = vset.pattern.permute.xlu0 0
      %1280 = vperm.xlu0 %1279, %v1043
      %v1281 = vpop.permute.xlu0 %1280
      %1284 = vset.pattern.permute.xlu0 0
      %1285 = vperm.xlu0 %1284, %v1272
      %v1286 = vpop.permute.xlu0 %1285
      %v1288 = vsel %vm1277, %v1281, 0.0
      %v1289 = vsel %vm1277, %v1286, 0.0
      %1290 = vst [vmem:[%s416] sm:$0xff] %v1288
      %1291 = vst [vmem:[%s416 + $0x8] sm:$0xff] %v1289
      %p1292 = scmp.lt.s32.totalorder %s24, 1
      %s1293 = scalar_select %p1292, %s24, 1
      %p1294 = scmp.lt.s32.totalorder %s25, 0
      %s1295 = scalar_select %p1294, %s25, 0
      %s1296 = smul.addr %s1293, 8
      %s1297 = sadd.s32 %s1295, %s1296
      %s1298 = smul.addr %s1297, 4
      %s1299 = scalar_lea.vmem %s7, %s1298
      %p1300 = scmp.lt.s32.totalorder %s24, 1
      %s1301 = scalar_select %p1300, %s24, 1
      %p1302 = scmp.lt.s32.totalorder %s25, 0
      %s1303 = scalar_select %p1302, %s25, 0
      %s1304 = smul.addr %s1303, 2
      %s1305 = smul.addr %s1301, 2
      %s1306 = sadd.s32 %s1304, %s1305
      %s1307 = smul.addr %s1306, 8
      %s1308 = scalar_lea.vmem %s8, %s1307
      // Predicated region
      $region49: #{encoder_forward.5} parent=47 // pred_check
        %p1309 = pneg %p221
      $region50: #{encoder_forward.5} parent=47 // pred_check_branch
        %1311 = sbr.rel (%p1309) target = $region52
      $region51: #{encoder_forward.5} parent=47 // pred_region
        _
      $region52: #{encoder_forward.5} parent=47 // pred_fallthru
        _
      // Predicated region
      $region53: #{encoder_forward.5} parent=47 // pred_check
        %p1312 = pneg %p249
      $region54: #{encoder_forward.5} parent=47 // pred_check_branch
        %1314 = sbr.rel (%p1312) target = $region56
      $region55: #{encoder_forward.5} parent=47 // pred_region
        _
      $region56: #{encoder_forward.5} parent=47 // pred_fallthru
        _
    $region48: #{encoder_forward.5} parent=5 // pred_fallthru
      _
    %p1315 = scmp.le.s32.totalorder 2, %s15
    // Predicated region
    $region57: #{encoder_forward.5} parent=5 // pred_check
      %p1316 = pneg %p1315
    $region58: #{encoder_forward.5} parent=5 // pred_check_branch
      %1318 = sbr.rel (%p1316) target = $region60
    $region59: #{encoder_forward.5} parent=5 // pred_region
      %s1319 = ssub.s32 %s15, 2
      // Predicated region
      $region61: #{encoder_forward.5} parent=59 // pred_check
        %p1320 = pneg %p227
      $region62: #{encoder_forward.5} parent=59 // pred_check_branch
        %1322 = sbr.rel (%p1320) target = $region64
      $region63: #{encoder_forward.5} parent=59 // pred_region
        %p1323 = scmp.lt.s32.totalorder %s26, 1
        %s1324 = scalar_select %p1323, %s26, 1
        %p1325 = scmp.lt.s32.totalorder %s27, 0
        %s1326 = scalar_select %p1325, %s27, 0
        %s1327 = smul.addr %s1324, 8
        %s1328 = sadd.s32 %s1326, %s1327
        %s1329 = smul.addr %s1328, 4
        %s1330 = scalar_lea.vmem %s7, %s1329
      $region64: #{encoder_forward.5} parent=59 // pred_fallthru
        _
      // Predicated region
      $region65: #{encoder_forward.5} parent=59 // pred_check
        %p1331 = pneg %p255
      $region66: #{encoder_forward.5} parent=59 // pred_check_branch
        %1333 = sbr.rel (%p1331) target = $region68
      $region67: #{encoder_forward.5} parent=59 // pred_region
        %p1334 = scmp.lt.s32.totalorder %s26, 1
        %s1335 = scalar_select %p1334, %s26, 1
        %p1336 = scmp.lt.s32.totalorder %s27, 0
        %s1337 = scalar_select %p1336, %s27, 0
        %s1338 = smul.addr %s1337, 2
        %s1339 = smul.addr %s1335, 2
        %s1340 = sadd.s32 %s1338, %s1339
        %s1341 = smul.addr %s1340, 8
        %s1342 = scalar_lea.vmem %s8, %s1341
      $region68: #{encoder_forward.5} parent=59 // pred_fallthru
        _
    $region60: #{encoder_forward.5} parent=5 // pred_fallthru
      _
  $region6: #{encoder_forward.5} parent=0 // loop_footer
    %s19 = sadd.s32 1, %s15
  $region7: #{encoder_forward.5} parent=0 // loop_footer_branch
    %14 = sbr.rel target = $region3
  $region8: #{encoder_forward.5} parent=0 // loop_exit
    _

// kernel: encoder_forward.7
$region0: #{encoder_forward.7}
  #allocation0 [shape = 'u32[]', space=smem, size = 0x4, offset = 0x4, fixed_abs, tag = 'smem constant byte address 0x4 - core index']
  #allocation1 [shape = 'u32[144,128]{1,0:T(1,128)}', space=vmem, size = 0x12000, scoped, tag = 'internal scratch']
  %s0 = inlined_call_operand.vmem [shape: bf16[2,128,4], index: 0, kind: input, shape index: {}]
  %s1 = inlined_call_operand.vmem [shape: f32[2,128,1], index: 1, kind: input, shape index: {}]
  %s2 = inlined_call_operand.vmem [shape: f32[2,128,1], index: 2, kind: input, shape index: {}]
  %s3 = inlined_call_operand.vmem [shape: f32[2,128,4], index: 3, kind: output, shape index: {}]
  %s4 = sld [smem:[#allocation0]]
  $region45: #{encoder_forward.7} parent=0
    _
  %s6 = ssub.s32 1, %s4
  %s7 = scalar_select 0, %s6, %s4
  loop: start=0, step=1, limit=4
  $region2: #{encoder_forward.7} parent=0 // loop_pre_header
    _
  $region3: #{encoder_forward.7} parent=0 // loop_header
    %s9 = sphi 0, %s13
    %p10 = scmp.ge.s32.totalorder %s9, 4
    %s16 = sphi 0, %s28
    %s17 = sphi 0, %s24
    %s18 = sphi 0, %s16
    %s19 = sphi 0, %s17
    %s20 = sphi 0, %s18
    %s21 = sphi 0, %s19
    %s33 = sphi 0, %s35
    %s36 = sphi 0, %s33
    %s37 = sphi 0, %s36
    %s53 = sphi 0, %s37
    %s59 = sphi 0, %s61
    %s62 = sphi 0, %s59
    %s63 = sphi 0, %s62
    %s79 = sphi 0, %s63
    %s85 = sphi 0, %s87
    %s88 = sphi 0, %s85
    %s89 = sphi 0, %s88
    %s105 = sphi 0, %s89
    %s113 = sphi 0, %s115
    %s116 = sphi 0, %s113
    %s117 = sphi 0, %s116
    %s133 = sphi 0, %s117
  $region4: #{encoder_forward.7} parent=0 // loop_header_branch
    %12 = sbr.rel (%p10) target = $region8
  $region5: #{encoder_forward.7} parent=0 // loop_body
    %s14 = ssub.s32 %s9, 1
    %s15 = ssub.s32 %s9, 2
    %s22 = sadd.s32 1, %s17
    %p23 = scmp.ge.s32.totalorder %s22, 1
    %s24 = scalar_select %p23, 0, %s22
    %s25 = sadd.s32 1, %s16
    %s26 = scalar_select %p23, %s25, %s16
    %p27 = scmp.ge.s32.totalorder %s26, 2
    %s28 = scalar_select %p27, 0, %s26
    %s29 = ssub.s32 %s16, %s28
    %s30 = ssub.s32 %s17, %s24
    %s31 = sor.u32 %s29, %s30
    %p32 = scmp.eq.s32.totalorder %s31, 0
    %s34 = sadd.s32 %s33, 1
    %s35 = scalar_select %p32, %s33, %s34
    %p38 = pneg %p32
    %p39 = scmp.eq.s32.totalorder %s9, 1
    %p40 = por %p38, %p39
    %p41 = scmp.ne.s32.totalorder %s33, %s36
    %p42 = scmp.eq.s32.totalorder %s9, 0
    %p43 = por %p41, %p42
    %p44 = scmp.ne.s32.totalorder %s33, %s36
    %p45 = scmp.eq.s32.totalorder %s14, 1
    %p46 = por %p44, %p45
    %p47 = scmp.ne.s32.totalorder %s36, %s37
    %p48 = scmp.eq.s32.totalorder %s14, 0
    %p49 = por %p47, %p48
    %p50 = scmp.ne.s32.totalorder %s36, %s37
    %p51 = scmp.eq.s32.totalorder %s15, 1
    %p52 = por %p50, %p51
    %p54 = scmp.ne.s32.totalorder %s37, %s53
    %p55 = scmp.eq.s32.totalorder %s15, 0
    %p56 = por %p54, %p55
    %s57 = ssub.s32 %s16, %s28
    %p58 = scmp.eq.s32.totalorder %s57, 0
    %s60 = sadd.s32 %s59, 1
    %s61 = scalar_select %p58, %s59, %s60
    %p64 = pneg %p58
    %p65 = scmp.eq.s32.totalorder %s9, 1
    %p66 = por %p64, %p65
    %p67 = scmp.ne.s32.totalorder %s59, %s62
    %p68 = scmp.eq.s32.totalorder %s9, 0
    %p69 = por %p67, %p68
    %p70 = scmp.ne.s32.totalorder %s59, %s62
    %p71 = scmp.eq.s32.totalorder %s14, 1
    %p72 = por %p70, %p71
    %p73 = scmp.ne.s32.totalorder %s62, %s63
    %p74 = scmp.eq.s32.totalorder %s14, 0
    %p75 = por %p73, %p74
    %p76 = scmp.ne.s32.totalorder %s62, %s63
    %p77 = scmp.eq.s32.totalorder %s15, 1
    %p78 = por %p76, %p77
    %p80 = scmp.ne.s32.totalorder %s63, %s79
    %p81 = scmp.eq.s32.totalorder %s15, 0
    %p82 = por %p80, %p81
    %s83 = ssub.s32 %s16, %s28
    %p84 = scmp.eq.s32.totalorder %s83, 0
    %s86 = sadd.s32 %s85, 1
    %s87 = scalar_select %p84, %s85, %s86
    %p90 = pneg %p84
    %p91 = scmp.eq.s32.totalorder %s9, 1
    %p92 = por %p90, %p91
    %p93 = scmp.ne.s32.totalorder %s85, %s88
    %p94 = scmp.eq.s32.totalorder %s9, 0
    %p95 = por %p93, %p94
    %p96 = scmp.ne.s32.totalorder %s85, %s88
    %p97 = scmp.eq.s32.totalorder %s14, 1
    %p98 = por %p96, %p97
    %p99 = scmp.ne.s32.totalorder %s88, %s89
    %p100 = scmp.eq.s32.totalorder %s14, 0
    %p101 = por %p99, %p100
    %p102 = scmp.ne.s32.totalorder %s88, %s89
    %p103 = scmp.eq.s32.totalorder %s15, 1
    %p104 = por %p102, %p103
    %p106 = scmp.ne.s32.totalorder %s89, %s105
    %p107 = scmp.eq.s32.totalorder %s15, 0
    %p108 = por %p106, %p107
    %s109 = ssub.s32 %s16, %s28
    %s110 = ssub.s32 %s17, %s24
    %s111 = sor.u32 %s109, %s110
    %p112 = scmp.eq.s32.totalorder %s111, 0
    %s114 = sadd.s32 %s113, 1
    %s115 = scalar_select %p112, %s113, %s114
    %p118 = pneg %p112
    %p119 = scmp.eq.s32.totalorder %s9, 1
    %p120 = por %p118, %p119
    %p121 = scmp.ne.s32.totalorder %s113, %s116
    %p122 = scmp.eq.s32.totalorder %s9, 0
    %p123 = por %p121, %p122
    %p124 = scmp.ne.s32.totalorder %s113, %s116
    %p125 = scmp.eq.s32.totalorder %s14, 1
    %p126 = por %p124, %p125
    %p127 = scmp.ne.s32.totalorder %s116, %s117
    %p128 = scmp.eq.s32.totalorder %s14, 0
    %p129 = por %p127, %p128
    %p130 = scmp.ne.s32.totalorder %s116, %s117
    %p131 = scmp.eq.s32.totalorder %s15, 1
    %p132 = por %p130, %p131
    %p134 = scmp.ne.s32.totalorder %s117, %s133
    %p135 = scmp.eq.s32.totalorder %s15, 0
    %p136 = por %p134, %p135
    %p137 = scmp.le.s32.totalorder 1, %s9
    %p138 = scmp.lt.s32.totalorder %s9, 3
    %p139 = pnand %p137, %p138
    %p140 = pneg %p139
    // Predicated region
    $region9: #{encoder_forward.7} parent=5 // pred_check
      _
    $region10: #{encoder_forward.7} parent=5 // pred_check_branch
      %142 = sbr.rel (%p139) target = $region12
    $region11: #{encoder_forward.7} parent=5 // pred_region
      %s143 = ssub.s32 %s9, 1
    $region12: #{encoder_forward.7} parent=5 // pred_fallthru
      _
    %p144 = scmp.lt.s32.totalorder %s9, 2
    // Predicated region
    $region13: #{encoder_forward.7} parent=5 // pred_check
      %p145 = pneg %p144
    $region14: #{encoder_forward.7} parent=5 // pred_check_branch
      %147 = sbr.rel (%p145) target = $region16
    $region15: #{encoder_forward.7} parent=5 // pred_region
      // Predicated region
      $region17: #{encoder_forward.7} parent=15 // pred_check
        %p148 = pneg %p43
      $region18: #{encoder_forward.7} parent=15 // pred_check_branch
        %150 = sbr.rel (%p148) target = $region20
      $region19: #{encoder_forward.7} parent=15 // pred_region
        %p151 = scmp.lt.s32.totalorder %s16, 1
        %s152 = scalar_select %p151, %s16, 1
        %p153 = scmp.lt.s32.totalorder %s17, 0
        %s154 = scalar_select %p153, %s17, 0
        %s155 = smul.addr %s152, 16
        %s156 = sadd.s32 %s154, %s155
        %s157 = smul.addr %s156, 4
        %s158 = scalar_lea.vmem %s0, %s157
      $region20: #{encoder_forward.7} parent=15 // pred_fallthru
        _
      // Predicated region
      $region21: #{encoder_forward.7} parent=15 // pred_check
        %p159 = pneg %p69
      $region22: #{encoder_forward.7} parent=15 // pred_check_branch
        %161 = sbr.rel (%p159) target = $region24
      $region23: #{encoder_forward.7} parent=15 // pred_region
        %p162 = scmp.lt.s32.totalorder %s16, 1
        %s163 = scalar_select %p162, %s16, 1
        %s164 = smul.addr %s163, 16
        %s165 = smul.addr %s164, 8
        %s166 = scalar_lea.vmem %s1, %s165
      $region24: #{encoder_forward.7} parent=15 // pred_fallthru
        _
      // Predicated region
      $region25: #{encoder_forward.7} parent=15 // pred_check
        %p167 = pneg %p95
      $region26: #{encoder_forward.7} parent=15 // pred_check_branch
        %169 = sbr.rel (%p167) target = $region28
      $region27: #{encoder_forward.7} parent=15 // pred_region
        %p170 = scmp.lt.s32.totalorder %s16, 1
        %s171 = scalar_select %p170, %s16, 1
        %s172 = smul.addr %s171, 16
        %s173 = smul.addr %s172, 8
        %s174 = scalar_lea.vmem %s2, %s173
      $region28: #{encoder_forward.7} parent=15 // pred_fallthru
        _
    $region16: #{encoder_forward.7} parent=5 // pred_fallthru
      _
    %p175 = scmp.le.s32.totalorder 1, %s9
    %p176 = scmp.lt.s32.totalorder %s9, 3
    %p177 = pnand %p175, %p176
    %p178 = pneg %p177
    // Predicated region
    $region29: #{encoder_forward.7} parent=5 // pred_check
      _
    $region30: #{encoder_forward.7} parent=5 // pred_check_branch
      %180 = sbr.rel (%p177) target = $region32
    $region31: #{encoder_forward.7} parent=5 // pred_region
      %s181 = ssub.s32 %s9, 1
      %p182 = scmp.lt.s32.totalorder %s18, 1
      %s183 = scalar_select %p182, %s18, 1
      %p184 = scmp.lt.s32.totalorder %s19, 0
      %s185 = scalar_select %p184, %s19, 0
      %s186 = smul.addr %s183, 16
      %s187 = sadd.s32 %s185, %s186
      %s188 = smul.addr %s187, 4
      %s189 = scalar_lea.vmem %s0, %s188
      %p190 = pneg %p49
      %p191 = pneg %p46
      %p192 = scmp.lt.s32.totalorder %s18, 1
      %s193 = scalar_select %p192, %s18, 1
      %s194 = smul.addr %s193, 16
      %s195 = smul.addr %s194, 8
      %s196 = scalar_lea.vmem %s1, %s195
      %p197 = pneg %p75
      %p198 = pneg %p72
      %p199 = scmp.lt.s32.totalorder %s18, 1
      %s200 = scalar_select %p199, %s18, 1
      %s201 = smul.addr %s200, 16
      %s202 = smul.addr %s201, 8
      %s203 = scalar_lea.vmem %s2, %s202
      %p204 = pneg %p101
      %p205 = pneg %p98
      %p206 = pneg %p129
      %p207 = pneg %p126
      %p208 = scmp.lt.s32.totalorder %s18, 1
      %s209 = scalar_select %p208, %s18, 1
      %p210 = scmp.lt.s32.totalorder %s19, 0
      %s211 = scalar_select %p210, %s19, 0
      %s212 = smul.addr %s209, 16
      %s213 = sadd.s32 %s211, %s212
      %s214 = smul.addr %s213, 8
      %s215 = scalar_lea.vmem %s3, %s214
      %p216 = scmp.lt.s32.totalorder %s18, 1
      %s217 = scalar_select %p216, %s18, 1
      %p218 = scmp.lt.s32.totalorder %s19, 0
      %s219 = scalar_select %p218, %s19, 0
      %s220 = smul.addr %s217, 16
      %s221 = sadd.s32 %s219, %s220
      %s222 = smul.addr %s221, 4
      %s223 = scalar_lea.vmem %s0, %s222
      %p224 = scmp.lt.s32.totalorder %s18, 1
      %s225 = scalar_select %p224, %s18, 1
      %s226 = smul.addr %s225, 16
      %s227 = smul.addr %s226, 8
      %s228 = scalar_lea.vmem %s1, %s227
      %p229 = scmp.lt.s32.totalorder %s18, 1
      %s230 = scalar_select %p229, %s18, 1
      %s231 = smul.addr %s230, 16
      %s232 = smul.addr %s231, 8
      %s233 = scalar_lea.vmem %s2, %s232
      %p234 = scmp.lt.s32.totalorder %s18, 1
      %s235 = scalar_select %p234, %s18, 1
      %p236 = scmp.lt.s32.totalorder %s19, 0
      %s237 = scalar_select %p236, %s19, 0
      %s238 = smul.addr %s235, 16
      %s239 = sadd.s32 %s237, %s238
      %s240 = smul.addr %s239, 8
      %s241 = scalar_lea.vmem %s3, %s240
      %v242 = vld [vmem:[%s223] sm:$0xf]
      %v243 = vld [vmem:[%s223 + $0x4] sm:$0xf]
      %v244 = vld [vmem:[%s223 + $0x8] sm:$0xf]
      %v245 = vld [vmem:[%s223 + $0xc] sm:$0xf]
      %v246 = vld [vmem:[%s223 + $0x10] sm:$0xf]
      %v247 = vld [vmem:[%s223 + $0x14] sm:$0xf]
      %v248 = vld [vmem:[%s223 + $0x18] sm:$0xf]
      %v249 = vld [vmem:[%s223 + $0x1c] sm:$0xf]
      %v250 = vld [vmem:[%s223 + $0x20] sm:$0xf]
      %v251 = vld [vmem:[%s223 + $0x24] sm:$0xf]
      %v252 = vld [vmem:[%s223 + $0x28] sm:$0xf]
      %v253 = vld [vmem:[%s223 + $0x2c] sm:$0xf]
      %v254 = vld [vmem:[%s223 + $0x30] sm:$0xf]
      %v255 = vld [vmem:[%s223 + $0x34] sm:$0xf]
      %v256 = vld [vmem:[%s223 + $0x38] sm:$0xf]
      %v257 = vld [vmem:[%s223 + $0x3c] sm:$0xf]
      %v258 = vunpack.c.l.bf16 %v242
      %v259 = vunpack.c.l.bf16 %v243
      %v260 = vunpack.c.l.bf16 %v244
      %v261 = vunpack.c.l.bf16 %v245
      %v262 = vunpack.c.l.bf16 %v246
      %v263 = vunpack.c.l.bf16 %v247
      %v264 = vunpack.c.l.bf16 %v248
      %v265 = vunpack.c.l.bf16 %v249
      %v266 = vunpack.c.l.bf16 %v250
      %v267 = vunpack.c.l.bf16 %v251
      %v268 = vunpack.c.l.bf16 %v252
      %v269 = vunpack.c.l.bf16 %v253
      %v270 = vunpack.c.l.bf16 %v254
      %v271 = vunpack.c.l.bf16 %v255
      %v272 = vunpack.c.l.bf16 %v256
      %v273 = vunpack.c.l.bf16 %v257
      %v274 = vld [vmem:[%s228] sm:$0xff]
      %v275 = vld [vmem:[%s228 + $0x8] sm:$0xff]
      %v276 = vld [vmem:[%s228 + $0x10] sm:$0xff]
      %v277 = vld [vmem:[%s228 + $0x18] sm:$0xff]
      %v278 = vld [vmem:[%s228 + $0x20] sm:$0xff]
      %v279 = vld [vmem:[%s228 + $0x28] sm:$0xff]
      %v280 = vld [vmem:[%s228 + $0x30] sm:$0xff]
      %v281 = vld [vmem:[%s228 + $0x38] sm:$0xff]
      %v282 = vld [vmem:[%s228 + $0x40] sm:$0xff]
      %v283 = vld [vmem:[%s228 + $0x48] sm:$0xff]
      %v284 = vld [vmem:[%s228 + $0x50] sm:$0xff]
      %v285 = vld [vmem:[%s228 + $0x58] sm:$0xff]
      %v286 = vld [vmem:[%s228 + $0x60] sm:$0xff]
      %v287 = vld [vmem:[%s228 + $0x68] sm:$0xff]
      %v288 = vld [vmem:[%s228 + $0x70] sm:$0xff]
      %v289 = vld [vmem:[%s228 + $0x78] sm:$0xff]
      %291 = vset.pattern.permute.xlu0 0
      %292 = vperm.xlu0 %291, %v274
      %v293 = vpop.permute.xlu0 %292
      %296 = vset.pattern.permute.xlu0 0
      %297 = vperm.xlu0 %296, %v275
      %v298 = vpop.permute.xlu0 %297
      %301 = vset.pattern.permute.xlu0 0
      %302 = vperm.xlu0 %301, %v276
      %v303 = vpop.permute.xlu0 %302
      %306 = vset.pattern.permute.xlu0 0
      %307 = vperm.xlu0 %306, %v277
      %v308 = vpop.permute.xlu0 %307
      %311 = vset.pattern.permute.xlu0 0
      %312 = vperm.xlu0 %311, %v278
      %v313 = vpop.permute.xlu0 %312
      %316 = vset.pattern.permute.xlu0 0
      %317 = vperm.xlu0 %316, %v279
      %v318 = vpop.permute.xlu0 %317
      %321 = vset.pattern.permute.xlu0 0
      %322 = vperm.xlu0 %321, %v280
      %v323 = vpop.permute.xlu0 %322
      %326 = vset.pattern.permute.xlu0 0
      %327 = vperm.xlu0 %326, %v281
      %v328 = vpop.permute.xlu0 %327
      %331 = vset.pattern.permute.xlu0 0
      %332 = vperm.xlu0 %331, %v282
      %v333 = vpop.permute.xlu0 %332
      %336 = vset.pattern.permute.xlu0 0
      %337 = vperm.xlu0 %336, %v283
      %v338 = vpop.permute.xlu0 %337
      %341 = vset.pattern.permute.xlu0 0
      %342 = vperm.xlu0 %341, %v284
      %v343 = vpop.permute.xlu0 %342
      %346 = vset.pattern.permute.xlu0 0
      %347 = vperm.xlu0 %346, %v285
      %v348 = vpop.permute.xlu0 %347
      %351 = vset.pattern.permute.xlu0 0
      %352 = vperm.xlu0 %351, %v286
      %v353 = vpop.permute.xlu0 %352
      %356 = vset.pattern.permute.xlu0 0
      %357 = vperm.xlu0 %356, %v287
      %v358 = vpop.permute.xlu0 %357
      %361 = vset.pattern.permute.xlu0 0
      %362 = vperm.xlu0 %361, %v288
      %v363 = vpop.permute.xlu0 %362
      %366 = vset.pattern.permute.xlu0 0
      %367 = vperm.xlu0 %366, %v289
      %v368 = vpop.permute.xlu0 %367
      %v370 = vmul.f32 %v258, %v293
      %v371 = vmul.f32 %v259, %v298
      %v372 = vmul.f32 %v260, %v303
      %v373 = vmul.f32 %v261, %v308
      %v374 = vmul.f32 %v262, %v313
      %v375 = vmul.f32 %v263, %v318
      %v376 = vmul.f32 %v264, %v323
      %v377 = vmul.f32 %v265, %v328
      %v378 = vmul.f32 %v266, %v333
      %v379 = vmul.f32 %v267, %v338
      %v380 = vmul.f32 %v268, %v343
      %v381 = vmul.f32 %v269, %v348
      %v382 = vmul.f32 %v270, %v353
      %v383 = vmul.f32 %v271, %v358
      %v384 = vmul.f32 %v272, %v363
      %v385 = vmul.f32 %v273, %v368
      %v386 = vld [vmem:[%s233] sm:$0xff]
      %v387 = vld [vmem:[%s233 + $0x8] sm:$0xff]
      %v388 = vld [vmem:[%s233 + $0x10] sm:$0xff]
      %v389 = vld [vmem:[%s233 + $0x18] sm:$0xff]
      %v390 = vld [vmem:[%s233 + $0x20] sm:$0xff]
      %v391 = vld [vmem:[%s233 + $0x28] sm:$0xff]
      %v392 = vld [vmem:[%s233 + $0x30] sm:$0xff]
      %v393 = vld [vmem:[%s233 + $0x38] sm:$0xff]
      %v394 = vld [vmem:[%s233 + $0x40] sm:$0xff]
      %v395 = vld [vmem:[%s233 + $0x48] sm:$0xff]
      %v396 = vld [vmem:[%s233 + $0x50] sm:$0xff]
      %v397 = vld [vmem:[%s233 + $0x58] sm:$0xff]
      %v398 = vld [vmem:[%s233 + $0x60] sm:$0xff]
      %v399 = vld [vmem:[%s233 + $0x68] sm:$0xff]
      %v400 = vld [vmem:[%s233 + $0x70] sm:$0xff]
      %v401 = vld [vmem:[%s233 + $0x78] sm:$0xff]
      %403 = vset.pattern.permute.xlu0 0
      %404 = vperm.xlu0 %403, %v386
      %v405 = vpop.permute.xlu0 %404
      %408 = vset.pattern.permute.xlu0 0
      %409 = vperm.xlu0 %408, %v387
      %v410 = vpop.permute.xlu0 %409
      %413 = vset.pattern.permute.xlu0 0
      %414 = vperm.xlu0 %413, %v388
      %v415 = vpop.permute.xlu0 %414
      %418 = vset.pattern.permute.xlu0 0
      %419 = vperm.xlu0 %418, %v389
      %v420 = vpop.permute.xlu0 %419
      %423 = vset.pattern.permute.xlu0 0
      %424 = vperm.xlu0 %423, %v390
      %v425 = vpop.permute.xlu0 %424
      %428 = vset.pattern.permute.xlu0 0
      %429 = vperm.xlu0 %428, %v391
      %v430 = vpop.permute.xlu0 %429
      %433 = vset.pattern.permute.xlu0 0
      %434 = vperm.xlu0 %433, %v392
      %v435 = vpop.permute.xlu0 %434
      %438 = vset.pattern.permute.xlu0 0
      %439 = vperm.xlu0 %438, %v393
      %v440 = vpop.permute.xlu0 %439
      %443 = vset.pattern.permute.xlu0 0
      %444 = vperm.xlu0 %443, %v394
      %v445 = vpop.permute.xlu0 %444
      %448 = vset.pattern.permute.xlu0 0
      %449 = vperm.xlu0 %448, %v395
      %v450 = vpop.permute.xlu0 %449
      %453 = vset.pattern.permute.xlu0 0
      %454 = vperm.xlu0 %453, %v396
      %v455 = vpop.permute.xlu0 %454
      %458 = vset.pattern.permute.xlu0 0
      %459 = vperm.xlu0 %458, %v397
      %v460 = vpop.permute.xlu0 %459
      %463 = vset.pattern.permute.xlu0 0
      %464 = vperm.xlu0 %463, %v398
      %v465 = vpop.permute.xlu0 %464
      %468 = vset.pattern.permute.xlu0 0
      %469 = vperm.xlu0 %468, %v399
      %v470 = vpop.permute.xlu0 %469
      %473 = vset.pattern.permute.xlu0 0
      %474 = vperm.xlu0 %473, %v400
      %v475 = vpop.permute.xlu0 %474
      %478 = vset.pattern.permute.xlu0 0
      %479 = vperm.xlu0 %478, %v401
      %v480 = vpop.permute.xlu0 %479
      %v482 = vadd.f32 %v370, %v405
      %v483 = vadd.f32 %v371, %v410
      %v484 = vadd.f32 %v372, %v415
      %v485 = vadd.f32 %v373, %v420
      %v486 = vadd.f32 %v374, %v425
      %v487 = vadd.f32 %v375, %v430
      %v488 = vadd.f32 %v376, %v435
      %v489 = vadd.f32 %v377, %v440
      %v490 = vadd.f32 %v378, %v445
      %v491 = vadd.f32 %v379, %v450
      %v492 = vadd.f32 %v380, %v455
      %v493 = vadd.f32 %v381, %v460
      %v494 = vadd.f32 %v382, %v465
      %v495 = vadd.f32 %v383, %v470
      %v496 = vadd.f32 %v384, %v475
      %v497 = vadd.f32 %v385, %v480
      %v498 = vmax.f32 %v482, 0.0
      %v499 = vmax.f32 %v483, 0.0
      %v500 = vmax.f32 %v484, 0.0
      %v501 = vmax.f32 %v485, 0.0
      %v502 = vmax.f32 %v486, 0.0
      %v503 = vmax.f32 %v487, 0.0
      %v504 = vmax.f32 %v488, 0.0
      %v505 = vmax.f32 %v489, 0.0
      %v506 = vmax.f32 %v490, 0.0
      %v507 = vmax.f32 %v491, 0.0
      %v508 = vmax.f32 %v492, 0.0
      %v509 = vmax.f32 %v493, 0.0
      %v510 = vmax.f32 %v494, 0.0
      %v511 = vmax.f32 %v495, 0.0
      %v512 = vmax.f32 %v496, 0.0
      %v513 = vmax.f32 %v497, 0.0
      %vm514 = vcmask 31744
      %515 = vst.msk [vmem:[%s241] sm:$0xff] %vm514, %v498
      %516 = vst.msk [vmem:[%s241 + $0x8] sm:$0xff] %vm514, %v499
      %517 = vst.msk [vmem:[%s241 + $0x10] sm:$0xff] %vm514, %v500
      %518 = vst.msk [vmem:[%s241 + $0x18] sm:$0xff] %vm514, %v501
      %519 = vst.msk [vmem:[%s241 + $0x20] sm:$0xff] %vm514, %v502
      %520 = vst.msk [vmem:[%s241 + $0x28] sm:$0xff] %vm514, %v503
      %521 = vst.msk [vmem:[%s241 + $0x30] sm:$0xff] %vm514, %v504
      %522 = vst.msk [vmem:[%s241 + $0x38] sm:$0xff] %vm514, %v505
      %523 = vst.msk [vmem:[%s241 + $0x40] sm:$0xff] %vm514, %v506
      %524 = vst.msk [vmem:[%s241 + $0x48] sm:$0xff] %vm514, %v507
      %525 = vst.msk [vmem:[%s241 + $0x50] sm:$0xff] %vm514, %v508
      %526 = vst.msk [vmem:[%s241 + $0x58] sm:$0xff] %vm514, %v509
      %527 = vst.msk [vmem:[%s241 + $0x60] sm:$0xff] %vm514, %v510
      %528 = vst.msk [vmem:[%s241 + $0x68] sm:$0xff] %vm514, %v511
      %529 = vst.msk [vmem:[%s241 + $0x70] sm:$0xff] %vm514, %v512
      %530 = vst.msk [vmem:[%s241 + $0x78] sm:$0xff] %vm514, %v513
      %p531 = scmp.lt.s32.totalorder %s18, 1
      %s532 = scalar_select %p531, %s18, 1
      %p533 = scmp.lt.s32.totalorder %s19, 0
      %s534 = scalar_select %p533, %s19, 0
      %s535 = smul.addr %s532, 16
      %s536 = sadd.s32 %s534, %s535
      %s537 = smul.addr %s536, 8
      %s538 = scalar_lea.vmem %s3, %s537
      // Predicated region
      $region33: #{encoder_forward.7} parent=31 // pred_check
        %p539 = pneg %p126
      $region34: #{encoder_forward.7} parent=31 // pred_check_branch
        %541 = sbr.rel (%p539) target = $region36
      $region35: #{encoder_forward.7} parent=31 // pred_region
        _
      $region36: #{encoder_forward.7} parent=31 // pred_fallthru
        _
    $region32: #{encoder_forward.7} parent=5 // pred_fallthru
      _
    %p542 = scmp.le.s32.totalorder 2, %s9
    // Predicated region
    $region37: #{encoder_forward.7} parent=5 // pred_check
      %p543 = pneg %p542
    $region38: #{encoder_forward.7} parent=5 // pred_check_branch
      %545 = sbr.rel (%p543) target = $region40
    $region39: #{encoder_forward.7} parent=5 // pred_region
      %s546 = ssub.s32 %s9, 2
      // Predicated region
      $region41: #{encoder_forward.7} parent=39 // pred_check
        %p547 = pneg %p132
      $region42: #{encoder_forward.7} parent=39 // pred_check_branch
        %549 = sbr.rel (%p547) target = $region44
      $region43: #{encoder_forward.7} parent=39 // pred_region
        %p550 = scmp.lt.s32.totalorder %s20, 1
        %s551 = scalar_select %p550, %s20, 1
        %p552 = scmp.lt.s32.totalorder %s21, 0
        %s553 = scalar_select %p552, %s21, 0
        %s554 = smul.addr %s551, 16
        %s555 = sadd.s32 %s553, %s554
        %s556 = smul.addr %s555, 8
        %s557 = scalar_lea.vmem %s3, %s556
      $region44: #{encoder_forward.7} parent=39 // pred_fallthru
        _
    $region40: #{encoder_forward.7} parent=5 // pred_fallthru
      _
  $region6: #{encoder_forward.7} parent=0 // loop_footer
    %s13 = sadd.s32 1, %s9
  $region7: #{encoder_forward.7} parent=0 // loop_footer_branch
    %8 = sbr.rel target = $region3
  $region8: #{encoder_forward.7} parent=0 // loop_exit
    _

// kernel: encoder_forward.6
$region0: #{encoder_forward.6}
  #allocation0 [shape = 'u32[]', space=smem, size = 0x4, offset = 0x4, fixed_abs, tag = 'smem constant byte address 0x4 - core index']
  #allocation1 [shape = 'u32[144,128]{1,0:T(1,128)}', space=vmem, size = 0x12000, scoped, tag = 'internal scratch']
  %s0 = inlined_call_operand.vmem [shape: bf16[2,6,64,4], index: 0, kind: input, shape index: {}]
  %s1 = inlined_call_operand.vmem [shape: bf16[128,576], index: 1, kind: input, shape index: {}]
  %s2 = inlined_call_operand.vmem [shape: f32[2,64,1], index: 2, kind: input, shape index: {}]
  %s3 = inlined_call_operand.vmem [shape: f32[2,64,1], index: 3, kind: input, shape index: {}]
  %s4 = inlined_call_operand.vmem [shape: f32[3,4], index: 4, kind: input, shape index: {}]
  %s5 = inlined_call_operand.vmem [shape: f32[8,128], index: 5, kind: input, shape index: {}]
  %s6 = inlined_call_operand.vmem [shape: f32[128,8], index: 6, kind: input, shape index: {}]
  %s7 = inlined_call_operand.vmem [shape: bf16[2,128,4], index: 7, kind: output, shape index: {0}]
  %s8 = inlined_call_operand.vmem [shape: f32[2,1,16,128], index: 8, kind: output, shape index: {1}]
  %9 = xla_tuple %s7, %s8
  %s10 = sld [smem:[#allocation0]]
  $region69: #{encoder_forward.6} parent=0
    _
  %s12 = ssub.s32 1, %s10
  %s13 = scalar_select 0, %s12, %s10
  loop: start=0, step=1, limit=4
  $region2: #{encoder_forward.6} parent=0 // loop_pre_header
    _
  $region3: #{encoder_forward.6} parent=0 // loop_header
    %s15 = sphi 0, %s19
    %p16 = scmp.ge.s32.totalorder %s15, 4
    %s22 = sphi 0, %s34
    %s23 = sphi 0, %s30
    %s24 = sphi 0, %s22
    %s25 = sphi 0, %s23
    %s26 = sphi 0, %s24
    %s27 = sphi 0, %s25
    %s39 = sphi 0, %s41
    %s42 = sphi 0, %s39
    %s43 = sphi 0, %s42
    %s59 = sphi 0, %s43
    %s63 = sphi 0, %s63
    %s65 = sphi 0, %s63
    %s66 = sphi 0, %s65
    %s80 = sphi 0, %s66
    %s86 = sphi 0, %s88
    %s89 = sphi 0, %s86
    %s90 = sphi 0, %s89
    %s106 = sphi 0, %s90
    %s112 = sphi 0, %s114
    %s115 = sphi 0, %s112
    %s116 = sphi 0, %s115
    %s132 = sphi 0, %s116
    %s138 = sphi 0, %s140
    %s141 = sphi 0, %s138
    %s142 = sphi 0, %s141
    %s158 = sphi 0, %s142
    %s162 = sphi 0, %s162
    %s164 = sphi 0, %s162
    %s165 = sphi 0, %s164
    %s179 = sphi 0, %s165
    %s183 = sphi 0, %s183
    %s185 = sphi 0, %s183
    %s186 = sphi 0, %s185
    %s200 = sphi 0, %s186
    %s208 = sphi 0, %s210
    %s211 = sphi 0, %s208
    %s212 = sphi 0, %s211
    %s228 = sphi 0, %s212
    %s236 = sphi 0, %s238
    %s239 = sphi 0, %s236
    %s240 = sphi 0, %s239
    %s256 = sphi 0, %s240
  $region4: #{encoder_forward.6} parent=0 // loop_header_branch
    %18 = sbr.rel (%p16) target = $region8
  $region5: #{encoder_forward.6} parent=0 // loop_body
    %s20 = ssub.s32 %s15, 1
    %s21 = ssub.s32 %s15, 2
    %s28 = sadd.s32 1, %s23
    %p29 = scmp.ge.s32.totalorder %s28, 1
    %s30 = scalar_select %p29, 0, %s28
    %s31 = sadd.s32 1, %s22
    %s32 = scalar_select %p29, %s31, %s22
    %p33 = scmp.ge.s32.totalorder %s32, 2
    %s34 = scalar_select %p33, 0, %s32
    %s35 = ssub.s32 %s22, %s34
    %s36 = ssub.s32 %s23, %s30
    %s37 = sor.u32 %s35, %s36
    %p38 = scmp.eq.s32.totalorder %s37, 0
    %s40 = sadd.s32 %s39, 1
    %s41 = scalar_select %p38, %s39, %s40
    %p44 = pneg %p38
    %p45 = scmp.eq.s32.totalorder %s15, 1
    %p46 = por %p44, %p45
    %p47 = scmp.ne.s32.totalorder %s39, %s42
    %p48 = scmp.eq.s32.totalorder %s15, 0
    %p49 = por %p47, %p48
    %p50 = scmp.ne.s32.totalorder %s39, %s42
    %p51 = scmp.eq.s32.totalorder %s20, 1
    %p52 = por %p50, %p51
    %p53 = scmp.ne.s32.totalorder %s42, %s43
    %p54 = scmp.eq.s32.totalorder %s20, 0
    %p55 = por %p53, %p54
    %p56 = scmp.ne.s32.totalorder %s42, %s43
    %p57 = scmp.eq.s32.totalorder %s21, 1
    %p58 = por %p56, %p57
    %p60 = scmp.ne.s32.totalorder %s43, %s59
    %p61 = scmp.eq.s32.totalorder %s21, 0
    %p62 = por %p60, %p61
    %s64 = sadd.s32 %s63, 1
    %p67 = scmp.eq.s32.totalorder %s15, 1
    %p68 = scmp.ne.s32.totalorder %s63, %s65
    %p69 = scmp.eq.s32.totalorder %s15, 0
    %p70 = por %p68, %p69
    %p71 = scmp.ne.s32.totalorder %s63, %s65
    %p72 = scmp.eq.s32.totalorder %s20, 1
    %p73 = por %p71, %p72
    %p74 = scmp.ne.s32.totalorder %s65, %s66
    %p75 = scmp.eq.s32.totalorder %s20, 0
    %p76 = por %p74, %p75
    %p77 = scmp.ne.s32.totalorder %s65, %s66
    %p78 = scmp.eq.s32.totalorder %s21, 1
    %p79 = por %p77, %p78
    %p81 = scmp.ne.s32.totalorder %s66, %s80
    %p82 = scmp.eq.s32.totalorder %s21, 0
    %p83 = por %p81, %p82
    %s84 = ssub.s32 %s22, %s34
    %p85 = scmp.eq.s32.totalorder %s84, 0
    %s87 = sadd.s32 %s86, 1
    %s88 = scalar_select %p85, %s86, %s87
    %p91 = pneg %p85
    %p92 = scmp.eq.s32.totalorder %s15, 1
    %p93 = por %p91, %p92
    %p94 = scmp.ne.s32.totalorder %s86, %s89
    %p95 = scmp.eq.s32.totalorder %s15, 0
    %p96 = por %p94, %p95
    %p97 = scmp.ne.s32.totalorder %s86, %s89
    %p98 = scmp.eq.s32.totalorder %s20, 1
    %p99 = por %p97, %p98
    %p100 = scmp.ne.s32.totalorder %s89, %s90
    %p101 = scmp.eq.s32.totalorder %s20, 0
    %p102 = por %p100, %p101
    %p103 = scmp.ne.s32.totalorder %s89, %s90
    %p104 = scmp.eq.s32.totalorder %s21, 1
    %p105 = por %p103, %p104
    %p107 = scmp.ne.s32.totalorder %s90, %s106
    %p108 = scmp.eq.s32.totalorder %s21, 0
    %p109 = por %p107, %p108
    %s110 = ssub.s32 %s22, %s34
    %p111 = scmp.eq.s32.totalorder %s110, 0
    %s113 = sadd.s32 %s112, 1
    %s114 = scalar_select %p111, %s112, %s113
    %p117 = pneg %p111
    %p118 = scmp.eq.s32.totalorder %s15, 1
    %p119 = por %p117, %p118
    %p120 = scmp.ne.s32.totalorder %s112, %s115
    %p121 = scmp.eq.s32.totalorder %s15, 0
    %p122 = por %p120, %p121
    %p123 = scmp.ne.s32.totalorder %s112, %s115
    %p124 = scmp.eq.s32.totalorder %s20, 1
    %p125 = por %p123, %p124
    %p126 = scmp.ne.s32.totalorder %s115, %s116
    %p127 = scmp.eq.s32.totalorder %s20, 0
    %p128 = por %p126, %p127
    %p129 = scmp.ne.s32.totalorder %s115, %s116
    %p130 = scmp.eq.s32.totalorder %s21, 1
    %p131 = por %p129, %p130
    %p133 = scmp.ne.s32.totalorder %s116, %s132
    %p134 = scmp.eq.s32.totalorder %s21, 0
    %p135 = por %p133, %p134
    %s136 = ssub.s32 %s23, %s30
    %p137 = scmp.eq.s32.totalorder %s136, 0
    %s139 = sadd.s32 %s138, 1
    %s140 = scalar_select %p137, %s138, %s139
    %p143 = pneg %p137
    %p144 = scmp.eq.s32.totalorder %s15, 1
    %p145 = por %p143, %p144
    %p146 = scmp.ne.s32.totalorder %s138, %s141
    %p147 = scmp.eq.s32.totalorder %s15, 0
    %p148 = por %p146, %p147
    %p149 = scmp.ne.s32.totalorder %s138, %s141
    %p150 = scmp.eq.s32.totalorder %s20, 1
    %p151 = por %p149, %p150
    %p152 = scmp.ne.s32.totalorder %s141, %s142
    %p153 = scmp.eq.s32.totalorder %s20, 0
    %p154 = por %p152, %p153
    %p155 = scmp.ne.s32.totalorder %s141, %s142
    %p156 = scmp.eq.s32.totalorder %s21, 1
    %p157 = por %p155, %p156
    %p159 = scmp.ne.s32.totalorder %s142, %s158
    %p160 = scmp.eq.s32.totalorder %s21, 0
    %p161 = por %p159, %p160
    %s163 = sadd.s32 %s162, 1
    %p166 = scmp.eq.s32.totalorder %s15, 1
    %p167 = scmp.ne.s32.totalorder %s162, %s164
    %p168 = scmp.eq.s32.totalorder %s15, 0
    %p169 = por %p167, %p168
    %p170 = scmp.ne.s32.totalorder %s162, %s164
    %p171 = scmp.eq.s32.totalorder %s20, 1
    %p172 = por %p170, %p171
    %p173 = scmp.ne.s32.totalorder %s164, %s165
    %p174 = scmp.eq.s32.totalorder %s20, 0
    %p175 = por %p173, %p174
    %p176 = scmp.ne.s32.totalorder %s164, %s165
    %p177 = scmp.eq.s32.totalorder %s21, 1
    %p178 = por %p176, %p177
    %p180 = scmp.ne.s32.totalorder %s165, %s179
    %p181 = scmp.eq.s32.totalorder %s21, 0
    %p182 = por %p180, %p181
    %s184 = sadd.s32 %s183, 1
    %p187 = scmp.eq.s32.totalorder %s15, 1
    %p188 = scmp.ne.s32.totalorder %s183, %s185
    %p189 = scmp.eq.s32.totalorder %s15, 0
    %p190 = por %p188, %p189
    %p191 = scmp.ne.s32.totalorder %s183, %s185
    %p192 = scmp.eq.s32.totalorder %s20, 1
    %p193 = por %p191, %p192
    %p194 = scmp.ne.s32.totalorder %s185, %s186
    %p195 = scmp.eq.s32.totalorder %s20, 0
    %p196 = por %p194, %p195
    %p197 = scmp.ne.s32.totalorder %s185, %s186
    %p198 = scmp.eq.s32.totalorder %s21, 1
    %p199 = por %p197, %p198
    %p201 = scmp.ne.s32.totalorder %s186, %s200
    %p202 = scmp.eq.s32.totalorder %s21, 0
    %p203 = por %p201, %p202
    %s204 = ssub.s32 %s22, %s34
    %s205 = ssub.s32 %s23, %s30
    %s206 = sor.u32 %s204, %s205
    %p207 = scmp.eq.s32.totalorder %s206, 0
    %s209 = sadd.s32 %s208, 1
    %s210 = scalar_select %p207, %s208, %s209
    %p213 = pneg %p207
    %p214 = scmp.eq.s32.totalorder %s15, 1
    %p215 = por %p213, %p214
    %p216 = scmp.ne.s32.totalorder %s208, %s211
    %p217 = scmp.eq.s32.totalorder %s15, 0
    %p218 = por %p216, %p217
    %p219 = scmp.ne.s32.totalorder %s208, %s211
    %p220 = scmp.eq.s32.totalorder %s20, 1
    %p221 = por %p219, %p220
    %p222 = scmp.ne.s32.totalorder %s211, %s212
    %p223 = scmp.eq.s32.totalorder %s20, 0
    %p224 = por %p222, %p223
    %p225 = scmp.ne.s32.totalorder %s211, %s212
    %p226 = scmp.eq.s32.totalorder %s21, 1
    %p227 = por %p225, %p226
    %p229 = scmp.ne.s32.totalorder %s212, %s228
    %p230 = scmp.eq.s32.totalorder %s21, 0
    %p231 = por %p229, %p230
    %s232 = ssub.s32 %s22, %s34
    %s233 = ssub.s32 %s23, %s30
    %s234 = sor.u32 %s232, %s233
    %p235 = scmp.eq.s32.totalorder %s234, 0
    %s237 = sadd.s32 %s236, 1
    %s238 = scalar_select %p235, %s236, %s237
    %p241 = pneg %p235
    %p242 = scmp.eq.s32.totalorder %s15, 1
    %p243 = por %p241, %p242
    %p244 = scmp.ne.s32.totalorder %s236, %s239
    %p245 = scmp.eq.s32.totalorder %s15, 0
    %p246 = por %p244, %p245
    %p247 = scmp.ne.s32.totalorder %s236, %s239
    %p248 = scmp.eq.s32.totalorder %s20, 1
    %p249 = por %p247, %p248
    %p250 = scmp.ne.s32.totalorder %s239, %s240
    %p251 = scmp.eq.s32.totalorder %s20, 0
    %p252 = por %p250, %p251
    %p253 = scmp.ne.s32.totalorder %s239, %s240
    %p254 = scmp.eq.s32.totalorder %s21, 1
    %p255 = por %p253, %p254
    %p257 = scmp.ne.s32.totalorder %s240, %s256
    %p258 = scmp.eq.s32.totalorder %s21, 0
    %p259 = por %p257, %p258
    %p260 = scmp.le.s32.totalorder 1, %s15
    %p261 = scmp.lt.s32.totalorder %s15, 3
    %p262 = pnand %p260, %p261
    %p263 = pneg %p262
    // Predicated region
    $region9: #{encoder_forward.6} parent=5 // pred_check
      _
    $region10: #{encoder_forward.6} parent=5 // pred_check_branch
      %265 = sbr.rel (%p262) target = $region12
    $region11: #{encoder_forward.6} parent=5 // pred_region
      %s266 = ssub.s32 %s15, 1
      // Predicated region
      $region13: #{encoder_forward.6} parent=11 // pred_check
        %p267 = pneg %p76
      $region14: #{encoder_forward.6} parent=11 // pred_check_branch
        %269 = sbr.rel (%p267) target = $region16
      $region15: #{encoder_forward.6} parent=11 // pred_region
        _
      $region16: #{encoder_forward.6} parent=11 // pred_fallthru
        _
      // Predicated region
      $region17: #{encoder_forward.6} parent=11 // pred_check
        %p270 = pneg %p154
      $region18: #{encoder_forward.6} parent=11 // pred_check_branch
        %272 = sbr.rel (%p270) target = $region20
      $region19: #{encoder_forward.6} parent=11 // pred_region
        %p273 = scmp.lt.s32.totalorder %s25, 0
        %s274 = scalar_select %p273, %s25, 0
        %s275 = smul.addr %s274, 4
        %s276 = scalar_lea.vmem %s4, %s275
      $region20: #{encoder_forward.6} parent=11 // pred_fallthru
        _
      // Predicated region
      $region21: #{encoder_forward.6} parent=11 // pred_check
        %p277 = pneg %p175
      $region22: #{encoder_forward.6} parent=11 // pred_check_branch
        %279 = sbr.rel (%p277) target = $region24
      $region23: #{encoder_forward.6} parent=11 // pred_region
        _
      $region24: #{encoder_forward.6} parent=11 // pred_fallthru
        _
      // Predicated region
      $region25: #{encoder_forward.6} parent=11 // pred_check
        %p280 = pneg %p196
      $region26: #{encoder_forward.6} parent=11 // pred_check_branch
        %282 = sbr.rel (%p280) target = $region28
      $region27: #{encoder_forward.6} parent=11 // pred_region
        _
      $region28: #{encoder_forward.6} parent=11 // pred_fallthru
        _
    $region12: #{encoder_forward.6} parent=5 // pred_fallthru
      _
    %p283 = scmp.lt.s32.totalorder %s15, 2
    // Predicated region
    $region29: #{encoder_forward.6} parent=5 // pred_check
      %p284 = pneg %p283
    $region30: #{encoder_forward.6} parent=5 // pred_check_branch
      %286 = sbr.rel (%p284) target = $region32
    $region31: #{encoder_forward.6} parent=5 // pred_region
      // Predicated region
      $region33: #{encoder_forward.6} parent=31 // pred_check
        %p287 = pneg %p49
      $region34: #{encoder_forward.6} parent=31 // pred_check_branch
        %289 = sbr.rel (%p287) target = $region36
      $region35: #{encoder_forward.6} parent=31 // pred_region
        %p290 = scmp.lt.s32.totalorder %s22, 1
        %s291 = scalar_select %p290, %s22, 1
        %p292 = scmp.lt.s32.totalorder %s23, 0
        %s293 = scalar_select %p292, %s23, 0
        %s294 = smul.addr %s291, 48
        %s295 = sadd.s32 %s293, %s294
        %s296 = smul.addr %s295, 4
        %s297 = scalar_lea.vmem %s0, %s296
      $region36: #{encoder_forward.6} parent=31 // pred_fallthru
        _
      // Predicated region
      $region37: #{encoder_forward.6} parent=31 // pred_check
        %p298 = pneg %p96
      $region38: #{encoder_forward.6} parent=31 // pred_check_branch
        %300 = sbr.rel (%p298) target = $region40
      $region39: #{encoder_forward.6} parent=31 // pred_region
        %p301 = scmp.lt.s32.totalorder %s22, 1
        %s302 = scalar_select %p301, %s22, 1
        %s303 = smul.addr %s302, 8
        %s304 = smul.addr %s303, 8
        %s305 = scalar_lea.vmem %s2, %s304
      $region40: #{encoder_forward.6} parent=31 // pred_fallthru
        _
      // Predicated region
      $region41: #{encoder_forward.6} parent=31 // pred_check
        %p306 = pneg %p122
      $region42: #{encoder_forward.6} parent=31 // pred_check_branch
        %308 = sbr.rel (%p306) target = $region44
      $region43: #{encoder_forward.6} parent=31 // pred_region
        %p309 = scmp.lt.s32.totalorder %s22, 1
        %s310 = scalar_select %p309, %s22, 1
        %s311 = smul.addr %s310, 8
        %s312 = smul.addr %s311, 8
        %s313 = scalar_lea.vmem %s3, %s312
      $region44: #{encoder_forward.6} parent=31 // pred_fallthru
        _
    $region32: #{encoder_forward.6} parent=5 // pred_fallthru
      _
    %p314 = scmp.le.s32.totalorder 1, %s15
    %p315 = scmp.lt.s32.totalorder %s15, 3
    %p316 = pnand %p314, %p315
    %p317 = pneg %p316
    // Predicated region
    $region45: #{encoder_forward.6} parent=5 // pred_check
      _
    $region46: #{encoder_forward.6} parent=5 // pred_check_branch
      %319 = sbr.rel (%p316) target = $region48
    $region47: #{encoder_forward.6} parent=5 // pred_region
      %s320 = ssub.s32 %s15, 1
      %p321 = scmp.lt.s32.totalorder %s24, 1
      %s322 = scalar_select %p321, %s24, 1
      %p323 = scmp.lt.s32.totalorder %s25, 0
      %s324 = scalar_select %p323, %s25, 0
      %s325 = smul.addr %s322, 48
      %s326 = sadd.s32 %s324, %s325
      %s327 = smul.addr %s326, 4
      %s328 = scalar_lea.vmem %s0, %s327
      %p329 = pneg %p55
      %p330 = pneg %p52
      %p331 = pneg %p76
      %p332 = pneg %p73
      %p333 = scmp.lt.s32.totalorder %s24, 1
      %s334 = scalar_select %p333, %s24, 1
      %s335 = smul.addr %s334, 8
      %s336 = smul.addr %s335, 8
      %s337 = scalar_lea.vmem %s2, %s336
      %p338 = pneg %p102
      %p339 = pneg %p99
      %p340 = scmp.lt.s32.totalorder %s24, 1
      %s341 = scalar_select %p340, %s24, 1
      %s342 = smul.addr %s341, 8
      %s343 = smul.addr %s342, 8
      %s344 = scalar_lea.vmem %s3, %s343
      %p345 = pneg %p128
      %p346 = pneg %p125
      %p347 = scmp.lt.s32.totalorder %s25, 0
      %s348 = scalar_select %p347, %s25, 0
      %s349 = smul.addr %s348, 4
      %s350 = scalar_lea.vmem %s4, %s349
      %p351 = pneg %p154
      %p352 = pneg %p151
      %p353 = pneg %p175
      %p354 = pneg %p172
      %p355 = pneg %p196
      %p356 = pneg %p193
      %p357 = pneg %p224
      %p358 = pneg %p221
      %p359 = scmp.lt.s32.totalorder %s24, 1
      %s360 = scalar_select %p359, %s24, 1
      %p361 = scmp.lt.s32.totalorder %s25, 0
      %s362 = scalar_select %p361, %s25, 0
      %s363 = smul.addr %s360, 16
      %s364 = sadd.s32 %s362, %s363
      %s365 = smul.addr %s364, 4
      %s366 = scalar_lea.vmem %s7, %s365
      %p367 = pneg %p252
      %p368 = pneg %p249
      %p369 = scmp.lt.s32.totalorder %s24, 1
      %s370 = scalar_select %p369, %s24, 1
      %p371 = scmp.lt.s32.totalorder %s25, 0
      %s372 = scalar_select %p371, %s25, 0
      %s373 = smul.addr %s372, 2
      %s374 = smul.addr %s370, 2
      %s375 = sadd.s32 %s373, %s374
      %s376 = smul.addr %s375, 8
      %s377 = scalar_lea.vmem %s8, %s376
      %p378 = scmp.lt.s32.totalorder %s24, 1
      %s379 = scalar_select %p378, %s24, 1
      %p380 = scmp.lt.s32.totalorder %s25, 0
      %s381 = scalar_select %p380, %s25, 0
      %s382 = smul.addr %s379, 48
      %s383 = sadd.s32 %s381, %s382
      %s384 = smul.addr %s383, 4
      %s385 = scalar_lea.vmem %s0, %s384
      %p386 = scmp.lt.s32.totalorder %s24, 1
      %s387 = scalar_select %p386, %s24, 1
      %s388 = smul.addr %s387, 8
      %s389 = smul.addr %s388, 8
      %s390 = scalar_lea.vmem %s2, %s389
      %p391 = scmp.lt.s32.totalorder %s24, 1
      %s392 = scalar_select %p391, %s24, 1
      %s393 = smul.addr %s392, 8
      %s394 = smul.addr %s393, 8
      %s395 = scalar_lea.vmem %s3, %s394
      %p396 = scmp.lt.s32.totalorder %s25, 0
      %s397 = scalar_select %p396, %s25, 0
      %s398 = smul.addr %s397, 4
      %s399 = scalar_lea.vmem %s4, %s398
      %p400 = scmp.lt.s32.totalorder %s24, 1
      %s401 = scalar_select %p400, %s24, 1
      %p402 = scmp.lt.s32.totalorder %s25, 0
      %s403 = scalar_select %p402, %s25, 0
      %s404 = smul.addr %s401, 16
      %s405 = sadd.s32 %s403, %s404
      %s406 = smul.addr %s405, 4
      %s407 = scalar_lea.vmem %s7, %s406
      %p408 = scmp.lt.s32.totalorder %s24, 1
      %s409 = scalar_select %p408, %s24, 1
      %p410 = scmp.lt.s32.totalorder %s25, 0
      %s411 = scalar_select %p410, %s25, 0
      %s412 = smul.addr %s411, 2
      %s413 = smul.addr %s409, 2
      %s414 = sadd.s32 %s412, %s413
      %s415 = smul.addr %s414, 8
      %s416 = scalar_lea.vmem %s8, %s415
      %v418 = vld [vmem:[%s385] sm:$0xf]
      %v419 = vld [vmem:[%s385 + $0x4] sm:$0xf]
      %v420 = vld [vmem:[%s385 + $0x8] sm:$0xf]
      %v421 = vld [vmem:[%s385 + $0xc] sm:$0xf]
      %v422 = vld [vmem:[%s385 + $0x10] sm:$0xf]
      %v423 = vld [vmem:[%s385 + $0x14] sm:$0xf]
      %v424 = vld [vmem:[%s385 + $0x18] sm:$0xf]
      %v425 = vld [vmem:[%s385 + $0x1c] sm:$0xf]
      %v426 = vunpack.c.l.bf16 %v418
      %v427 = vunpack.c.l.bf16 %v419
      %v428 = vunpack.c.l.bf16 %v420
      %v429 = vunpack.c.l.bf16 %v421
      %v430 = vunpack.c.l.bf16 %v422
      %v431 = vunpack.c.l.bf16 %v423
      %v432 = vunpack.c.l.bf16 %v424
      %v433 = vunpack.c.l.bf16 %v425
      %v434 = vld [vmem:[%s390] sm:$0xff]
      %v435 = vld [vmem:[%s390 + $0x8] sm:$0xff]
      %v436 = vld [vmem:[%s390 + $0x10] sm:$0xff]
      %v437 = vld [vmem:[%s390 + $0x18] sm:$0xff]
      %v438 = vld [vmem:[%s390 + $0x20] sm:$0xff]
      %v439 = vld [vmem:[%s390 + $0x28] sm:$0xff]
      %v440 = vld [vmem:[%s390 + $0x30] sm:$0xff]
      %v441 = vld [vmem:[%s390 + $0x38] sm:$0xff]
      %443 = vset.pattern.permute.xlu0 0
      %444 = vperm.xlu0 %443, %v434
      %v445 = vpop.permute.xlu0 %444
      %448 = vset.pattern.permute.xlu0 0
      %449 = vperm.xlu0 %448, %v435
      %v450 = vpop.permute.xlu0 %449
      %453 = vset.pattern.permute.xlu0 0
      %454 = vperm.xlu0 %453, %v436
      %v455 = vpop.permute.xlu0 %454
      %458 = vset.pattern.permute.xlu0 0
      %459 = vperm.xlu0 %458, %v437
      %v460 = vpop.permute.xlu0 %459
      %463 = vset.pattern.permute.xlu0 0
      %464 = vperm.xlu0 %463, %v438
      %v465 = vpop.permute.xlu0 %464
      %468 = vset.pattern.permute.xlu0 0
      %469 = vperm.xlu0 %468, %v439
      %v470 = vpop.permute.xlu0 %469
      %473 = vset.pattern.permute.xlu0 0
      %474 = vperm.xlu0 %473, %v440
      %v475 = vpop.permute.xlu0 %474
      %478 = vset.pattern.permute.xlu0 0
      %479 = vperm.xlu0 %478, %v441
      %v480 = vpop.permute.xlu0 %479
      %v482 = vmul.f32 %v426, %v445
      %v483 = vmul.f32 %v427, %v450
      %v484 = vmul.f32 %v428, %v455
      %v485 = vmul.f32 %v429, %v460
      %v486 = vmul.f32 %v430, %v465
      %v487 = vmul.f32 %v431, %v470
      %v488 = vmul.f32 %v432, %v475
      %v489 = vmul.f32 %v433, %v480
      %v490 = vld [vmem:[%s395] sm:$0xff]
      %v491 = vld [vmem:[%s395 + $0x8] sm:$0xff]
      %v492 = vld [vmem:[%s395 + $0x10] sm:$0xff]
      %v493 = vld [vmem:[%s395 + $0x18] sm:$0xff]
      %v494 = vld [vmem:[%s395 + $0x20] sm:$0xff]
      %v495 = vld [vmem:[%s395 + $0x28] sm:$0xff]
      %v496 = vld [vmem:[%s395 + $0x30] sm:$0xff]
      %v497 = vld [vmem:[%s395 + $0x38] sm:$0xff]
      %499 = vset.pattern.permute.xlu0 0
      %500 = vperm.xlu0 %499, %v490
      %v501 = vpop.permute.xlu0 %500
      %504 = vset.pattern.permute.xlu0 0
      %505 = vperm.xlu0 %504, %v491
      %v506 = vpop.permute.xlu0 %505
      %509 = vset.pattern.permute.xlu0 0
      %510 = vperm.xlu0 %509, %v492
      %v511 = vpop.permute.xlu0 %510
      %514 = vset.pattern.permute.xlu0 0
      %515 = vperm.xlu0 %514, %v493
      %v516 = vpop.permute.xlu0 %515
      %519 = vset.pattern.permute.xlu0 0
      %520 = vperm.xlu0 %519, %v494
      %v521 = vpop.permute.xlu0 %520
      %524 = vset.pattern.permute.xlu0 0
      %525 = vperm.xlu0 %524, %v495
      %v526 = vpop.permute.xlu0 %525
      %529 = vset.pattern.permute.xlu0 0
      %530 = vperm.xlu0 %529, %v496
      %v531 = vpop.permute.xlu0 %530
      %534 = vset.pattern.permute.xlu0 0
      %535 = vperm.xlu0 %534, %v497
      %v536 = vpop.permute.xlu0 %535
      %v538 = vadd.f32 %v482, %v501
      %v539 = vadd.f32 %v483, %v506
      %v540 = vadd.f32 %v484, %v511
      %v541 = vadd.f32 %v485, %v516
      %v542 = vadd.f32 %v486, %v521
      %v543 = vadd.f32 %v487, %v526
      %v544 = vadd.f32 %v488, %v531
      %v545 = vadd.f32 %v489, %v536
      %v546 = vmax.f32 %v538, 0.0
      %v547 = vmax.f32 %v539, 0.0
      %v548 = vmax.f32 %v540, 0.0
      %v549 = vmax.f32 %v541, 0.0
      %v550 = vmax.f32 %v542, 0.0
      %v551 = vmax.f32 %v543, 0.0
      %v552 = vmax.f32 %v544, 0.0
      %v553 = vmax.f32 %v545, 0.0
      %s554 = scalar_lea.vmem %s385, 32
      %v555 = vld [vmem:[%s554] sm:$0xf]
      %v556 = vld [vmem:[%s554 + $0x4] sm:$0xf]
      %v557 = vld [vmem:[%s554 + $0x8] sm:$0xf]
      %v558 = vld [vmem:[%s554 + $0xc] sm:$0xf]
      %v559 = vld [vmem:[%s554 + $0x10] sm:$0xf]
      %v560 = vld [vmem:[%s554 + $0x14] sm:$0xf]
      %v561 = vld [vmem:[%s554 + $0x18] sm:$0xf]
      %v562 = vld [vmem:[%s554 + $0x1c] sm:$0xf]
      %v563 = vunpack.c.l.bf16 %v555
      %v564 = vunpack.c.l.bf16 %v556
      %v565 = vunpack.c.l.bf16 %v557
      %v566 = vunpack.c.l.bf16 %v558
      %v567 = vunpack.c.l.bf16 %v559
      %v568 = vunpack.c.l.bf16 %v560
      %v569 = vunpack.c.l.bf16 %v561
      %v570 = vunpack.c.l.bf16 %v562
      %v571 = vmul.f32 %v563, %v445
      %v572 = vmul.f32 %v564, %v450
      %v573 = vmul.f32 %v565, %v455
      %v574 = vmul.f32 %v566, %v460
      %v575 = vmul.f32 %v567, %v465
      %v576 = vmul.f32 %v568, %v470
      %v577 = vmul.f32 %v569, %v475
      %v578 = vmul.f32 %v570, %v480
      %v579 = vadd.f32 %v571, %v501
      %v580 = vadd.f32 %v572, %v506
      %v581 = vadd.f32 %v573, %v511
      %v582 = vadd.f32 %v574, %v516
      %v583 = vadd.f32 %v575, %v521
      %v584 = vadd.f32 %v576, %v526
      %v585 = vadd.f32 %v577, %v531
      %v586 = vadd.f32 %v578, %v536
      %v587 = vmax.f32 %v579, 0.0
      %v588 = vmax.f32 %v580, 0.0
      %v589 = vmax.f32 %v581, 0.0
      %v590 = vmax.f32 %v582, 0.0
      %v591 = vmax.f32 %v583, 0.0
      %v592 = vmax.f32 %v584, 0.0
      %v593 = vmax.f32 %v585, 0.0
      %v594 = vmax.f32 %v586, 0.0
      %s595 = scalar_lea.vmem %s385, 64
      %v596 = vld [vmem:[%s595] sm:$0xf]
      %v597 = vld [vmem:[%s595 + $0x4] sm:$0xf]
      %v598 = vld [vmem:[%s595 + $0x8] sm:$0xf]
      %v599 = vld [vmem:[%s595 + $0xc] sm:$0xf]
      %v600 = vld [vmem:[%s595 + $0x10] sm:$0xf]
      %v601 = vld [vmem:[%s595 + $0x14] sm:$0xf]
      %v602 = vld [vmem:[%s595 + $0x18] sm:$0xf]
      %v603 = vld [vmem:[%s595 + $0x1c] sm:$0xf]
      %v604 = vunpack.c.l.bf16 %v596
      %v605 = vunpack.c.l.bf16 %v597
      %v606 = vunpack.c.l.bf16 %v598
      %v607 = vunpack.c.l.bf16 %v599
      %v608 = vunpack.c.l.bf16 %v600
      %v609 = vunpack.c.l.bf16 %v601
      %v610 = vunpack.c.l.bf16 %v602
      %v611 = vunpack.c.l.bf16 %v603
      %v612 = vmul.f32 %v604, %v445
      %v613 = vmul.f32 %v605, %v450
      %v614 = vmul.f32 %v606, %v455
      %v615 = vmul.f32 %v607, %v460
      %v616 = vmul.f32 %v608, %v465
      %v617 = vmul.f32 %v609, %v470
      %v618 = vmul.f32 %v610, %v475
      %v619 = vmul.f32 %v611, %v480
      %v620 = vadd.f32 %v612, %v501
      %v621 = vadd.f32 %v613, %v506
      %v622 = vadd.f32 %v614, %v511
      %v623 = vadd.f32 %v615, %v516
      %v624 = vadd.f32 %v616, %v521
      %v625 = vadd.f32 %v617, %v526
      %v626 = vadd.f32 %v618, %v531
      %v627 = vadd.f32 %v619, %v536
      %v628 = vmax.f32 %v620, 0.0
      %v629 = vmax.f32 %v621, 0.0
      %v630 = vmax.f32 %v622, 0.0
      %v631 = vmax.f32 %v623, 0.0
      %v632 = vmax.f32 %v624, 0.0
      %v633 = vmax.f32 %v625, 0.0
      %v634 = vmax.f32 %v626, 0.0
      %v635 = vmax.f32 %v627, 0.0
      %s636 = scalar_lea.vmem %s385, 96
      %v637 = vld [vmem:[%s636] sm:$0xf]
      %v638 = vld [vmem:[%s636 + $0x4] sm:$0xf]
      %v639 = vld [vmem:[%s636 + $0x8] sm:$0xf]
      %v640 = vld [vmem:[%s636 + $0xc] sm:$0xf]
      %v641 = vld [vmem:[%s636 + $0x10] sm:$0xf]
      %v642 = vld [vmem:[%s636 + $0x14] sm:$0xf]
      %v643 = vld [vmem:[%s636 + $0x18] sm:$0xf]
      %v644 = vld [vmem:[%s636 + $0x1c] sm:$0xf]
      %v645 = vunpack.c.l.bf16 %v637
      %v646 = vunpack.c.l.bf16 %v638
      %v647 = vunpack.c.l.bf16 %v639
      %v648 = vunpack.c.l.bf16 %v640
      %v649 = vunpack.c.l.bf16 %v641
      %v650 = vunpack.c.l.bf16 %v642
      %v651 = vunpack.c.l.bf16 %v643
      %v652 = vunpack.c.l.bf16 %v644
      %v653 = vmul.f32 %v645, %v445
      %v654 = vmul.f32 %v646, %v450
      %v655 = vmul.f32 %v647, %v455
      %v656 = vmul.f32 %v648, %v460
      %v657 = vmul.f32 %v649, %v465
      %v658 = vmul.f32 %v650, %v470
      %v659 = vmul.f32 %v651, %v475
      %v660 = vmul.f32 %v652, %v480
      %v661 = vadd.f32 %v653, %v501
      %v662 = vadd.f32 %v654, %v506
      %v663 = vadd.f32 %v655, %v511
      %v664 = vadd.f32 %v656, %v516
      %v665 = vadd.f32 %v657, %v521
      %v666 = vadd.f32 %v658, %v526
      %v667 = vadd.f32 %v659, %v531
      %v668 = vadd.f32 %v660, %v536
      %v669 = vmax.f32 %v661, 0.0
      %v670 = vmax.f32 %v662, 0.0
      %v671 = vmax.f32 %v663, 0.0
      %v672 = vmax.f32 %v664, 0.0
      %v673 = vmax.f32 %v665, 0.0
      %v674 = vmax.f32 %v666, 0.0
      %v675 = vmax.f32 %v667, 0.0
      %v676 = vmax.f32 %v668, 0.0
      %s677 = scalar_lea.vmem %s385, 128
      %v678 = vld [vmem:[%s677] sm:$0xf]
      %v679 = vld [vmem:[%s677 + $0x4] sm:$0xf]
      %v680 = vld [vmem:[%s677 + $0x8] sm:$0xf]
      %v681 = vld [vmem:[%s677 + $0xc] sm:$0xf]
      %v682 = vld [vmem:[%s677 + $0x10] sm:$0xf]
      %v683 = vld [vmem:[%s677 + $0x14] sm:$0xf]
      %v684 = vld [vmem:[%s677 + $0x18] sm:$0xf]
      %v685 = vld [vmem:[%s677 + $0x1c] sm:$0xf]
      %v686 = vunpack.c.l.bf16 %v678
      %v687 = vunpack.c.l.bf16 %v679
      %v688 = vunpack.c.l.bf16 %v680
      %v689 = vunpack.c.l.bf16 %v681
      %v690 = vunpack.c.l.bf16 %v682
      %v691 = vunpack.c.l.bf16 %v683
      %v692 = vunpack.c.l.bf16 %v684
      %v693 = vunpack.c.l.bf16 %v685
      %v694 = vmul.f32 %v686, %v445
      %v695 = vmul.f32 %v687, %v450
      %v696 = vmul.f32 %v688, %v455
      %v697 = vmul.f32 %v689, %v460
      %v698 = vmul.f32 %v690, %v465
      %v699 = vmul.f32 %v691, %v470
      %v700 = vmul.f32 %v692, %v475
      %v701 = vmul.f32 %v693, %v480
      %v702 = vadd.f32 %v694, %v501
      %v703 = vadd.f32 %v695, %v506
      %v704 = vadd.f32 %v696, %v511
      %v705 = vadd.f32 %v697, %v516
      %v706 = vadd.f32 %v698, %v521
      %v707 = vadd.f32 %v699, %v526
      %v708 = vadd.f32 %v700, %v531
      %v709 = vadd.f32 %v701, %v536
      %v710 = vmax.f32 %v702, 0.0
      %v711 = vmax.f32 %v703, 0.0
      %v712 = vmax.f32 %v704, 0.0
      %v713 = vmax.f32 %v705, 0.0
      %v714 = vmax.f32 %v706, 0.0
      %v715 = vmax.f32 %v707, 0.0
      %v716 = vmax.f32 %v708, 0.0
      %v717 = vmax.f32 %v709, 0.0
      %s718 = scalar_lea.vmem %s385, 160
      %v719 = vld [vmem:[%s718] sm:$0xf]
      %v720 = vld [vmem:[%s718 + $0x4] sm:$0xf]
      %v721 = vld [vmem:[%s718 + $0x8] sm:$0xf]
      %v722 = vld [vmem:[%s718 + $0xc] sm:$0xf]
      %v723 = vld [vmem:[%s718 + $0x10] sm:$0xf]
      %v724 = vld [vmem:[%s718 + $0x14] sm:$0xf]
      %v725 = vld [vmem:[%s718 + $0x18] sm:$0xf]
      %v726 = vld [vmem:[%s718 + $0x1c] sm:$0xf]
      %v727 = vunpack.c.l.bf16 %v719
      %v728 = vunpack.c.l.bf16 %v720
      %v729 = vunpack.c.l.bf16 %v721
      %v730 = vunpack.c.l.bf16 %v722
      %v731 = vunpack.c.l.bf16 %v723
      %v732 = vunpack.c.l.bf16 %v724
      %v733 = vunpack.c.l.bf16 %v725
      %v734 = vunpack.c.l.bf16 %v726
      %v735 = vmul.f32 %v727, %v445
      %v736 = vmul.f32 %v728, %v450
      %v737 = vmul.f32 %v729, %v455
      %v738 = vmul.f32 %v730, %v460
      %v739 = vmul.f32 %v731, %v465
      %v740 = vmul.f32 %v732, %v470
      %v741 = vmul.f32 %v733, %v475
      %v742 = vmul.f32 %v734, %v480
      %v743 = vadd.f32 %v735, %v501
      %v744 = vadd.f32 %v736, %v506
      %v745 = vadd.f32 %v737, %v511
      %v746 = vadd.f32 %v738, %v516
      %v747 = vadd.f32 %v739, %v521
      %v748 = vadd.f32 %v740, %v526
      %v749 = vadd.f32 %v741, %v531
      %v750 = vadd.f32 %v742, %v536
      %v751 = vmax.f32 %v743, 0.0
      %v752 = vmax.f32 %v744, 0.0
      %v753 = vmax.f32 %v745, 0.0
      %v754 = vmax.f32 %v746, 0.0
      %v755 = vmax.f32 %v747, 0.0
      %v756 = vmax.f32 %v748, 0.0
      %v757 = vmax.f32 %v749, 0.0
      %v758 = vmax.f32 %v750, 0.0
      %v759 = vld [vmem:[%s399] sm:$0x1]
      %v760 = vld [vmem:[%s399 + $0x1] sm:$0x1]
      %v761 = vld [vmem:[%s399 + $0x2] sm:$0x1]
      %770 = vrot.lane.b32.xlu0 %v751, 1
      %v771 = vpop.permute.xlu0 %770
      %772 = vrot.lane.b32.xlu0 %v752, 1
      %v773 = vpop.permute.xlu0 %772
      %774 = vrot.lane.b32.xlu0 %v753, 1
      %v775 = vpop.permute.xlu0 %774
      %776 = vrot.lane.b32.xlu0 %v754, 1
      %v777 = vpop.permute.xlu0 %776
      %778 = vrot.lane.b32.xlu0 %v755, 1
      %v779 = vpop.permute.xlu0 %778
      %780 = vrot.lane.b32.xlu0 %v756, 1
      %v781 = vpop.permute.xlu0 %780
      %782 = vrot.lane.b32.xlu0 %v757, 1
      %v783 = vpop.permute.xlu0 %782
      %784 = vrot.lane.b32.xlu0 %v758, 1
      %v785 = vpop.permute.xlu0 %784
      %vm794 = vcmask 7168
      %v795 = vsel %vm794, %v751, %v771
      %v796 = vsel %vm794, %v752, %v773
      %v797 = vsel %vm794, %v753, %v775
      %v798 = vsel %vm794, %v754, %v777
      %v799 = vsel %vm794, %v755, %v779
      %v800 = vsel %vm794, %v756, %v781
      %v801 = vsel %vm794, %v757, %v783
      %v802 = vsel %vm794, %v758, %v785
      %v803 = vlaneseq
      %v804 = vshrl.u32 %v803, 7
      %v805 = vsub.s32 0, %v804
      %v806 = vrot.slane %v761, %v805
      %v807 = vmul.f32 %v795, %v806
      %v808 = vmul.f32 %v796, %v806
      %v809 = vmul.f32 %v797, %v806
      %v810 = vmul.f32 %v798, %v806
      %v811 = vmul.f32 %v799, %v806
      %v812 = vmul.f32 %v800, %v806
      %v813 = vmul.f32 %v801, %v806
      %v814 = vmul.f32 %v802, %v806
      %v815 = vlaneseq
      %v816 = vshrl.u32 %v815, 7
      %v817 = vsub.s32 0, %v816
      %v818 = vrot.slane %v760, %v817
      %v819 = vmul.f32 %v710, %v818
      %v820 = vmul.f32 %v711, %v818
      %v821 = vmul.f32 %v712, %v818
      %v822 = vmul.f32 %v713, %v818
      %v823 = vmul.f32 %v714, %v818
      %v824 = vmul.f32 %v715, %v818
      %v825 = vmul.f32 %v716, %v818
      %v826 = vmul.f32 %v717, %v818
      %v827 = vmul.f32 %v751, %v818
      %v828 = vmul.f32 %v752, %v818
      %v829 = vmul.f32 %v753, %v818
      %v830 = vmul.f32 %v754, %v818
      %v831 = vmul.f32 %v755, %v818
      %v832 = vmul.f32 %v756, %v818
      %v833 = vmul.f32 %v757, %v818
      %v834 = vmul.f32 %v758, %v818
      %843 = vrot.lane.b32.xlu0 %v587, 1
      %v844 = vpop.permute.xlu0 %843
      %845 = vrot.lane.b32.xlu0 %v588, 1
      %v846 = vpop.permute.xlu0 %845
      %847 = vrot.lane.b32.xlu0 %v589, 1
      %v848 = vpop.permute.xlu0 %847
      %849 = vrot.lane.b32.xlu0 %v590, 1
      %v850 = vpop.permute.xlu0 %849
      %851 = vrot.lane.b32.xlu0 %v591, 1
      %v852 = vpop.permute.xlu0 %851
      %853 = vrot.lane.b32.xlu0 %v592, 1
      %v854 = vpop.permute.xlu0 %853
      %855 = vrot.lane.b32.xlu0 %v593, 1
      %v856 = vpop.permute.xlu0 %855
      %857 = vrot.lane.b32.xlu0 %v594, 1
      %v858 = vpop.permute.xlu0 %857
      %v867 = vsel %vm794, %v587, %v844
      %v868 = vsel %vm794, %v588, %v846
      %v869 = vsel %vm794, %v589, %v848
      %v870 = vsel %vm794, %v590, %v850
      %v871 = vsel %vm794, %v591, %v852
      %v872 = vsel %vm794, %v592, %v854
      %v873 = vsel %vm794, %v593, %v856
      %v874 = vsel %vm794, %v594, %v858
      %v875 = vlaneseq
      %v876 = vshrl.u32 %v875, 7
      %v877 = vsub.s32 0, %v876
      %v878 = vrot.slane %v759, %v877
      %v879 = vmul.f32 %v867, %v878
      %v880 = vmul.f32 %v868, %v878
      %v881 = vmul.f32 %v869, %v878
      %v882 = vmul.f32 %v870, %v878
      %v883 = vmul.f32 %v871, %v878
      %v884 = vmul.f32 %v872, %v878
      %v885 = vmul.f32 %v873, %v878
      %v886 = vmul.f32 %v874, %v878
      %895 = vrot.lane.b32.xlu0 %v669, 1
      %v896 = vpop.permute.xlu0 %895
      %897 = vrot.lane.b32.xlu0 %v670, 1
      %v898 = vpop.permute.xlu0 %897
      %899 = vrot.lane.b32.xlu0 %v671, 1
      %v900 = vpop.permute.xlu0 %899
      %901 = vrot.lane.b32.xlu0 %v672, 1
      %v902 = vpop.permute.xlu0 %901
      %903 = vrot.lane.b32.xlu0 %v673, 1
      %v904 = vpop.permute.xlu0 %903
      %905 = vrot.lane.b32.xlu0 %v674, 1
      %v906 = vpop.permute.xlu0 %905
      %907 = vrot.lane.b32.xlu0 %v675, 1
      %v908 = vpop.permute.xlu0 %907
      %909 = vrot.lane.b32.xlu0 %v676, 1
      %v910 = vpop.permute.xlu0 %909
      %v919 = vsel %vm794, %v669, %v896
      %v920 = vsel %vm794, %v670, %v898
      %v921 = vsel %vm794, %v671, %v900
      %v922 = vsel %vm794, %v672, %v902
      %v923 = vsel %vm794, %v673, %v904
      %v924 = vsel %vm794, %v674, %v906
      %v925 = vsel %vm794, %v675, %v908
      %v926 = vsel %vm794, %v676, %v910
      %v927 = vmul.f32 %v919, %v878
      %v928 = vmul.f32 %v920, %v878
      %v929 = vmul.f32 %v921, %v878
      %v930 = vmul.f32 %v922, %v878
      %v931 = vmul.f32 %v923, %v878
      %v932 = vmul.f32 %v924, %v878
      %v933 = vmul.f32 %v925, %v878
      %v934 = vmul.f32 %v926, %v878
      %v935 = vpack.c.bf16 %v808, %v807
      %v936 = vpack.c.bf16 %v810, %v809
      %v937 = vpack.c.bf16 %v812, %v811
      %v938 = vpack.c.bf16 %v814, %v813
      %v939 = vpack.c.bf16 %v820, %v819
      %v940 = vpack.c.bf16 %v822, %v821
      %v941 = vpack.c.bf16 %v824, %v823
      %v942 = vpack.c.bf16 %v826, %v825
      %v943 = vpack.c.bf16 %v828, %v827
      %v944 = vpack.c.bf16 %v830, %v829
      %v945 = vpack.c.bf16 %v832, %v831
      %v946 = vpack.c.bf16 %v834, %v833
      %v947 = vpack.c.bf16 %v880, %v879
      %v948 = vpack.c.bf16 %v882, %v881
      %v949 = vpack.c.bf16 %v884, %v883
      %v950 = vpack.c.bf16 %v886, %v885
      %v951 = vpack.c.bf16 %v547, %v546
      %v952 = vpack.c.bf16 %v549, %v548
      %v953 = vpack.c.bf16 %v551, %v550
      %v954 = vpack.c.bf16 %v553, %v552
      %v955 = vpack.c.bf16 %v588, %v587
      %v956 = vpack.c.bf16 %v590, %v589
      %v957 = vpack.c.bf16 %v592, %v591
      %v958 = vpack.c.bf16 %v594, %v593
      %v959 = vpack.c.bf16 %v928, %v927
      %v960 = vpack.c.bf16 %v930, %v929
      %v961 = vpack.c.bf16 %v932, %v931
      %v962 = vpack.c.bf16 %v934, %v933
      %v963 = vpack.c.bf16 %v629, %v628
      %v964 = vpack.c.bf16 %v631, %v630
      %v965 = vpack.c.bf16 %v633, %v632
      %v966 = vpack.c.bf16 %v635, %v634
      %v967 = vpack.c.bf16 %v670, %v669
      %v968 = vpack.c.bf16 %v672, %v671
      %v969 = vpack.c.bf16 %v674, %v673
      %v970 = vpack.c.bf16 %v676, %v675
      %v971 = vld [vmem:[%s1] sm:$0xff]
      %v972 = vld [vmem:[%s1 + $0x8] sm:$0xff]
      %v973 = vld [vmem:[%s1 + $0x10] sm:$0xf]
      %v974 = vld [vmem:[%s1 + $0x14] sm:$0xff]
      %v975 = vld [vmem:[%s1 + $0x1c] sm:$0xff]
      %v976 = vld [vmem:[%s1 + $0x24] sm:$0xf]
      %v977 = vld [vmem:[%s1 + $0x28] sm:$0xff]
      %v978 = vld [vmem:[%s1 + $0x30] sm:$0xff]
      %v979 = vld [vmem:[%s1 + $0x38] sm:$0xf]
      %v980 = vld [vmem:[%s1 + $0x3c] sm:$0xff]
      %v981 = vld [vmem:[%s1 + $0x44] sm:$0xff]
      %v982 = vld [vmem:[%s1 + $0x4c] sm:$0xf]
      %v983 = vld [vmem:[%s1 + $0x50] sm:$0xff]
      %v984 = vld [vmem:[%s1 + $0x58] sm:$0xff]
      %v985 = vld [vmem:[%s1 + $0x60] sm:$0xf]
      %v986 = vld [vmem:[%s1 + $0x64] sm:$0xff]
      %v987 = vld [vmem:[%s1 + $0x6c] sm:$0xff]
      %v988 = vld [vmem:[%s1 + $0x74] sm:$0xf]
      %v989 = vld [vmem:[%s1 + $0x78] sm:$0xff]
      %v990 = vld [vmem:[%s1 + $0x80] sm:$0xff]
      %v991 = vld [vmem:[%s1 + $0x88] sm:$0xf]
      %v992 = vld [vmem:[%s1 + $0x8c] sm:$0xff]
      %v993 = vld [vmem:[%s1 + $0x94] sm:$0xff]
      %v994 = vld [vmem:[%s1 + $0x9c] sm:$0xf]
      %v995 = vld [vmem:[%s1 + $0xa0] sm:$0xff]
      %v996 = vld [vmem:[%s1 + $0xa8] sm:$0xff]
      %v997 = vld [vmem:[%s1 + $0xb0] sm:$0xf]
      %v998 = vld [vmem:[%s1 + $0xb4] sm:$0xff]
      %v999 = vld [vmem:[%s1 + $0xbc] sm:$0xff]
      %v1000 = vld [vmem:[%s1 + $0xc4] sm:$0xf]
      %v1001 = vld [vmem:[%s1 + $0xc8] sm:$0xff]
      %v1002 = vld [vmem:[%s1 + $0xd0] sm:$0xff]
      %v1003 = vld [vmem:[%s1 + $0xd8] sm:$0xf]
      %v1004 = vld [vmem:[%s1 + $0xdc] sm:$0xff]
      %v1005 = vld [vmem:[%s1 + $0xe4] sm:$0xff]
      %v1006 = vld [vmem:[%s1 + $0xec] sm:$0xf]
      %v1007 = vld [vmem:[%s1 + $0xf0] sm:$0xff]
      %v1008 = vld [vmem:[%s1 + $0xf8] sm:$0xff]
      %v1009 = vld [vmem:[%s1 + $0x100] sm:$0xf]
      %v1010 = vld [vmem:[%s1 + $0x104] sm:$0xff]
      %v1011 = vld [vmem:[%s1 + $0x10c] sm:$0xff]
      %v1012 = vld [vmem:[%s1 + $0x114] sm:$0xf]
      %v1013 = vld [vmem:[%s1 + $0x118] sm:$0xff]
      %v1014 = vld [vmem:[%s1 + $0x120] sm:$0xff]
      %v1015 = vld [vmem:[%s1 + $0x128] sm:$0xf]
      %v1016 = vld [vmem:[%s1 + $0x12c] sm:$0xff]
      %v1017 = vld [vmem:[%s1 + $0x134] sm:$0xff]
      %v1018 = vld [vmem:[%s1 + $0x13c] sm:$0xf]
      %v1067 = vunpack.c.l.b16 %v971
      %v1068 = vunpack.c.h.b16 %v971
      %v1069 = vunpack.c.l.b16 %v972
      %v1070 = vunpack.c.h.b16 %v972
      %v1071 = vunpack.c.l.b16 %v973
      %v1072 = vunpack.c.l.b16 %v974
      %v1073 = vunpack.c.h.b16 %v974
      %v1074 = vunpack.c.l.b16 %v975
      %v1075 = vunpack.c.h.b16 %v975
      %v1076 = vunpack.c.l.b16 %v976
      %v1077 = vunpack.c.l.b16 %v977
      %v1078 = vunpack.c.h.b16 %v977
      %v1079 = vunpack.c.l.b16 %v978
      %v1080 = vunpack.c.h.b16 %v978
      %v1081 = vunpack.c.l.b16 %v979
      %v1082 = vunpack.c.l.b16 %v980
      %v1083 = vunpack.c.h.b16 %v980
      %v1084 = vunpack.c.l.b16 %v981
      %v1085 = vunpack.c.h.b16 %v981
      %v1086 = vunpack.c.l.b16 %v982
      %v1087 = vunpack.c.l.b16 %v983
      %v1088 = vunpack.c.h.b16 %v983
      %v1089 = vunpack.c.l.b16 %v984
      %v1090 = vunpack.c.h.b16 %v984
      %v1091 = vunpack.c.l.b16 %v985
      %v1092 = vunpack.c.l.b16 %v986
      %v1093 = vunpack.c.h.b16 %v986
      %v1094 = vunpack.c.l.b16 %v987
      %v1095 = vunpack.c.h.b16 %v987
      %v1096 = vunpack.c.l.b16 %v988
      %v1097 = vunpack.c.l.b16 %v989
      %v1098 = vunpack.c.h.b16 %v989
      %v1099 = vunpack.c.l.b16 %v990
      %v1100 = vunpack.c.h.b16 %v990
      %v1101 = vunpack.c.l.b16 %v991
      %v1102 = vunpack.c.l.b16 %v992
      %v1103 = vunpack.c.h.b16 %v992
      %v1104 = vunpack.c.l.b16 %v993
      %v1105 = vunpack.c.h.b16 %v993
      %v1106 = vunpack.c.l.b16 %v994
      %v1107 = vunpack.c.l.b16 %v995
      %v1108 = vunpack.c.h.b16 %v995
      %v1109 = vunpack.c.l.b16 %v996
      %v1110 = vunpack.c.h.b16 %v996
      %v1111 = vunpack.c.l.b16 %v997
      %v1112 = vunpack.c.l.b16 %v998
      %v1113 = vunpack.c.h.b16 %v998
      %v1114 = vunpack.c.l.b16 %v999
      %v1115 = vunpack.c.h.b16 %v999
      %v1116 = vunpack.c.l.b16 %v1000
      %v1117 = vunpack.c.l.b16 %v1001
      %v1118 = vunpack.c.h.b16 %v1001
      %v1119 = vunpack.c.l.b16 %v1002
      %v1120 = vunpack.c.h.b16 %v1002
      %v1121 = vunpack.c.l.b16 %v1003
      %v1122 = vunpack.c.l.b16 %v1004
      %v1123 = vunpack.c.h.b16 %v1004
      %v1124 = vunpack.c.l.b16 %v1005
      %v1125 = vunpack.c.h.b16 %v1005
      %v1126 = vunpack.c.l.b16 %v1006
      %v1127 = vunpack.c.l.b16 %v1007
      %v1128 = vunpack.c.h.b16 %v1007
      %v1129 = vunpack.c.l.b16 %v1008
      %v1130 = vunpack.c.h.b16 %v1008
      %v1131 = vunpack.c.l.b16 %v1009
      %v1132 = vunpack.c.l.b16 %v1010
      %v1133 = vunpack.c.h.b16 %v1010
      %v1134 = vunpack.c.l.b16 %v1011
      %v1135 = vunpack.c.h.b16 %v1011
      %v1136 = vunpack.c.l.b16 %v1012
      %v1137 = vunpack.c.l.b16 %v1013
      %v1138 = vunpack.c.h.b16 %v1013
      %v1139 = vunpack.c.l.b16 %v1014
      %v1140 = vunpack.c.h.b16 %v1014
      %v1141 = vunpack.c.l.b16 %v1015
      %v1142 = vunpack.c.l.b16 %v1016
      %v1143 = vunpack.c.h.b16 %v1016
      %v1144 = vunpack.c.l.b16 %v1017
      %v1145 = vunpack.c.h.b16 %v1017
      %v1146 = vunpack.c.l.b16 %v1018
      %v1147 = vpack.c.b16 %v1072, %v1067
      %v1148 = vpack.c.b16 %v1073, %v1068
      %v1149 = vpack.c.b16 %v1074, %v1069
      %v1150 = vpack.c.b16 %v1075, %v1070
      %v1151 = vpack.c.b16 %v1076, %v1071
      %v1152 = vpack.c.b16 %v1082, %v1077
      %v1153 = vpack.c.b16 %v1083, %v1078
      %v1154 = vpack.c.b16 %v1084, %v1079
      %v1155 = vpack.c.b16 %v1085, %v1080
      %v1156 = vpack.c.b16 %v1086, %v1081
      %v1157 = vpack.c.b16 %v1092, %v1087
      %v1158 = vpack.c.b16 %v1093, %v1088
      %v1159 = vpack.c.b16 %v1094, %v1089
      %v1160 = vpack.c.b16 %v1095, %v1090
      %v1161 = vpack.c.b16 %v1096, %v1091
      %v1162 = vpack.c.b16 %v1102, %v1097
      %v1163 = vpack.c.b16 %v1103, %v1098
      %v1164 = vpack.c.b16 %v1104, %v1099
      %v1165 = vpack.c.b16 %v1105, %v1100
      %v1166 = vpack.c.b16 %v1106, %v1101
      %v1167 = vpack.c.b16 %v1112, %v1107
      %v1168 = vpack.c.b16 %v1113, %v1108
      %v1169 = vpack.c.b16 %v1114, %v1109
      %v1170 = vpack.c.b16 %v1115, %v1110
      %v1171 = vpack.c.b16 %v1116, %v1111
      %v1172 = vpack.c.b16 %v1122, %v1117
      %v1173 = vpack.c.b16 %v1123, %v1118
      %v1174 = vpack.c.b16 %v1124, %v1119
      %v1175 = vpack.c.b16 %v1125, %v1120
      %v1176 = vpack.c.b16 %v1126, %v1121
      %v1177 = vpack.c.b16 %v1132, %v1127
      %v1178 = vpack.c.b16 %v1133, %v1128
      %v1179 = vpack.c.b16 %v1134, %v1129
      %v1180 = vpack.c.b16 %v1135, %v1130
      %v1181 = vpack.c.b16 %v1136, %v1131
      %v1182 = vpack.c.b16 %v1142, %v1137
      %v1183 = vpack.c.b16 %v1143, %v1138
      %v1184 = vpack.c.b16 %v1144, %v1139
      %v1185 = vpack.c.b16 %v1145, %v1140
      %v1186 = vpack.c.b16 %v1146, %v1141
      %vm1219 = vcmask 523264
      %v1221 = vsel %vm1219, %v1151, 0
      %v1224 = vsel %vm1219, %v1156, 0
      %v1227 = vsel %vm1219, %v1161, 0
      %v1230 = vsel %vm1219, %v1166, 0
      %v1233 = vsel %vm1219, %v1171, 0
      %v1236 = vsel %vm1219, %v1176, 0
      %v1239 = vsel %vm1219, %v1181, 0
      %v1242 = vsel %vm1219, %v1186, 0
      %1244 = vmatprep.subr.bf16.mxu0 0
      %1245 = vmatpush1.bf16.msra.mxu0 %v935
      %1246 = vmatprep.subr.bf16.mxu0 0
      %1247 = vmatpush1.bf16.msra.mxu0 %v936
      %1248 = vmatprep.subr.bf16.mxu0 0
      %1249 = vmatpush1.bf16.msra.mxu0 %v937
      %1250 = vmatprep.subr.bf16.mxu0 0
      %1251 = vmatpush1.bf16.msra.mxu0 %v938
      %1252 = vmatprep.subr.bf16.mxu0 0
      %1253 = vmatpush1.bf16.msra.mxu0 %v939
      %1254 = vmatprep.subr.bf16.mxu0 0
      %1255 = vmatpush1.bf16.msra.mxu0 %v940
      %1256 = vmatprep.subr.bf16.mxu0 0
      %1257 = vmatpush1.bf16.msra.mxu0 %v941
      %1258 = vmatprep.subr.bf16.mxu0 0
      %1259 = vmatpush1.bf16.msra.mxu0 %v942
      %1260 = vmatprep.subr.bf16.mxu0 0
      %1261 = vmatpush1.bf16.msra.mxu0 %v943
      %1262 = vmatprep.subr.bf16.mxu0 0
      %1263 = vmatpush1.bf16.msra.mxu0 %v944
      %1264 = vmatprep.subr.bf16.mxu0 0
      %1265 = vmatpush1.bf16.msra.mxu0 %v945
      %1266 = vmatprep.subr.bf16.mxu0 0
      %1267 = vmatpush1.bf16.msra.mxu0 %v946
      %1268 = vmatprep.subr.bf16.mxu0 0
      %1269 = vmatpush1.bf16.msra.mxu0 %v947
      %1270 = vmatprep.subr.bf16.mxu0 0
      %1271 = vmatpush1.bf16.msra.mxu0 %v948
      %1272 = vmatprep.subr.bf16.mxu0 0
      %1273 = vmatpush1.bf16.msra.mxu0 %v949
      %1274 = vmatprep.subr.bf16.mxu0 0
      %1275 = vmatpush1.bf16.msra.mxu0 %v950
      %1276 = vmatprep.mubr.bf16.mxu0 %v1148
      %1277 = vmatmul.mubr.bf16.gmra.mrb[0].mxu0 %v1147
      %v1278 = vpop.f32.mrb[0].mxu0
      %v1279 = vadd.f32 0.0, %v1278
      %v1280 = vpop.f32.mrb[0].mxu0
      %v1281 = vpop.f32.mrb[0].mxu0
      %v1282 = vadd.f32 0.0, %v1281
      %v1283 = vpop.f32.mrb[0].mxu0
      %1284 = vmatprep.mubr.bf16.mxu0 %v1153
      %1285 = vmatmul.mubr.bf16.gmra.mrb[0].mxu0 %v1152
      %v1286 = vpop.f32.mrb[0].mxu0
      %v1287 = vadd.f32 0.0, %v1286
      %v1288 = vpop.f32.mrb[0].mxu0
      %v1289 = vpop.f32.mrb[0].mxu0
      %v1290 = vadd.f32 0.0, %v1289
      %v1291 = vpop.f32.mrb[0].mxu0
      %1292 = vmatprep.mubr.bf16.mxu0 %v1158
      %1293 = vmatmul.mubr.bf16.gmra.mrb[0].mxu0 %v1157
      %v1294 = vpop.f32.mrb[0].mxu0
      %v1295 = vadd.f32 0.0, %v1294
      %v1296 = vpop.f32.mrb[0].mxu0
      %v1297 = vpop.f32.mrb[0].mxu0
      %v1298 = vadd.f32 0.0, %v1297
      %v1299 = vpop.f32.mrb[0].mxu0
      %1300 = vmatprep.mubr.bf16.mxu0 %v1163
      %1301 = vmatmul.mubr.bf16.gmra.mrb[0].mxu0 %v1162
      %v1302 = vpop.f32.mrb[0].mxu0
      %v1303 = vadd.f32 0.0, %v1302
      %v1304 = vpop.f32.mrb[0].mxu0
      %v1305 = vpop.f32.mrb[0].mxu0
      %v1306 = vadd.f32 0.0, %v1305
      %v1307 = vpop.f32.mrb[0].mxu0
      %1308 = vmatprep.mubr.bf16.mxu0 %v1168
      %1309 = vmatmul.mubr.bf16.gmra.mrb[0].mxu0 %v1167
      %v1310 = vpop.f32.mrb[0].mxu0
      %v1311 = vadd.f32 0.0, %v1310
      %v1312 = vpop.f32.mrb[0].mxu0
      %v1313 = vpop.f32.mrb[0].mxu0
      %v1314 = vadd.f32 0.0, %v1313
      %v1315 = vpop.f32.mrb[0].mxu0
      %1316 = vmatprep.mubr.bf16.mxu0 %v1173
      %1317 = vmatmul.mubr.bf16.gmra.mrb[0].mxu0 %v1172
      %v1318 = vpop.f32.mrb[0].mxu0
      %v1319 = vadd.f32 0.0, %v1318
      %v1320 = vpop.f32.mrb[0].mxu0
      %v1321 = vpop.f32.mrb[0].mxu0
      %v1322 = vadd.f32 0.0, %v1321
      %v1323 = vpop.f32.mrb[0].mxu0
      %1324 = vmatprep.mubr.bf16.mxu0 %v1178
      %1325 = vmatmul.mubr.bf16.gmra.mrb[0].mxu0 %v1177
      %v1326 = vpop.f32.mrb[0].mxu0
      %v1327 = vadd.f32 0.0, %v1326
      %v1328 = vpop.f32.mrb[0].mxu0
      %v1329 = vpop.f32.mrb[0].mxu0
      %v1330 = vadd.f32 0.0, %v1329
      %v1331 = vpop.f32.mrb[0].mxu0
      %1332 = vmatprep.mubr.bf16.mxu0 %v1183
      %1333 = vmatmul.mubr.bf16.gmra.mrb[0].mxu0 %v1182
      %v1334 = vpop.f32.mrb[0].mxu0
      %v1335 = vadd.f32 0.0, %v1334
      %v1336 = vpop.f32.mrb[0].mxu0
      %v1337 = vpop.f32.mrb[0].mxu0
      %v1338 = vadd.f32 0.0, %v1337
      %v1339 = vpop.f32.mrb[0].mxu0
      %1340 = vdwg.mxu0
      %1341 = vmatprep.subr.bf16.mxu0 0
      %1342 = vmatpush1.bf16.msra.mxu0 %v951
      %1343 = vmatprep.subr.bf16.mxu0 0
      %1344 = vmatpush1.bf16.msra.mxu0 %v952
      %1345 = vmatprep.subr.bf16.mxu0 0
      %1346 = vmatpush1.bf16.msra.mxu0 %v953
      %1347 = vmatprep.subr.bf16.mxu0 0
      %1348 = vmatpush1.bf16.msra.mxu0 %v954
      %1349 = vmatprep.subr.bf16.mxu0 0
      %1350 = vmatpush1.bf16.msra.mxu0 %v955
      %1351 = vmatprep.subr.bf16.mxu0 0
      %1352 = vmatpush1.bf16.msra.mxu0 %v956
      %1353 = vmatprep.subr.bf16.mxu0 0
      %1354 = vmatpush1.bf16.msra.mxu0 %v957
      %1355 = vmatprep.subr.bf16.mxu0 0
      %1356 = vmatpush1.bf16.msra.mxu0 %v958
      %1357 = vmatprep.subr.bf16.mxu0 0
      %1358 = vmatpush1.bf16.msra.mxu0 %v959
      %1359 = vmatprep.subr.bf16.mxu0 0
      %1360 = vmatpush1.bf16.msra.mxu0 %v960
      %1361 = vmatprep.subr.bf16.mxu0 0
      %1362 = vmatpush1.bf16.msra.mxu0 %v961
      %1363 = vmatprep.subr.bf16.mxu0 0
      %1364 = vmatpush1.bf16.msra.mxu0 %v962
      %1365 = vmatprep.subr.bf16.mxu0 0
      %1366 = vmatpush1.bf16.msra.mxu0 %v963
      %1367 = vmatprep.subr.bf16.mxu0 0
      %1368 = vmatpush1.bf16.msra.mxu0 %v964
      %1369 = vmatprep.subr.bf16.mxu0 0
      %1370 = vmatpush1.bf16.msra.mxu0 %v965
      %1371 = vmatprep.subr.bf16.mxu0 0
      %1372 = vmatpush1.bf16.msra.mxu0 %v966
      %1373 = vmatprep.mubr.bf16.mxu0 %v1150
      %1374 = vmatmul.mubr.bf16.gmra.mrb[0].mxu0 %v1149
      %v1375 = vpop.f32.mrb[0].mxu0
      %v1376 = vadd.f32 %v1279, %v1375
      %v1377 = vpop.f32.mrb[0].mxu0
      %v1378 = vpop.f32.mrb[0].mxu0
      %v1379 = vadd.f32 %v1282, %v1378
      %v1380 = vpop.f32.mrb[0].mxu0
      %1381 = vmatprep.mubr.bf16.mxu0 %v1155
      %1382 = vmatmul.mubr.bf16.gmra.mrb[0].mxu0 %v1154
      %v1383 = vpop.f32.mrb[0].mxu0
      %v1384 = vadd.f32 %v1287, %v1383
      %v1385 = vpop.f32.mrb[0].mxu0
      %v1386 = vpop.f32.mrb[0].mxu0
      %v1387 = vadd.f32 %v1290, %v1386
      %v1388 = vpop.f32.mrb[0].mxu0
      %1389 = vmatprep.mubr.bf16.mxu0 %v1160
      %1390 = vmatmul.mubr.bf16.gmra.mrb[0].mxu0 %v1159
      %v1391 = vpop.f32.mrb[0].mxu0
      %v1392 = vadd.f32 %v1295, %v1391
      %v1393 = vpop.f32.mrb[0].mxu0
      %v1394 = vpop.f32.mrb[0].mxu0
      %v1395 = vadd.f32 %v1298, %v1394
      %v1396 = vpop.f32.mrb[0].mxu0
      %1397 = vmatprep.mubr.bf16.mxu0 %v1165
      %1398 = vmatmul.mubr.bf16.gmra.mrb[0].mxu0 %v1164
      %v1399 = vpop.f32.mrb[0].mxu0
      %v1400 = vadd.f32 %v1303, %v1399
      %v1401 = vpop.f32.mrb[0].mxu0
      %v1402 = vpop.f32.mrb[0].mxu0
      %v1403 = vadd.f32 %v1306, %v1402
      %v1404 = vpop.f32.mrb[0].mxu0
      %1405 = vmatprep.mubr.bf16.mxu0 %v1170
      %1406 = vmatmul.mubr.bf16.gmra.mrb[0].mxu0 %v1169
      %v1407 = vpop.f32.mrb[0].mxu0
      %v1408 = vadd.f32 %v1311, %v1407
      %v1409 = vpop.f32.mrb[0].mxu0
      %v1410 = vpop.f32.mrb[0].mxu0
      %v1411 = vadd.f32 %v1314, %v1410
      %v1412 = vpop.f32.mrb[0].mxu0
      %1413 = vmatprep.mubr.bf16.mxu0 %v1175
      %1414 = vmatmul.mubr.bf16.gmra.mrb[0].mxu0 %v1174
      %v1415 = vpop.f32.mrb[0].mxu0
      %v1416 = vadd.f32 %v1319, %v1415
      %v1417 = vpop.f32.mrb[0].mxu0
      %v1418 = vpop.f32.mrb[0].mxu0
      %v1419 = vadd.f32 %v1322, %v1418
      %v1420 = vpop.f32.mrb[0].mxu0
      %1421 = vmatprep.mubr.bf16.mxu0 %v1180
      %1422 = vmatmul.mubr.bf16.gmra.mrb[0].mxu0 %v1179
      %v1423 = vpop.f32.mrb[0].mxu0
      %v1424 = vadd.f32 %v1327, %v1423
      %v1425 = vpop.f32.mrb[0].mxu0
      %v1426 = vpop.f32.mrb[0].mxu0
      %v1427 = vadd.f32 %v1330, %v1426
      %v1428 = vpop.f32.mrb[0].mxu0
      %1429 = vmatprep.mubr.bf16.mxu0 %v1185
      %1430 = vmatmul.mubr.bf16.gmra.mrb[0].mxu0 %v1184
      %v1431 = vpop.f32.mrb[0].mxu0
      %v1432 = vadd.f32 %v1335, %v1431
      %v1433 = vpop.f32.mrb[0].mxu0
      %v1434 = vpop.f32.mrb[0].mxu0
      %v1435 = vadd.f32 %v1338, %v1434
      %v1436 = vpop.f32.mrb[0].mxu0
      %1437 = vdwg.mxu0
      %1438 = vmatprep.subr.bf16.mxu0 0
      %1439 = vmatpush1.bf16.msra.mxu0 %v967
      %1440 = vmatprep.subr.bf16.mxu0 0
      %1441 = vmatpush1.bf16.msra.mxu0 %v968
      %1442 = vmatprep.subr.bf16.mxu0 0
      %1443 = vmatpush1.bf16.msra.mxu0 %v969
      %1444 = vmatprep.subr.bf16.mxu0 0
      %1445 = vmatpush1.bf16.msra.mxu0 %v970
      %1446 = vmatprep.subr.bf16.mxu0 0
      %1447 = vmatpush1.bf16.msra.mxu0 0
      %1448 = vmatprep.subr.bf16.mxu0 0
      %1449 = vmatpush1.bf16.msra.mxu0 0
      %1450 = vmatprep.subr.bf16.mxu0 0
      %1451 = vmatpush1.bf16.msra.mxu0 0
      %1452 = vmatprep.subr.bf16.mxu0 0
      %1453 = vmatpush1.bf16.msra.mxu0 0
      %1454 = vmatprep.subr.bf16.mxu0 0
      %1455 = vmatpush1.bf16.msra.mxu0 0
      %1456 = vmatprep.subr.bf16.mxu0 0
      %1457 = vmatpush1.bf16.msra.mxu0 0
      %1458 = vmatprep.subr.bf16.mxu0 0
      %1459 = vmatpush1.bf16.msra.mxu0 0
      %1460 = vmatprep.subr.bf16.mxu0 0
      %1461 = vmatpush1.bf16.msra.mxu0 0
      %1462 = vmatprep.subr.bf16.mxu0 0
      %1463 = vmatpush1.bf16.msra.mxu0 0
      %1464 = vmatprep.subr.bf16.mxu0 0
      %1465 = vmatpush1.bf16.msra.mxu0 0
      %1466 = vmatprep.subr.bf16.mxu0 0
      %1467 = vmatpush1.bf16.msra.mxu0 0
      %1468 = vmatprep.subr.bf16.mxu0 0
      %1469 = vmatpush1.bf16.msra.mxu0 0
      %1470 = vmatprep.mubr.bf16.mxu0 0
      %1471 = vmatmul.mubr.bf16.gmra.mrb[0].mxu0 %v1221
      %v1472 = vpop.f32.mrb[0].mxu0
      %v1473 = vadd.f32 %v1376, %v1472
      %v1474 = vpop.f32.mrb[0].mxu0
      %v1475 = vpop.f32.mrb[0].mxu0
      %v1476 = vadd.f32 %v1379, %v1475
      %v1477 = vpop.f32.mrb[0].mxu0
      %1478 = vmatprep.mubr.bf16.mxu0 0
      %1479 = vmatmul.mubr.bf16.gmra.mrb[0].mxu0 %v1224
      %v1480 = vpop.f32.mrb[0].mxu0
      %v1481 = vadd.f32 %v1384, %v1480
      %v1482 = vpop.f32.mrb[0].mxu0
      %v1483 = vpop.f32.mrb[0].mxu0
      %v1484 = vadd.f32 %v1387, %v1483
      %v1485 = vpop.f32.mrb[0].mxu0
      %1486 = vmatprep.mubr.bf16.mxu0 0
      %1487 = vmatmul.mubr.bf16.gmra.mrb[0].mxu0 %v1227
      %v1488 = vpop.f32.mrb[0].mxu0
      %v1489 = vadd.f32 %v1392, %v1488
      %v1490 = vpop.f32.mrb[0].mxu0
      %v1491 = vpop.f32.mrb[0].mxu0
      %v1492 = vadd.f32 %v1395, %v1491
      %v1493 = vpop.f32.mrb[0].mxu0
      %1494 = vmatprep.mubr.bf16.mxu0 0
      %1495 = vmatmul.mubr.bf16.gmra.mrb[0].mxu0 %v1230
      %v1496 = vpop.f32.mrb[0].mxu0
      %v1497 = vadd.f32 %v1400, %v1496
      %v1498 = vpop.f32.mrb[0].mxu0
      %v1499 = vpop.f32.mrb[0].mxu0
      %v1500 = vadd.f32 %v1403, %v1499
      %v1501 = vpop.f32.mrb[0].mxu0
      %1502 = vmatprep.mubr.bf16.mxu0 0
      %1503 = vmatmul.mubr.bf16.gmra.mrb[0].mxu0 %v1233
      %v1504 = vpop.f32.mrb[0].mxu0
      %v1505 = vadd.f32 %v1408, %v1504
      %v1506 = vpop.f32.mrb[0].mxu0
      %v1507 = vpop.f32.mrb[0].mxu0
      %v1508 = vadd.f32 %v1411, %v1507
      %v1509 = vpop.f32.mrb[0].mxu0
      %1510 = vmatprep.mubr.bf16.mxu0 0
      %1511 = vmatmul.mubr.bf16.gmra.mrb[0].mxu0 %v1236
      %v1512 = vpop.f32.mrb[0].mxu0
      %v1513 = vadd.f32 %v1416, %v1512
      %v1514 = vpop.f32.mrb[0].mxu0
      %v1515 = vpop.f32.mrb[0].mxu0
      %v1516 = vadd.f32 %v1419, %v1515
      %v1517 = vpop.f32.mrb[0].mxu0
      %1518 = vmatprep.mubr.bf16.mxu0 0
      %1519 = vmatmul.mubr.bf16.gmra.mrb[0].mxu0 %v1239
      %v1520 = vpop.f32.mrb[0].mxu0
      %v1521 = vadd.f32 %v1424, %v1520
      %v1522 = vpop.f32.mrb[0].mxu0
      %v1523 = vpop.f32.mrb[0].mxu0
      %v1524 = vadd.f32 %v1427, %v1523
      %v1525 = vpop.f32.mrb[0].mxu0
      %1526 = vmatprep.mubr.bf16.mxu0 0
      %1527 = vmatmul.mubr.bf16.gmra.mrb[0].mxu0 %v1242
      %v1528 = vpop.f32.mrb[0].mxu0
      %v1529 = vadd.f32 %v1432, %v1528
      %v1530 = vpop.f32.mrb[0].mxu0
      %v1531 = vpop.f32.mrb[0].mxu0
      %v1532 = vadd.f32 %v1435, %v1531
      %v1533 = vpop.f32.mrb[0].mxu0
      %1534 = vdwg.mxu0
      %v1535 = vpack.c.bf16 %v1476, %v1473
      %v1536 = vpack.c.bf16 %v1484, %v1481
      %v1537 = vpack.c.bf16 %v1492, %v1489
      %v1538 = vpack.c.bf16 %v1500, %v1497
      %v1539 = vpack.c.bf16 %v1508, %v1505
      %v1540 = vpack.c.bf16 %v1516, %v1513
      %v1541 = vpack.c.bf16 %v1524, %v1521
      %v1542 = vpack.c.bf16 %v1532, %v1529
      %v1551 = vunpack.c.l.b16 %v1535
      %v1552 = vunpack.c.h.b16 %v1535
      %v1553 = vunpack.c.l.b16 %v1536
      %v1554 = vunpack.c.h.b16 %v1536
      %v1555 = vunpack.c.l.b16 %v1537
      %v1556 = vunpack.c.h.b16 %v1537
      %v1557 = vunpack.c.l.b16 %v1538
      %v1558 = vunpack.c.h.b16 %v1538
      %v1559 = vunpack.c.l.b16 %v1539
      %v1560 = vunpack.c.h.b16 %v1539
      %v1561 = vunpack.c.l.b16 %v1540
      %v1562 = vunpack.c.h.b16 %v1540
      %v1563 = vunpack.c.l.b16 %v1541
      %v1564 = vunpack.c.h.b16 %v1541
      %v1565 = vunpack.c.l.b16 %v1542
      %v1566 = vunpack.c.h.b16 %v1542
      %v1567 = vpack.c.b16 %v1551, %v1551
      %v1568 = vpack.c.b16 %v1552, %v1552
      %v1569 = vpack.c.b16 %v1553, %v1553
      %v1570 = vpack.c.b16 %v1554, %v1554
      %v1571 = vpack.c.b16 %v1555, %v1555
      %v1572 = vpack.c.b16 %v1556, %v1556
      %v1573 = vpack.c.b16 %v1557, %v1557
      %v1574 = vpack.c.b16 %v1558, %v1558
      %v1575 = vpack.c.b16 %v1559, %v1559
      %v1576 = vpack.c.b16 %v1560, %v1560
      %v1577 = vpack.c.b16 %v1561, %v1561
      %v1578 = vpack.c.b16 %v1562, %v1562
      %v1579 = vpack.c.b16 %v1563, %v1563
      %v1580 = vpack.c.b16 %v1564, %v1564
      %v1581 = vpack.c.b16 %v1565, %v1565
      %v1582 = vpack.c.b16 %v1566, %v1566
      %vm1599 = vcmask 27648
      %1600 = vst.msk [vmem:[%s407] sm:$0xf] %vm1599, %v1567
      %1601 = vst.msk [vmem:[%s407 + $0x4] sm:$0xf] %vm1599, %v1568
      %1602 = vst.msk [vmem:[%s407 + $0x8] sm:$0xf] %vm1599, %v1569
      %1603 = vst.msk [vmem:[%s407 + $0xc] sm:$0xf] %vm1599, %v1570
      %1604 = vst.msk [vmem:[%s407 + $0x10] sm:$0xf] %vm1599, %v1571
      %1605 = vst.msk [vmem:[%s407 + $0x14] sm:$0xf] %vm1599, %v1572
      %1606 = vst.msk [vmem:[%s407 + $0x18] sm:$0xf] %vm1599, %v1573
      %1607 = vst.msk [vmem:[%s407 + $0x1c] sm:$0xf] %vm1599, %v1574
      %1608 = vst.msk [vmem:[%s407 + $0x20] sm:$0xf] %vm1599, %v1575
      %1609 = vst.msk [vmem:[%s407 + $0x24] sm:$0xf] %vm1599, %v1576
      %1610 = vst.msk [vmem:[%s407 + $0x28] sm:$0xf] %vm1599, %v1577
      %1611 = vst.msk [vmem:[%s407 + $0x2c] sm:$0xf] %vm1599, %v1578
      %1612 = vst.msk [vmem:[%s407 + $0x30] sm:$0xf] %vm1599, %v1579
      %1613 = vst.msk [vmem:[%s407 + $0x34] sm:$0xf] %vm1599, %v1580
      %1614 = vst.msk [vmem:[%s407 + $0x38] sm:$0xf] %vm1599, %v1581
      %1615 = vst.msk [vmem:[%s407 + $0x3c] sm:$0xf] %vm1599, %v1582
      %v1616 = vld [vmem:[%s5] sm:$0xff]
      %1617 = vmatprep.subr.mxu0 0.0
      %1618 = vmatpush1.msra.mxu0 %v1473
      %1619 = vmatprep.subr.mxu0 0.0
      %1620 = vmatpush1.msra.mxu0 %v1476
      %1621 = vmatprep.subr.mxu0 0.0
      %1622 = vmatpush1.msra.mxu0 %v1481
      %1623 = vmatprep.subr.mxu0 0.0
      %1624 = vmatpush1.msra.mxu0 %v1484
      %1625 = vmatprep.subr.mxu0 0.0
      %1626 = vmatpush1.msra.mxu0 %v1489
      %1627 = vmatprep.subr.mxu0 0.0
      %1628 = vmatpush1.msra.mxu0 %v1492
      %1629 = vmatprep.subr.mxu0 0.0
      %1630 = vmatpush1.msra.mxu0 %v1497
      %1631 = vmatprep.subr.mxu0 0.0
      %1632 = vmatpush1.msra.mxu0 %v1500
      %1633 = vmatprep.subr.mxu0 0.0
      %1634 = vmatpush1.msra.mxu0 %v1505
      %1635 = vmatprep.subr.mxu0 0.0
      %1636 = vmatpush1.msra.mxu0 %v1508
      %1637 = vmatprep.subr.mxu0 0.0
      %1638 = vmatpush1.msra.mxu0 %v1513
      %1639 = vmatprep.subr.mxu0 0.0
      %1640 = vmatpush1.msra.mxu0 %v1516
      %1641 = vmatprep.subr.mxu0 0.0
      %1642 = vmatpush1.msra.mxu0 %v1521
      %1643 = vmatprep.subr.mxu0 0.0
      %1644 = vmatpush1.msra.mxu0 %v1524
      %1645 = vmatprep.subr.mxu0 0.0
      %1646 = vmatpush1.msra.mxu0 %v1529
      %1647 = vmatprep.subr.mxu0 0.0
      %1648 = vmatpush1.msra.mxu0 %v1532
      %1649 = vmatprep.subr.mxu0 0.0
      %1650 = vmatpush1.msra.mxu0 0.0
      %1651 = vmatprep.subr.mxu0 0.0
      %1652 = vmatpush1.msra.mxu0 0.0
      %1653 = vmatprep.subr.mxu0 0.0
      %1654 = vmatpush1.msra.mxu0 0.0
      %1655 = vmatprep.subr.mxu0 0.0
      %1656 = vmatpush1.msra.mxu0 0.0
      %1657 = vmatprep.subr.mxu0 0.0
      %1658 = vmatpush1.msra.mxu0 0.0
      %1659 = vmatprep.subr.mxu0 0.0
      %1660 = vmatpush1.msra.mxu0 0.0
      %1661 = vmatprep.subr.mxu0 0.0
      %1662 = vmatpush1.msra.mxu0 0.0
      %1663 = vmatprep.subr.mxu0 0.0
      %1664 = vmatpush1.msra.mxu0 0.0
      %1665 = vmatprep.subr.mxu0 0.0
      %1666 = vmatpush1.msra.mxu0 0.0
      %1667 = vmatprep.subr.mxu0 0.0
      %1668 = vmatpush1.msra.mxu0 0.0
      %1669 = vmatprep.subr.mxu0 0.0
      %1670 = vmatpush1.msra.mxu0 0.0
      %1671 = vmatprep.subr.mxu0 0.0
      %1672 = vmatpush1.msra.mxu0 0.0
      %1673 = vmatprep.subr.mxu0 0.0
      %1674 = vmatpush1.msra.mxu0 0.0
      %1675 = vmatprep.subr.mxu0 0.0
      %1676 = vmatpush1.msra.mxu0 0.0
      %1677 = vmatprep.subr.mxu0 0.0
      %1678 = vmatpush1.msra.mxu0 0.0
      %1679 = vmatprep.subr.mxu0 0.0
      %1680 = vmatpush1.msra.mxu0 0.0
      %1681 = vmatprep.mubr.f32.mxu0 0.0
      %1682 = vmatmul.mubr.f32.gmra.mrb[0].mxu0 %v1616
      %v1683 = vpop.f32.mrb[0].mxu0
      %v1684 = vadd.f32 0.0, %v1683
      %v1685 = vpop.f32.mrb[0].mxu0
      %1686 = vdwg.mxu0
      %vm1687 = vcmask 31744
      %v1688 = vsel %vm1687, %v1684, 0.0
      %1689 = vadd.xlane.f32.xlu0 %v1688
      %v1690 = vpop.xlane.xlu0 %1689
      %v1691 = vld [vmem:[%s6] sm:$0xff]
      %v1692 = vld [vmem:[%s6 + $0x8] sm:$0xff]
      %v1693 = vld [vmem:[%s6 + $0x10] sm:$0xff]
      %v1694 = vld [vmem:[%s6 + $0x18] sm:$0xff]
      %v1695 = vld [vmem:[%s6 + $0x20] sm:$0xff]
      %v1696 = vld [vmem:[%s6 + $0x28] sm:$0xff]
      %v1697 = vld [vmem:[%s6 + $0x30] sm:$0xff]
      %v1698 = vld [vmem:[%s6 + $0x38] sm:$0xff]
      %v1699 = vld [vmem:[%s6 + $0x40] sm:$0xff]
      %v1700 = vld [vmem:[%s6 + $0x48] sm:$0xff]
      %v1701 = vld [vmem:[%s6 + $0x50] sm:$0xff]
      %v1702 = vld [vmem:[%s6 + $0x58] sm:$0xff]
      %v1703 = vld [vmem:[%s6 + $0x60] sm:$0xff]
      %v1704 = vld [vmem:[%s6 + $0x68] sm:$0xff]
      %v1705 = vld [vmem:[%s6 + $0x70] sm:$0xff]
      %v1706 = vld [vmem:[%s6 + $0x78] sm:$0xff]
      %v1707 = vrcp.pop 64.0
      %v1708 = vmul.f32 %v1690, %v1707
      %vm1709 = vcmask 64512
      %v1711 = vsel %vm1709, %v1691, 0
      %v1714 = vsel %vm1709, %v1692, 0
      %v1717 = vsel %vm1709, %v1693, 0
      %v1720 = vsel %vm1709, %v1694, 0
      %v1723 = vsel %vm1709, %v1695, 0
      %v1726 = vsel %vm1709, %v1696, 0
      %v1729 = vsel %vm1709, %v1697, 0
      %v1732 = vsel %vm1709, %v1698, 0
      %v1735 = vsel %vm1709, %v1699, 0
      %v1738 = vsel %vm1709, %v1700, 0
      %v1741 = vsel %vm1709, %v1701, 0
      %v1744 = vsel %vm1709, %v1702, 0
      %v1747 = vsel %vm1709, %v1703, 0
      %v1750 = vsel %vm1709, %v1704, 0
      %v1753 = vsel %vm1709, %v1705, 0
      %v1756 = vsel %vm1709, %v1706, 0
      %1758 = vmatprep.subr.mxu0 0.0
      %1759 = vmatpush1.msra.mxu0 %v1708
      %1760 = vmatprep.subr.mxu0 0.0
      %1761 = vmatpush1.msra.mxu0 0.0
      %1762 = vmatprep.subr.mxu0 0.0
      %1763 = vmatpush1.msra.mxu0 0.0
      %1764 = vmatprep.subr.mxu0 0.0
      %1765 = vmatpush1.msra.mxu0 0.0
      %1766 = vmatprep.subr.mxu0 0.0
      %1767 = vmatpush1.msra.mxu0 0.0
      %1768 = vmatprep.subr.mxu0 0.0
      %1769 = vmatpush1.msra.mxu0 0.0
      %1770 = vmatprep.subr.mxu0 0.0
      %1771 = vmatpush1.msra.mxu0 0.0
      %1772 = vmatprep.subr.mxu0 0.0
      %1773 = vmatpush1.msra.mxu0 0.0
      %1774 = vmatprep.subr.mxu0 0.0
      %1775 = vmatpush1.msra.mxu0 0.0
      %1776 = vmatprep.subr.mxu0 0.0
      %1777 = vmatpush1.msra.mxu0 0.0
      %1778 = vmatprep.subr.mxu0 0.0
      %1779 = vmatpush1.msra.mxu0 0.0
      %1780 = vmatprep.subr.mxu0 0.0
      %1781 = vmatpush1.msra.mxu0 0.0
      %1782 = vmatprep.subr.mxu0 0.0
      %1783 = vmatpush1.msra.mxu0 0.0
      %1784 = vmatprep.subr.mxu0 0.0
      %1785 = vmatpush1.msra.mxu0 0.0
      %1786 = vmatprep.subr.mxu0 0.0
      %1787 = vmatpush1.msra.mxu0 0.0
      %1788 = vmatprep.subr.mxu0 0.0
      %1789 = vmatpush1.msra.mxu0 0.0
      %1790 = vmatprep.subr.mxu0 0.0
      %1791 = vmatpush1.msra.mxu0 0.0
      %1792 = vmatprep.subr.mxu0 0.0
      %1793 = vmatpush1.msra.mxu0 0.0
      %1794 = vmatprep.subr.mxu0 0.0
      %1795 = vmatpush1.msra.mxu0 0.0
      %1796 = vmatprep.subr.mxu0 0.0
      %1797 = vmatpush1.msra.mxu0 0.0
      %1798 = vmatprep.subr.mxu0 0.0
      %1799 = vmatpush1.msra.mxu0 0.0
      %1800 = vmatprep.subr.mxu0 0.0
      %1801 = vmatpush1.msra.mxu0 0.0
      %1802 = vmatprep.subr.mxu0 0.0
      %1803 = vmatpush1.msra.mxu0 0.0
      %1804 = vmatprep.subr.mxu0 0.0
      %1805 = vmatpush1.msra.mxu0 0.0
      %1806 = vmatprep.subr.mxu0 0.0
      %1807 = vmatpush1.msra.mxu0 0.0
      %1808 = vmatprep.subr.mxu0 0.0
      %1809 = vmatpush1.msra.mxu0 0.0
      %1810 = vmatprep.subr.mxu0 0.0
      %1811 = vmatpush1.msra.mxu0 0.0
      %1812 = vmatprep.subr.mxu0 0.0
      %1813 = vmatpush1.msra.mxu0 0.0
      %1814 = vmatprep.subr.mxu0 0.0
      %1815 = vmatpush1.msra.mxu0 0.0
      %1816 = vmatprep.subr.mxu0 0.0
      %1817 = vmatpush1.msra.mxu0 0.0
      %1818 = vmatprep.subr.mxu0 0.0
      %1819 = vmatpush1.msra.mxu0 0.0
      %1820 = vmatprep.subr.mxu0 0.0
      %1821 = vmatpush1.msra.mxu0 0.0
      %1822 = vmatprep.mubr.f32.mxu0 0.0
      %1823 = vmatmul.mubr.f32.gmra.mrb[0].mxu0 %v1711
      %v1824 = vpop.f32.mrb[0].mxu0
      %v1825 = vadd.f32 0.0, %v1824
      %v1826 = vpop.f32.mrb[0].mxu0
      %1827 = vmatprep.mubr.f32.mxu0 0.0
      %1828 = vmatmul.mubr.f32.gmra.mrb[0].mxu0 %v1714
      %v1829 = vpop.f32.mrb[0].mxu0
      %v1830 = vadd.f32 0.0, %v1829
      %v1831 = vpop.f32.mrb[0].mxu0
      %1832 = vmatprep.mubr.f32.mxu0 0.0
      %1833 = vmatmul.mubr.f32.gmra.mrb[0].mxu0 %v1717
      %v1834 = vpop.f32.mrb[0].mxu0
      %v1835 = vadd.f32 0.0, %v1834
      %v1836 = vpop.f32.mrb[0].mxu0
      %1837 = vmatprep.mubr.f32.mxu0 0.0
      %1838 = vmatmul.mubr.f32.gmra.mrb[0].mxu0 %v1720
      %v1839 = vpop.f32.mrb[0].mxu0
      %v1840 = vadd.f32 0.0, %v1839
      %v1841 = vpop.f32.mrb[0].mxu0
      %1842 = vmatprep.mubr.f32.mxu0 0.0
      %1843 = vmatmul.mubr.f32.gmra.mrb[0].mxu0 %v1723
      %v1844 = vpop.f32.mrb[0].mxu0
      %v1845 = vadd.f32 0.0, %v1844
      %v1846 = vpop.f32.mrb[0].mxu0
      %1847 = vmatprep.mubr.f32.mxu0 0.0
      %1848 = vmatmul.mubr.f32.gmra.mrb[0].mxu0 %v1726
      %v1849 = vpop.f32.mrb[0].mxu0
      %v1850 = vadd.f32 0.0, %v1849
      %v1851 = vpop.f32.mrb[0].mxu0
      %1852 = vmatprep.mubr.f32.mxu0 0.0
      %1853 = vmatmul.mubr.f32.gmra.mrb[0].mxu0 %v1729
      %v1854 = vpop.f32.mrb[0].mxu0
      %v1855 = vadd.f32 0.0, %v1854
      %v1856 = vpop.f32.mrb[0].mxu0
      %1857 = vmatprep.mubr.f32.mxu0 0.0
      %1858 = vmatmul.mubr.f32.gmra.mrb[0].mxu0 %v1732
      %v1859 = vpop.f32.mrb[0].mxu0
      %v1860 = vadd.f32 0.0, %v1859
      %v1861 = vpop.f32.mrb[0].mxu0
      %1862 = vmatprep.mubr.f32.mxu0 0.0
      %1863 = vmatmul.mubr.f32.gmra.mrb[0].mxu0 %v1735
      %v1864 = vpop.f32.mrb[0].mxu0
      %v1865 = vadd.f32 0.0, %v1864
      %v1866 = vpop.f32.mrb[0].mxu0
      %1867 = vmatprep.mubr.f32.mxu0 0.0
      %1868 = vmatmul.mubr.f32.gmra.mrb[0].mxu0 %v1738
      %v1869 = vpop.f32.mrb[0].mxu0
      %v1870 = vadd.f32 0.0, %v1869
      %v1871 = vpop.f32.mrb[0].mxu0
      %1872 = vmatprep.mubr.f32.mxu0 0.0
      %1873 = vmatmul.mubr.f32.gmra.mrb[0].mxu0 %v1741
      %v1874 = vpop.f32.mrb[0].mxu0
      %v1875 = vadd.f32 0.0, %v1874
      %v1876 = vpop.f32.mrb[0].mxu0
      %1877 = vmatprep.mubr.f32.mxu0 0.0
      %1878 = vmatmul.mubr.f32.gmra.mrb[0].mxu0 %v1744
      %v1879 = vpop.f32.mrb[0].mxu0
      %v1880 = vadd.f32 0.0, %v1879
      %v1881 = vpop.f32.mrb[0].mxu0
      %1882 = vmatprep.mubr.f32.mxu0 0.0
      %1883 = vmatmul.mubr.f32.gmra.mrb[0].mxu0 %v1747
      %v1884 = vpop.f32.mrb[0].mxu0
      %v1885 = vadd.f32 0.0, %v1884
      %v1886 = vpop.f32.mrb[0].mxu0
      %1887 = vmatprep.mubr.f32.mxu0 0.0
      %1888 = vmatmul.mubr.f32.gmra.mrb[0].mxu0 %v1750
      %v1889 = vpop.f32.mrb[0].mxu0
      %v1890 = vadd.f32 0.0, %v1889
      %v1891 = vpop.f32.mrb[0].mxu0
      %1892 = vmatprep.mubr.f32.mxu0 0.0
      %1893 = vmatmul.mubr.f32.gmra.mrb[0].mxu0 %v1753
      %v1894 = vpop.f32.mrb[0].mxu0
      %v1895 = vadd.f32 0.0, %v1894
      %v1896 = vpop.f32.mrb[0].mxu0
      %1897 = vmatprep.mubr.f32.mxu0 0.0
      %1898 = vmatmul.mubr.f32.gmra.mrb[0].mxu0 %v1756
      %v1899 = vpop.f32.mrb[0].mxu0
      %v1900 = vadd.f32 0.0, %v1899
      %v1901 = vpop.f32.mrb[0].mxu0
      %1902 = vdwg.mxu0
      %v1903 = vsub.f32 %v1473, %v1825
      %v1904 = vsub.f32 %v1476, %v1830
      %v1905 = vsub.f32 %v1481, %v1835
      %v1906 = vsub.f32 %v1484, %v1840
      %v1907 = vsub.f32 %v1489, %v1845
      %v1908 = vsub.f32 %v1492, %v1850
      %v1909 = vsub.f32 %v1497, %v1855
      %v1910 = vsub.f32 %v1500, %v1860
      %v1911 = vsub.f32 %v1505, %v1865
      %v1912 = vsub.f32 %v1508, %v1870
      %v1913 = vsub.f32 %v1513, %v1875
      %v1914 = vsub.f32 %v1516, %v1880
      %v1915 = vsub.f32 %v1521, %v1885
      %v1916 = vsub.f32 %v1524, %v1890
      %v1917 = vsub.f32 %v1529, %v1895
      %v1918 = vsub.f32 %v1532, %v1900
      %v1919 = vmul.f32 %v1903, %v1903
      %v1920 = vmul.f32 %v1904, %v1904
      %v1921 = vmul.f32 %v1905, %v1905
      %v1922 = vmul.f32 %v1906, %v1906
      %v1923 = vmul.f32 %v1907, %v1907
      %v1924 = vmul.f32 %v1908, %v1908
      %v1925 = vmul.f32 %v1909, %v1909
      %v1926 = vmul.f32 %v1910, %v1910
      %v1927 = vmul.f32 %v1911, %v1911
      %v1928 = vmul.f32 %v1912, %v1912
      %v1929 = vmul.f32 %v1913, %v1913
      %v1930 = vmul.f32 %v1914, %v1914
      %v1931 = vmul.f32 %v1915, %v1915
      %v1932 = vmul.f32 %v1916, %v1916
      %v1933 = vmul.f32 %v1917, %v1917
      %v1934 = vmul.f32 %v1918, %v1918
      %1935 = vmatprep.subr.mxu0 0.0
      %1936 = vmatpush1.msra.mxu0 %v1919
      %1937 = vmatprep.subr.mxu0 0.0
      %1938 = vmatpush1.msra.mxu0 %v1920
      %1939 = vmatprep.subr.mxu0 0.0
      %1940 = vmatpush1.msra.mxu0 %v1921
      %1941 = vmatprep.subr.mxu0 0.0
      %1942 = vmatpush1.msra.mxu0 %v1922
      %1943 = vmatprep.subr.mxu0 0.0
      %1944 = vmatpush1.msra.mxu0 %v1923
      %1945 = vmatprep.subr.mxu0 0.0
      %1946 = vmatpush1.msra.mxu0 %v1924
      %1947 = vmatprep.subr.mxu0 0.0
      %1948 = vmatpush1.msra.mxu0 %v1925
      %1949 = vmatprep.subr.mxu0 0.0
      %1950 = vmatpush1.msra.mxu0 %v1926
      %1951 = vmatprep.subr.mxu0 0.0
      %1952 = vmatpush1.msra.mxu0 %v1927
      %1953 = vmatprep.subr.mxu0 0.0
      %1954 = vmatpush1.msra.mxu0 %v1928
      %1955 = vmatprep.subr.mxu0 0.0
      %1956 = vmatpush1.msra.mxu0 %v1929
      %1957 = vmatprep.subr.mxu0 0.0
      %1958 = vmatpush1.msra.mxu0 %v1930
      %1959 = vmatprep.subr.mxu0 0.0
      %1960 = vmatpush1.msra.mxu0 %v1931
      %1961 = vmatprep.subr.mxu0 0.0
      %1962 = vmatpush1.msra.mxu0 %v1932
      %1963 = vmatprep.subr.mxu0 0.0
      %1964 = vmatpush1.msra.mxu0 %v1933
      %1965 = vmatprep.subr.mxu0 0.0
      %1966 = vmatpush1.msra.mxu0 %v1934
      %1967 = vmatprep.subr.mxu0 0.0
      %1968 = vmatpush1.msra.mxu0 0.0
      %1969 = vmatprep.subr.mxu0 0.0
      %1970 = vmatpush1.msra.mxu0 0.0
      %1971 = vmatprep.subr.mxu0 0.0
      %1972 = vmatpush1.msra.mxu0 0.0
      %1973 = vmatprep.subr.mxu0 0.0
      %1974 = vmatpush1.msra.mxu0 0.0
      %1975 = vmatprep.subr.mxu0 0.0
      %1976 = vmatpush1.msra.mxu0 0.0
      %1977 = vmatprep.subr.mxu0 0.0
      %1978 = vmatpush1.msra.mxu0 0.0
      %1979 = vmatprep.subr.mxu0 0.0
      %1980 = vmatpush1.msra.mxu0 0.0
      %1981 = vmatprep.subr.mxu0 0.0
      %1982 = vmatpush1.msra.mxu0 0.0
      %1983 = vmatprep.subr.mxu0 0.0
      %1984 = vmatpush1.msra.mxu0 0.0
      %1985 = vmatprep.subr.mxu0 0.0
      %1986 = vmatpush1.msra.mxu0 0.0
      %1987 = vmatprep.subr.mxu0 0.0
      %1988 = vmatpush1.msra.mxu0 0.0
      %1989 = vmatprep.subr.mxu0 0.0
      %1990 = vmatpush1.msra.mxu0 0.0
      %1991 = vmatprep.subr.mxu0 0.0
      %1992 = vmatpush1.msra.mxu0 0.0
      %1993 = vmatprep.subr.mxu0 0.0
      %1994 = vmatpush1.msra.mxu0 0.0
      %1995 = vmatprep.subr.mxu0 0.0
      %1996 = vmatpush1.msra.mxu0 0.0
      %1997 = vmatprep.subr.mxu0 0.0
      %1998 = vmatpush1.msra.mxu0 0.0
      %1999 = vmatprep.mubr.f32.mxu0 0.0
      %2000 = vmatmul.mubr.f32.gmra.mrb[0].mxu0 %v1616
      %v2001 = vpop.f32.mrb[0].mxu0
      %v2002 = vadd.f32 0.0, %v2001
      %v2003 = vpop.f32.mrb[0].mxu0
      %2004 = vdwg.mxu0
      %v2005 = vsel %vm1687, %v2002, 0.0
      %2006 = vadd.xlane.f32.xlu0 %v2005
      %v2007 = vpop.xlane.xlu0 %2006
      %v2008 = vlaneseq
      %v2009 = vand.u32 %v2008, 127
      %vm2010 = vcmp.eq.s32.totalorder %v2009, 0
      %v2011 = vsel %vm2010, 1, 0
      %vm2012 = vcmp.eq.s32.totalorder %v2011, 1
      %2014 = vset.pattern.permute.xlu0 0
      %2015 = vperm.xlu0 %2014, %v1690
      %v2016 = vpop.permute.xlu0 %2015
      %2019 = vset.pattern.permute.xlu0 0
      %2020 = vperm.xlu0 %2019, %v2007
      %v2021 = vpop.permute.xlu0 %2020
      %v2023 = vsel %vm2012, %v2016, 0.0
      %v2024 = vsel %vm2012, %v2021, 0.0
      %2025 = vst [vmem:[%s416] sm:$0xff] %v2023
      %2026 = vst [vmem:[%s416 + $0x8] sm:$0xff] %v2024
      %p2027 = scmp.lt.s32.totalorder %s24, 1
      %s2028 = scalar_select %p2027, %s24, 1
      %p2029 = scmp.lt.s32.totalorder %s25, 0
      %s2030 = scalar_select %p2029, %s25, 0
      %s2031 = smul.addr %s2028, 16
      %s2032 = sadd.s32 %s2030, %s2031
      %s2033 = smul.addr %s2032, 4
      %s2034 = scalar_lea.vmem %s7, %s2033
      %p2035 = scmp.lt.s32.totalorder %s24, 1
      %s2036 = scalar_select %p2035, %s24, 1
      %p2037 = scmp.lt.s32.totalorder %s25, 0
      %s2038 = scalar_select %p2037, %s25, 0
      %s2039 = smul.addr %s2038, 2
      %s2040 = smul.addr %s2036, 2
      %s2041 = sadd.s32 %s2039, %s2040
      %s2042 = smul.addr %s2041, 8
      %s2043 = scalar_lea.vmem %s8, %s2042
      // Predicated region
      $region49: #{encoder_forward.6} parent=47 // pred_check
        %p2044 = pneg %p221
      $region50: #{encoder_forward.6} parent=47 // pred_check_branch
        %2046 = sbr.rel (%p2044) target = $region52
      $region51: #{encoder_forward.6} parent=47 // pred_region
        _
      $region52: #{encoder_forward.6} parent=47 // pred_fallthru
        _
      // Predicated region
      $region53: #{encoder_forward.6} parent=47 // pred_check
        %p2047 = pneg %p249
      $region54: #{encoder_forward.6} parent=47 // pred_check_branch
        %2049 = sbr.rel (%p2047) target = $region56
      $region55: #{encoder_forward.6} parent=47 // pred_region
        _
      $region56: #{encoder_forward.6} parent=47 // pred_fallthru
        _
    $region48: #{encoder_forward.6} parent=5 // pred_fallthru
      _
    %p2050 = scmp.le.s32.totalorder 2, %s15
    // Predicated region
    $region57: #{encoder_forward.6} parent=5 // pred_check
      %p2051 = pneg %p2050
    $region58: #{encoder_forward.6} parent=5 // pred_check_branch
      %2053 = sbr.rel (%p2051) target = $region60
    $region59: #{encoder_forward.6} parent=5 // pred_region
      %s2054 = ssub.s32 %s15, 2
      // Predicated region
      $region61: #{encoder_forward.6} parent=59 // pred_check
        %p2055 = pneg %p227
      $region62: #{encoder_forward.6} parent=59 // pred_check_branch
        %2057 = sbr.rel (%p2055) target = $region64
      $region63: #{encoder_forward.6} parent=59 // pred_region
        %p2058 = scmp.lt.s32.totalorder %s26, 1
        %s2059 = scalar_select %p2058, %s26, 1
        %p2060 = scmp.lt.s32.totalorder %s27, 0
        %s2061 = scalar_select %p2060, %s27, 0
        %s2062 = smul.addr %s2059, 16
        %s2063 = sadd.s32 %s2061, %s2062
        %s2064 = smul.addr %s2063, 4
        %s2065 = scalar_lea.vmem %s7, %s2064
      $region64: #{encoder_forward.6} parent=59 // pred_fallthru
        _
      // Predicated region
      $region65: #{encoder_forward.6} parent=59 // pred_check
        %p2066 = pneg %p255
      $region66: #{encoder_forward.6} parent=59 // pred_check_branch
        %2068 = sbr.rel (%p2066) target = $region68
      $region67: #{encoder_forward.6} parent=59 // pred_region
        %p2069 = scmp.lt.s32.totalorder %s26, 1
        %s2070 = scalar_select %p2069, %s26, 1
        %p2071 = scmp.lt.s32.totalorder %s27, 0
        %s2072 = scalar_select %p2071, %s27, 0
        %s2073 = smul.addr %s2072, 2
        %s2074 = smul.addr %s2070, 2
        %s2075 = sadd.s32 %s2073, %s2074
        %s2076 = smul.addr %s2075, 8
        %s2077 = scalar_lea.vmem %s8, %s2076
      $region68: #{encoder_forward.6} parent=59 // pred_fallthru
        _
    $region60: #{encoder_forward.6} parent=5 // pred_fallthru
      _
  $region6: #{encoder_forward.6} parent=0 // loop_footer
    %s19 = sadd.s32 1, %s15
  $region7: #{encoder_forward.6} parent=0 // loop_footer_branch
    %14 = sbr.rel target = $region3
  $region8: #{encoder_forward.6} parent=0 // loop_exit
    _

</llo_original>
